<compile_context>
chip_gen: v6e
topology: v6e:2x2x1
jax: 0.10.0
libtpu: 0.0.40
codegen_flags: <defaults>
</compile_context>

<pallas_src>
import jax
import jax.numpy as jnp
from jax.experimental import pallas as pl
from jax.experimental.pallas import tpu as pltpu

# ---------------- model hyper-params (small, consistent with the module) -----
VOCAB = 512
EMB_DIM = 384            # = 3 * NUM_FILTERS (required by the module's forward)
NUM_FILTERS = 128
FILTER_SIZES = (3, 4, 5)
HIDDEN = 256
CLASS_NUM = 8
BATCH = 4
SEQ_LEN = 16

CPAD = 128               # lane-dense padded logits width
NEG = -1e30              # additive mask value (well below any activation)


def _textcnn_kernel(x_ref, wst_ref, bst_ref, mask_ref, w1_ref, b1_ref,
                    w2_ref, b2_ref, o_ref):
    """TextCNN + MLP forward for the whole (small) batch in one grid step.

    x_ref    : (1, B, L, D)   bf16 embedded tokens
    wst_ref  : (KMAX, D, 3F)  bf16 stacked conv taps (zero past each branch's k)
    bst_ref  : (1, 3F)        f32 concatenated conv bias
    mask_ref : (L, 3F)        f32 additive validity mask (0 valid / NEG invalid)
    w1_ref   : (3F, H)  bf16,  b1_ref : (1, H)    f32
    w2_ref   : (H, CPAD) bf16, b2_ref : (1, CPAD) f32   (padded to 128 lanes)
    o_ref    : (1, B, CPAD)   f32 padded logits
    """
    _, B, L, D = x_ref.shape
    KMAX, _, F3 = wst_ref.shape
    M = B * L

    x2 = x_ref[...].reshape(M, D)                        # bf16 (M, D)

    # ---- fused 3-branch Conv1d: KMAX bf16 tap matmuls at N = 3F -------------
    # Tap j's full-length product is realigned (acc[p] += y_j[p + j]) with a
    # static sublane roll on the XLU; wrapped / cross-sample rows are exactly
    # the rows the validity mask kills (see pack_params invariant).
    acc = jnp.dot(x2, wst_ref[0], preferred_element_type=jnp.float32)  # (M, 3F)
    for j in range(1, KMAX):
        y_j = jnp.dot(x2, wst_ref[j], preferred_element_type=jnp.float32)
        acc = acc + pltpu.roll(y_j, shift=M - j, axis=0)  # rolled[p] = y_j[p+j]

    # ---- mask invalid rows per branch, max-pool over time -------------------
    acc3 = acc.reshape(B, L, F3) + mask_ref[...]          # broadcast over B
    pooled = jnp.max(acc3, axis=1) + bst_ref[...]         # (B, 3F) f32

    # ---- MLP head (bf16 operands, f32 accumulate, f32 elementwise) ----------
    h = jnp.dot(pooled.astype(jnp.bfloat16), w1_ref[...],
                preferred_element_type=jnp.float32) + b1_ref[...]
    h = jnp.maximum(h, 0.0)                               # relu
    y = jnp.dot(h.astype(jnp.bfloat16), w2_ref[...],
                preferred_element_type=jnp.float32) + b2_ref[...]
    o_ref[0] = y.astype(o_ref.dtype)


def pack_params(emb_table, conv_ws, conv_bs, w1, b1, w2, b2, seq_len):
    """One-time (out-of-jit) parameter repacking for the fused kernel."""
    D = emb_table.shape[1]
    F = conv_ws[0].shape[-1]
    F3 = len(FILTER_SIZES) * F
    KMAX = max(FILTER_SIZES)
    L = seq_len
    H = w1.shape[1]
    C = w2.shape[1]

    # Invariants that make the in-kernel roll realignment safe:
    #   * taps j >= k are zero in the stacked weight for a branch of size k,
    #   * rows p > L - k are masked to NEG for that branch,
    #   so every surviving (p, j) pair has p + j <= L - 1 (same sample, no wrap).
    assert all(1 <= k <= L for k in FILTER_SIZES), "filter size must be <= seq len"
    assert F3 == w1.shape[0], "MLP input must equal concatenated conv features"
    assert C <= CPAD

    # Stack the conv weights into one (KMAX, D, 3F) tensor, zero past each k.
    w_st = jnp.zeros((KMAX, D, F3), jnp.float32)
    for bi, (k, wk) in enumerate(zip(FILTER_SIZES, conv_ws)):
        w_st = w_st.at[:k, :, bi * F:(bi + 1) * F].set(wk)
    b_st = jnp.concatenate(conv_bs, axis=1)                        # (1, 3F)

    # Additive validity mask (L, 3F): 0 where p <= L - k, NEG otherwise.
    mask = jnp.zeros((L, F3), jnp.float32)
    row = jnp.arange(L)[:, None]
    for bi, k in enumerate(FILTER_SIZES):
        mask = mask.at[:, bi * F:(bi + 1) * F].set(
            jnp.where(row <= L - k, 0.0, NEG))

    # Lane-dense classifier: pad to CPAD = 128 output columns.
    w2p = jnp.zeros((H, CPAD), jnp.float32).at[:, :C].set(w2)
    b2p = jnp.zeros((1, CPAD), jnp.float32).at[:, :C].set(b2)

    # bf16 matmul operands (f32 accumulate / elementwise inside the kernel);
    # embedding table cast once so the gather writes/reads bf16, not f32.
    return (emb_table.astype(jnp.bfloat16),
            w_st.astype(jnp.bfloat16),
            b_st,
            mask,
            w1.astype(jnp.bfloat16),
            b1,
            w2p.astype(jnp.bfloat16),
            b2p)


@jax.jit
def textcnn_forward(sentence, emb_b, w_st_b, b_st, mask, w1b, b1, w2b, b2p):
    """sentence: (B, L) int32 token ids.  Returns (B, CLASS_NUM) f32 logits."""
    B, L = sentence.shape
    D = emb_b.shape[1]
    assert (B * L) % 8 == 0 and D % 128 == 0

    # TODO(synk): fuse this embedding gather into the kernel (scalar-prefetched
    # ids + manual DMA row gather); kept as wrapper glue for now.
    x = jnp.take(emb_b, sentence, axis=0).reshape(1, B, L, D)      # bf16

    def const_spec(a):                       # full array, resident const input
        nd = a.ndim
        return pl.BlockSpec(a.shape, lambda i, nd=nd: (0,) * nd)

    out = pl.pallas_call(
        _textcnn_kernel,
        out_shape=jax.ShapeDtypeStruct((1, B, CPAD), jnp.float32),
        grid_spec=pltpu.PrefetchScalarGridSpec(
            num_scalar_prefetch=0,
            grid=(1,),                       # single step: weights DMA'd once
            in_specs=[pl.BlockSpec((1, B, L, D), lambda i: (0, 0, 0, 0)),
                      const_spec(w_st_b),
                      const_spec(b_st),
                      const_spec(mask),
                      const_spec(w1b),
                      const_spec(b1),
                      const_spec(w2b),
                      const_spec(b2p)],
            out_specs=pl.BlockSpec((1, B, CPAD), lambda i: (0, 0, 0)),
        ),
        compiler_params=pltpu.CompilerParams(
            dimension_semantics=("arbitrary",),
            vmem_limit_bytes=32 * 1024 * 1024),
    )(x, w_st_b, b_st, mask, w1b, b1, w2b, b2p)

    return out.reshape(B, CPAD)[:, :CLASS_NUM]


def _reference(x_emb, conv_ws, conv_bs, w1, b1, w2, b2):
    """Pure-JAX reference mirroring the PyTorch forward (same bf16 operands)."""
    xb = x_emb.astype(jnp.bfloat16)
    L = x_emb.shape[1]
    pooled = []
    for k, wk, bk in zip(FILTER_SIZES, conv_ws, conv_bs):
        wkb = wk.astype(jnp.bfloat16)
        l_out = L - k + 1
        acc = None
        for j in range(k):
            t = jax.lax.dot_general(xb[:, j:j + l_out, :], wkb[j],
                                    dimension_numbers=(((2,), (0,)), ((), ())),
                                    preferred_element_type=jnp.float32)
            acc = t if acc is None else acc + t
        acc = acc + bk[None]
        pooled.append(jnp.max(acc, axis=1))              # (B, F)
    feat = jnp.concatenate(pooled, axis=1)               # (B, 3F)
    h = jnp.maximum(
        jnp.dot(feat.astype(jnp.bfloat16), w1.astype(jnp.bfloat16),
                preferred_element_type=jnp.float32) + b1, 0.0)
    return jnp.dot(h.astype(jnp.bfloat16), w2.astype(jnp.bfloat16),
                   preferred_element_type=jnp.float32) + b2


if __name__ == "__main__":
    key = jax.random.PRNGKey(0)
    k_emb, k_tok, k_w1, k_w2, *k_conv = jax.random.split(key, 4 + len(FILTER_SIZES))

    # Deterministic "parameters" (synthetic, not a checkpoint load).
    emb_table = jax.random.normal(k_emb, (VOCAB, EMB_DIM), jnp.float32) * 0.02

    conv_ws, conv_bs = [], []
    for i, k in enumerate(FILTER_SIZES):
        scale = (2.0 / (k * EMB_DIM)) ** 0.5
        conv_ws.append(jax.random.normal(k_conv[i], (k, EMB_DIM, NUM_FILTERS),
                                         jnp.float32) * scale)
        conv_bs.append(jnp.zeros((1, NUM_FILTERS), jnp.float32))

    in1 = len(FILTER_SIZES) * NUM_FILTERS    # == EMB_DIM, as in the original module
    w1 = jax.random.normal(k_w1, (in1, HIDDEN), jnp.float32) * (2.0 / (in1 + HIDDEN)) ** 0.5
    b1 = jnp.zeros((1, HIDDEN), jnp.float32)
    w2 = jax.random.normal(k_w2, (HIDDEN, CLASS_NUM), jnp.float32) * (2.0 / (HIDDEN + CLASS_NUM)) ** 0.5
    b2 = jnp.zeros((1, CLASS_NUM), jnp.float32)

    # One-time packing (NOT in the jitted per-call path).
    packed = pack_params(emb_table, conv_ws, conv_bs, w1, b1, w2, b2, SEQ_LEN)

    # Input: integer token ids (B, L).  (nn.Dropout in the module is never
    # applied in its forward, so it is a no-op here.)
    sentence = jax.random.randint(k_tok, (BATCH, SEQ_LEN), 0, VOCAB, jnp.int32)

    y = textcnn_forward(sentence, *packed)
    y = jax.block_until_ready(y)

    x_emb = jnp.take(emb_table, sentence, axis=0)        # (B, L, D) f32
    y_ref = _reference(x_emb, conv_ws, conv_bs, w1, b1, w2, b2)
    assert y.shape == (BATCH, CLASS_NUM)
    assert jnp.allclose(y, y_ref, atol=2e-2, rtol=2e-2), "mismatch vs reference"

    print("KERNEL_OK")
</pallas_src>

<mosaic_0001>
module attributes {stable_mosaic.version = 11 : i64} {
  func.func @_textcnn_kernel(%arg0: i32, %arg1: memref<1x4x16x384xbf16, #tpu.memory_space<vmem>>, %arg2: memref<5x384x384xbf16, #tpu.memory_space<vmem>>, %arg3: memref<1x384xf32, #tpu.memory_space<vmem>>, %arg4: memref<16x384xf32, #tpu.memory_space<vmem>>, %arg5: memref<384x256xbf16, #tpu.memory_space<vmem>>, %arg6: memref<1x256xf32, #tpu.memory_space<vmem>>, %arg7: memref<256x128xbf16, #tpu.memory_space<vmem>>, %arg8: memref<1x128xf32, #tpu.memory_space<vmem>>, %arg9: memref<1x4x128xf32, #tpu.memory_space<vmem>>) attributes {dimension_semantics = [#tpu.dimension_semantics<arbitrary>], iteration_bounds = array<i64: 1>, scalar_prefetch = 0 : i64, scratch_operands = 0 : i64, tpu.core_type = #tpu.core_type<tc>, window_params = [{pipeline_mode = #tpu.pipeline_mode<synchronous>, transform_indices = @transform_0, window_bounds = array<i64: 1, 4, 16, 384>}, {pipeline_mode = #tpu.pipeline_mode<synchronous>, transform_indices = @transform_1, window_bounds = array<i64: 5, 384, 384>}, {pipeline_mode = #tpu.pipeline_mode<synchronous>, transform_indices = @transform_2, window_bounds = array<i64: 1, 384>}, {pipeline_mode = #tpu.pipeline_mode<synchronous>, transform_indices = @transform_3, window_bounds = array<i64: 16, 384>}, {pipeline_mode = #tpu.pipeline_mode<synchronous>, transform_indices = @transform_4, window_bounds = array<i64: 384, 256>}, {pipeline_mode = #tpu.pipeline_mode<synchronous>, transform_indices = @transform_5, window_bounds = array<i64: 1, 256>}, {pipeline_mode = #tpu.pipeline_mode<synchronous>, transform_indices = @transform_6, window_bounds = array<i64: 256, 128>}, {pipeline_mode = #tpu.pipeline_mode<synchronous>, transform_indices = @transform_7, window_bounds = array<i64: 1, 128>}, {pipeline_mode = #tpu.pipeline_mode<synchronous>, transform_indices = @transform_8, window_bounds = array<i64: 1, 4, 128>}]} {
    %c0 = arith.constant 0 : index
    %c0_0 = arith.constant 0 : index
    %c0_1 = arith.constant 0 : index
    %c0_2 = arith.constant 0 : index
    %0 = vector.load %arg1[%c0, %c0_0, %c0_1, %c0_2] : memref<1x4x16x384xbf16, #tpu.memory_space<vmem>>, vector<1x4x16x384xbf16>
    %1 = vector.shape_cast %0 : vector<1x4x16x384xbf16> to vector<64x384xbf16>
    %c0_3 = arith.constant 0 : index
    %c0_4 = arith.constant 0 : index
    %c0_5 = arith.constant 0 : index
    %2 = vector.load %arg2[%c0_3, %c0_4, %c0_5] : memref<5x384x384xbf16, #tpu.memory_space<vmem>>, vector<1x384x384xbf16>
    %3 = vector.shape_cast %2 : vector<1x384x384xbf16> to vector<384x384xbf16>
    %cst = arith.constant dense<0.000000e+00> : vector<64x384xf32>
    %4 = tpu.matmul %1, %3, %cst {dimension_numbers = #tpu.dot_dimension_numbers<[1], [0], [0], [1], [0, 0, 1, 1], [], []>} : vector<64x384xbf16>, vector<384x384xbf16>, vector<64x384xf32> -> vector<64x384xf32>
    %c1 = arith.constant 1 : index
    %c0_6 = arith.constant 0 : index
    %c0_7 = arith.constant 0 : index
    %5 = vector.load %arg2[%c1, %c0_6, %c0_7] : memref<5x384x384xbf16, #tpu.memory_space<vmem>>, vector<1x384x384xbf16>
    %6 = vector.shape_cast %5 : vector<1x384x384xbf16> to vector<384x384xbf16>
    %cst_8 = arith.constant dense<0.000000e+00> : vector<64x384xf32>
    %7 = tpu.matmul %1, %6, %cst_8 {dimension_numbers = #tpu.dot_dimension_numbers<[1], [0], [0], [1], [0, 0, 1, 1], [], []>} : vector<64x384xbf16>, vector<384x384xbf16>, vector<64x384xf32> -> vector<64x384xf32>
    %c63_i32 = arith.constant 63 : i32
    %8 = tpu.dynamic_rotate %7 by %c63_i32 dim 0 : vector<64x384xf32>, i32 -> vector<64x384xf32>
    %9 = arith.addf %4, %8 : vector<64x384xf32>
    %c2 = arith.constant 2 : index
    %c0_9 = arith.constant 0 : index
    %c0_10 = arith.constant 0 : index
    %10 = vector.load %arg2[%c2, %c0_9, %c0_10] : memref<5x384x384xbf16, #tpu.memory_space<vmem>>, vector<1x384x384xbf16>
    %11 = vector.shape_cast %10 : vector<1x384x384xbf16> to vector<384x384xbf16>
    %cst_11 = arith.constant dense<0.000000e+00> : vector<64x384xf32>
    %12 = tpu.matmul %1, %11, %cst_11 {dimension_numbers = #tpu.dot_dimension_numbers<[1], [0], [0], [1], [0, 0, 1, 1], [], []>} : vector<64x384xbf16>, vector<384x384xbf16>, vector<64x384xf32> -> vector<64x384xf32>
    %c62_i32 = arith.constant 62 : i32
    %13 = tpu.dynamic_rotate %12 by %c62_i32 dim 0 : vector<64x384xf32>, i32 -> vector<64x384xf32>
    %14 = arith.addf %9, %13 : vector<64x384xf32>
    %c3 = arith.constant 3 : index
    %c0_12 = arith.constant 0 : index
    %c0_13 = arith.constant 0 : index
    %15 = vector.load %arg2[%c3, %c0_12, %c0_13] : memref<5x384x384xbf16, #tpu.memory_space<vmem>>, vector<1x384x384xbf16>
    %16 = vector.shape_cast %15 : vector<1x384x384xbf16> to vector<384x384xbf16>
    %cst_14 = arith.constant dense<0.000000e+00> : vector<64x384xf32>
    %17 = tpu.matmul %1, %16, %cst_14 {dimension_numbers = #tpu.dot_dimension_numbers<[1], [0], [0], [1], [0, 0, 1, 1], [], []>} : vector<64x384xbf16>, vector<384x384xbf16>, vector<64x384xf32> -> vector<64x384xf32>
    %c61_i32 = arith.constant 61 : i32
    %18 = tpu.dynamic_rotate %17 by %c61_i32 dim 0 : vector<64x384xf32>, i32 -> vector<64x384xf32>
    %19 = arith.addf %14, %18 : vector<64x384xf32>
    %c4 = arith.constant 4 : index
    %c0_15 = arith.constant 0 : index
    %c0_16 = arith.constant 0 : index
    %20 = vector.load %arg2[%c4, %c0_15, %c0_16] : memref<5x384x384xbf16, #tpu.memory_space<vmem>>, vector<1x384x384xbf16>
    %21 = vector.shape_cast %20 : vector<1x384x384xbf16> to vector<384x384xbf16>
    %cst_17 = arith.constant dense<0.000000e+00> : vector<64x384xf32>
    %22 = tpu.matmul %1, %21, %cst_17 {dimension_numbers = #tpu.dot_dimension_numbers<[1], [0], [0], [1], [0, 0, 1, 1], [], []>} : vector<64x384xbf16>, vector<384x384xbf16>, vector<64x384xf32> -> vector<64x384xf32>
    %c60_i32 = arith.constant 60 : i32
    %23 = tpu.dynamic_rotate %22 by %c60_i32 dim 0 : vector<64x384xf32>, i32 -> vector<64x384xf32>
    %24 = arith.addf %19, %23 : vector<64x384xf32>
    %25 = vector.shape_cast %24 : vector<64x384xf32> to vector<4x16x384xf32>
    %c0_18 = arith.constant 0 : index
    %c0_19 = arith.constant 0 : index
    %26 = vector.load %arg4[%c0_18, %c0_19] : memref<16x384xf32, #tpu.memory_space<vmem>>, vector<16x384xf32>
    %27 = vector.shape_cast %26 : vector<16x384xf32> to vector<1x16x384xf32>
    %28 = vector.broadcast %27 : vector<1x16x384xf32> to vector<4x16x384xf32>
    %29 = arith.addf %25, %28 : vector<4x16x384xf32>
    %cst_20 = arith.constant dense<0xFF800000> : vector<4x384xf32>
    %30 = vector.multi_reduction <maximumf>, %29, %cst_20 [1] : vector<4x16x384xf32> to vector<4x384xf32>
    %c0_21 = arith.constant 0 : index
    %c0_22 = arith.constant 0 : index
    %31 = vector.load %arg3[%c0_21, %c0_22] : memref<1x384xf32, #tpu.memory_space<vmem>>, vector<1x384xf32>
    %32 = vector.broadcast %31 : vector<1x384xf32> to vector<4x384xf32>
    %33 = arith.addf %30, %32 : vector<4x384xf32>
    %34 = arith.truncf %33 : vector<4x384xf32> to vector<4x384xbf16>
    %c0_23 = arith.constant 0 : index
    %c0_24 = arith.constant 0 : index
    %35 = vector.load %arg5[%c0_23, %c0_24] : memref<384x256xbf16, #tpu.memory_space<vmem>>, vector<384x256xbf16>
    %cst_25 = arith.constant dense<0.000000e+00> : vector<4x256xf32>
    %36 = tpu.matmul %34, %35, %cst_25 {dimension_numbers = #tpu.dot_dimension_numbers<[1], [0], [0], [1], [0, 0, 1, 1], [], []>} : vector<4x384xbf16>, vector<384x256xbf16>, vector<4x256xf32> -> vector<4x256xf32>
    %c0_26 = arith.constant 0 : index
    %c0_27 = arith.constant 0 : index
    %37 = vector.load %arg6[%c0_26, %c0_27] : memref<1x256xf32, #tpu.memory_space<vmem>>, vector<1x256xf32>
    %38 = vector.broadcast %37 : vector<1x256xf32> to vector<4x256xf32>
    %39 = arith.addf %36, %38 : vector<4x256xf32>
    %cst_28 = arith.constant 0.000000e+00 : f32
    %40 = vector.broadcast %cst_28 : f32 to vector<4x256xf32>
    %41 = arith.maximumf %39, %40 : vector<4x256xf32>
    %42 = arith.truncf %41 : vector<4x256xf32> to vector<4x256xbf16>
    %c0_29 = arith.constant 0 : index
    %c0_30 = arith.constant 0 : index
    %43 = vector.load %arg7[%c0_29, %c0_30] : memref<256x128xbf16, #tpu.memory_space<vmem>>, vector<256x128xbf16>
    %cst_31 = arith.constant dense<0.000000e+00> : vector<4x128xf32>
    %44 = tpu.matmul %42, %43, %cst_31 {dimension_numbers = #tpu.dot_dimension_numbers<[1], [0], [0], [1], [0, 0, 1, 1], [], []>} : vector<4x256xbf16>, vector<256x128xbf16>, vector<4x128xf32> -> vector<4x128xf32>
    %c0_32 = arith.constant 0 : index
    %c0_33 = arith.constant 0 : index
    %45 = vector.load %arg8[%c0_32, %c0_33] : memref<1x128xf32, #tpu.memory_space<vmem>>, vector<1x128xf32>
    %46 = vector.broadcast %45 : vector<1x128xf32> to vector<4x128xf32>
    %47 = arith.addf %44, %46 : vector<4x128xf32>
    %c0_34 = arith.constant 0 : index
    %c0_35 = arith.constant 0 : index
    %c0_36 = arith.constant 0 : index
    %48 = vector.load %arg9[%c0_34, %c0_35, %c0_36] : memref<1x4x128xf32, #tpu.memory_space<vmem>>, vector<1x4x128xf32>
    %49 = vector.shape_cast %48 : vector<1x4x128xf32> to vector<4x128xf32>
    %50 = vector.shape_cast %47 : vector<4x128xf32> to vector<1x4x128xf32>
    tpu.vector_store %arg9[%c0_34, %c0_35, %c0_36], %50 {strides = array<i32>} : memref<1x4x128xf32, #tpu.memory_space<vmem>>, vector<1x4x128xf32>,
    return
  }
  func.func @transform_0(%arg0: i32) -> (i32, i32, i32, i32) {
    %c0_i32 = arith.constant 0 : i32
    %c0_i32_0 = arith.constant 0 : i32
    %c0_i32_1 = arith.constant 0 : i32
    %c0_i32_2 = arith.constant 0 : i32
    %c0_i32_3 = arith.constant 0 : i32
    return %c0_i32, %c0_i32_0, %c0_i32_1, %c0_i32_2 : i32, i32, i32, i32
  }
  func.func @transform_1(%arg0: i32) -> (i32, i32, i32) {
    %c0_i32 = arith.constant 0 : i32
    %c0_i32_0 = arith.constant 0 : i32
    %c0_i32_1 = arith.constant 0 : i32
    %c0_i32_2 = arith.constant 0 : i32
    return %c0_i32, %c0_i32_0, %c0_i32_1 : i32, i32, i32
  }
  func.func @transform_2(%arg0: i32) -> (i32, i32) {
    %c0_i32 = arith.constant 0 : i32
    %c0_i32_0 = arith.constant 0 : i32
    %c0_i32_1 = arith.constant 0 : i32
    return %c0_i32, %c0_i32_0 : i32, i32
  }
  func.func @transform_3(%arg0: i32) -> (i32, i32) {
    %c0_i32 = arith.constant 0 : i32
    %c0_i32_0 = arith.constant 0 : i32
    %c0_i32_1 = arith.constant 0 : i32
    return %c0_i32, %c0_i32_0 : i32, i32
  }
  func.func @transform_4(%arg0: i32) -> (i32, i32) {
    %c0_i32 = arith.constant 0 : i32
    %c0_i32_0 = arith.constant 0 : i32
    %c0_i32_1 = arith.constant 0 : i32
    return %c0_i32, %c0_i32_0 : i32, i32
  }
  func.func @transform_5(%arg0: i32) -> (i32, i32) {
    %c0_i32 = arith.constant 0 : i32
    %c0_i32_0 = arith.constant 0 : i32
    %c0_i32_1 = arith.constant 0 : i32
    return %c0_i32, %c0_i32_0 : i32, i32
  }
  func.func @transform_6(%arg0: i32) -> (i32, i32) {
    %c0_i32 = arith.constant 0 : i32
    %c0_i32_0 = arith.constant 0 : i32
    %c0_i32_1 = arith.constant 0 : i32
    return %c0_i32, %c0_i32_0 : i32, i32
  }
  func.func @transform_7(%arg0: i32) -> (i32, i32) {
    %c0_i32 = arith.constant 0 : i32
    %c0_i32_0 = arith.constant 0 : i32
    %c0_i32_1 = arith.constant 0 : i32
    return %c0_i32, %c0_i32_0 : i32, i32
  }
  func.func @transform_8(%arg0: i32) -> (i32, i32, i32) {
    %c0_i32 = arith.constant 0 : i32
    %c0_i32_0 = arith.constant 0 : i32
    %c0_i32_1 = arith.constant 0 : i32
    %c0_i32_2 = arith.constant 0 : i32
    return %c0_i32, %c0_i32_0, %c0_i32_1 : i32, i32, i32
  }
}

</mosaic_0001>

<llo_original>
// kernel: textcnn_forward.1
$region0: #{textcnn_forward.1}
  #allocation0 [shape = 'u32[]', space=smem, size = 0x4, offset = 0x4, fixed_abs, tag = 'smem constant byte address 0x4 - core index']
  #allocation1 [shape = 'u32[144,128]{1,0:T(1,128)}', space=vmem, size = 0x12000, scoped, tag = 'internal scratch']
  %s0 = inlined_call_operand.vmem [shape: bf16[1,4,16,384], index: 0, kind: input, shape index: {}]
  %s1 = inlined_call_operand.hbm [shape: bf16[5,384,384], index: 1, kind: input, shape index: {}]
  %s2 = inlined_call_operand.hbm [shape: f32[1,384], index: 2, kind: input, shape index: {}]
  %s3 = inlined_call_operand.hbm [shape: f32[16,384], index: 3, kind: input, shape index: {}]
  %s4 = inlined_call_operand.hbm [shape: bf16[384,256], index: 4, kind: input, shape index: {}]
  %s5 = inlined_call_operand.hbm [shape: f32[1,256], index: 5, kind: input, shape index: {}]
  %s6 = inlined_call_operand.hbm [shape: bf16[256,128], index: 6, kind: input, shape index: {}]
  %s7 = inlined_call_operand.hbm [shape: f32[1,128], index: 7, kind: input, shape index: {}]
  %s8 = inlined_call_operand.hbm [shape: f32[1,4,128], index: 8, kind: output, shape index: {}]
  %s9 = sld [smem:[#allocation0]]
  $region70: #{textcnn_forward.1} parent=0
    _
  %s11 = ssub.s32 1, %s9
  %s12 = scalar_select 0, %s11, %s9
  $region1: #{textcnn_forward.1} parent=0
    #allocation2 [shape = 'u8[1474560]{0}', space=vmem, size = 0x168000, scoped, tag = 'input window, operand 1, single buffered']
    #allocation3 [shape = 's32[1]{0}', space=sflag, size = 0x4, scoped, tag = 'scoped memory for textcnn_forward.1']
    #allocation4 [shape = 's32[1]{0}', space=sflag, size = 0x4, scoped, tag = 'scoped memory for textcnn_forward.1']
    #allocation5 [shape = 'u8[1536]{0}', space=vmem, size = 0x800, scoped, tag = 'input window, operand 2, single buffered']
    #allocation6 [shape = 's32[1]{0}', space=sflag, size = 0x4, scoped, tag = 'scoped memory for textcnn_forward.1']
    #allocation7 [shape = 'u8[24576]{0}', space=vmem, size = 0x6000, scoped, tag = 'input window, operand 3, single buffered']
    #allocation8 [shape = 'u8[196608]{0}', space=vmem, size = 0x30000, scoped, tag = 'input window, operand 4, single buffered']
    #allocation9 [shape = 's32[1]{0}', space=sflag, size = 0x4, scoped, tag = 'scoped memory for textcnn_forward.1']
    #allocation10 [shape = 'u8[1024]{0}', space=vmem, size = 0x400, scoped, tag = 'input window, operand 5, single buffered']
    #allocation11 [shape = 'u8[65536]{0}', space=vmem, size = 0x10000, scoped, tag = 'input window, operand 6, single buffered']
    #allocation12 [shape = 's32[1]{0}', space=sflag, size = 0x4, scoped, tag = 'scoped memory for textcnn_forward.1']
    #allocation13 [shape = 'u8[512]{0}', space=vmem, size = 0x400, scoped, tag = 'input window, operand 7, single buffered']
    #allocation14 [shape = 'u8[2048]{0}', space=vmem, size = 0x800, scoped, tag = 'output window, operand 0, single buffered']
    %13 = vsyncpa [#allocation3], 0
    %14 = vsyncpa [#allocation6], 0
    %15 = vsyncpa [#allocation9], 0
    %16 = vsyncpa [#allocation12], 0
    %17 = vsyncpa [#allocation4], 0
    // Predicated region
    $region2: #{textcnn_forward.1} parent=1 // pred_check
      _
    $region3: #{textcnn_forward.1} parent=1 // pred_check_branch
      %19 = sbr.rel (0) target = $region5
    $region4: #{textcnn_forward.1} parent=1 // pred_region
      _
    $region5: #{textcnn_forward.1} parent=1 // pred_fallthru
      _
    // Predicated region
    $region6: #{textcnn_forward.1} parent=1 // pred_check
      _
    $region7: #{textcnn_forward.1} parent=1 // pred_check_branch
      %21 = sbr.rel (0) target = $region9
    $region8: #{textcnn_forward.1} parent=1 // pred_region
      %s23 = ssub.s32 46080, 46080
      %24 = vsyncadd [#allocation3], %s23
      %s25 = sshll.u32 [#allocation2], 4
      %s26 = int_to_ptr.vmem [resolvable:$true] %s25
      %31 = dma.hbm_to_vmem [thread:$0]  %s1, 46080, %s26, [#allocation3], 192, 192, 12
    $region9: #{textcnn_forward.1} parent=1 // pred_fallthru
      _
    // Predicated region
    $region10: #{textcnn_forward.1} parent=1 // pred_check
      _
    $region11: #{textcnn_forward.1} parent=1 // pred_check_branch
      %33 = sbr.rel (0) target = $region13
    $region12: #{textcnn_forward.1} parent=1 // pred_region
      %s35 = ssub.s32 48, 48
      %36 = vsyncadd [#allocation6], %s35
      %s38 = sshll.u32 [#allocation5], 4
      %s39 = int_to_ptr.vmem [resolvable:$true] %s38
      %41 = dma.hbm_to_vmem [thread:$0]  %s2, 48, %s39, [#allocation6]
    $region13: #{textcnn_forward.1} parent=1 // pred_fallthru
      _
    // Predicated region
    $region14: #{textcnn_forward.1} parent=1 // pred_check
      _
    $region15: #{textcnn_forward.1} parent=1 // pred_check_branch
      %43 = sbr.rel (0) target = $region17
    $region16: #{textcnn_forward.1} parent=1 // pred_region
      %s45 = ssub.s32 768, 768
      %46 = vsyncadd [#allocation6], %s45
      %s47 = sshll.u32 [#allocation7], 4
      %s48 = int_to_ptr.vmem [resolvable:$true] %s47
      %53 = dma.hbm_to_vmem [thread:$0]  %s3, 768, %s48, [#allocation6], 384, 384, 24
    $region17: #{textcnn_forward.1} parent=1 // pred_fallthru
      _
    // Predicated region
    $region18: #{textcnn_forward.1} parent=1 // pred_check
      _
    $region19: #{textcnn_forward.1} parent=1 // pred_check_branch
      %55 = sbr.rel (0) target = $region21
    $region20: #{textcnn_forward.1} parent=1 // pred_region
      %s57 = ssub.s32 6144, 6144
      %58 = vsyncadd [#allocation9], %s57
      %s59 = sshll.u32 [#allocation8], 4
      %s60 = int_to_ptr.vmem [resolvable:$true] %s59
      %65 = dma.hbm_to_vmem [thread:$0]  %s4, 6144, %s60, [#allocation9], 128, 128, 8
    $region21: #{textcnn_forward.1} parent=1 // pred_fallthru
      _
    // Predicated region
    $region22: #{textcnn_forward.1} parent=1 // pred_check
      _
    $region23: #{textcnn_forward.1} parent=1 // pred_check_branch
      %67 = sbr.rel (0) target = $region25
    $region24: #{textcnn_forward.1} parent=1 // pred_region
      %s69 = ssub.s32 32, 32
      %70 = vsyncadd [#allocation9], %s69
      %s72 = sshll.u32 [#allocation10], 4
      %s73 = int_to_ptr.vmem [resolvable:$true] %s72
      %75 = dma.hbm_to_vmem [thread:$0]  %s5, 32, %s73, [#allocation9]
    $region25: #{textcnn_forward.1} parent=1 // pred_fallthru
      _
    // Predicated region
    $region26: #{textcnn_forward.1} parent=1 // pred_check
      _
    $region27: #{textcnn_forward.1} parent=1 // pred_check_branch
      %77 = sbr.rel (0) target = $region29
    $region28: #{textcnn_forward.1} parent=1 // pred_region
      %s79 = ssub.s32 2048, 2048
      %80 = vsyncadd [#allocation12], %s79
      %s81 = sshll.u32 [#allocation11], 4
      %s82 = int_to_ptr.vmem [resolvable:$true] %s81
      %87 = dma.hbm_to_vmem [thread:$0]  %s6, 2048, %s82, [#allocation12], 64, 64, 4
    $region29: #{textcnn_forward.1} parent=1 // pred_fallthru
      _
    // Predicated region
    $region30: #{textcnn_forward.1} parent=1 // pred_check
      _
    $region31: #{textcnn_forward.1} parent=1 // pred_check_branch
      %89 = sbr.rel (0) target = $region33
    $region32: #{textcnn_forward.1} parent=1 // pred_region
      %s91 = ssub.s32 16, 16
      %92 = vsyncadd [#allocation12], %s91
      %s94 = sshll.u32 [#allocation13], 4
      %s95 = int_to_ptr.vmem [resolvable:$true] %s94
      %97 = dma.hbm_to_vmem [thread:$0]  %s7, 16, %s95, [#allocation12]
    $region33: #{textcnn_forward.1} parent=1 // pred_fallthru
      _
    // Predicated region
    $region34: #{textcnn_forward.1} parent=1 // pred_check
      _
    $region35: #{textcnn_forward.1} parent=1 // pred_check_branch
      %99 = sbr.rel (0) target = $region37
    $region36: #{textcnn_forward.1} parent=1 // pred_region
      %100 = dma.done [#allocation3], 46080
    $region37: #{textcnn_forward.1} parent=1 // pred_fallthru
      _
    // Predicated region
    $region38: #{textcnn_forward.1} parent=1 // pred_check
      _
    $region39: #{textcnn_forward.1} parent=1 // pred_check_branch
      %102 = sbr.rel (0) target = $region41
    $region40: #{textcnn_forward.1} parent=1 // pred_region
      %103 = dma.done [#allocation6], 48
    $region41: #{textcnn_forward.1} parent=1 // pred_fallthru
      _
    // Predicated region
    $region42: #{textcnn_forward.1} parent=1 // pred_check
      _
    $region43: #{textcnn_forward.1} parent=1 // pred_check_branch
      %105 = sbr.rel (0) target = $region45
    $region44: #{textcnn_forward.1} parent=1 // pred_region
      %106 = dma.done [#allocation6], 768
    $region45: #{textcnn_forward.1} parent=1 // pred_fallthru
      _
    // Predicated region
    $region46: #{textcnn_forward.1} parent=1 // pred_check
      _
    $region47: #{textcnn_forward.1} parent=1 // pred_check_branch
      %108 = sbr.rel (0) target = $region49
    $region48: #{textcnn_forward.1} parent=1 // pred_region
      %109 = dma.done [#allocation9], 6144
    $region49: #{textcnn_forward.1} parent=1 // pred_fallthru
      _
    // Predicated region
    $region50: #{textcnn_forward.1} parent=1 // pred_check
      _
    $region51: #{textcnn_forward.1} parent=1 // pred_check_branch
      %111 = sbr.rel (0) target = $region53
    $region52: #{textcnn_forward.1} parent=1 // pred_region
      %112 = dma.done [#allocation9], 32
    $region53: #{textcnn_forward.1} parent=1 // pred_fallthru
      _
    // Predicated region
    $region54: #{textcnn_forward.1} parent=1 // pred_check
      _
    $region55: #{textcnn_forward.1} parent=1 // pred_check_branch
      %114 = sbr.rel (0) target = $region57
    $region56: #{textcnn_forward.1} parent=1 // pred_region
      %115 = dma.done [#allocation12], 2048
    $region57: #{textcnn_forward.1} parent=1 // pred_fallthru
      _
    // Predicated region
    $region58: #{textcnn_forward.1} parent=1 // pred_check
      _
    $region59: #{textcnn_forward.1} parent=1 // pred_check_branch
      %117 = sbr.rel (0) target = $region61
    $region60: #{textcnn_forward.1} parent=1 // pred_region
      %118 = dma.done [#allocation12], 16
    $region61: #{textcnn_forward.1} parent=1 // pred_fallthru
      _
    %v120 = vld [vmem:[%s0] sm:$0xff]
    %v121 = vld [vmem:[%s0 + $0x8] sm:$0xf]
    %v122 = vld [vmem:[%s0 + $0xc] sm:$0xff]
    %v123 = vld [vmem:[%s0 + $0x14] sm:$0xf]
    %v124 = vld [vmem:[%s0 + $0x18] sm:$0xff]
    %v125 = vld [vmem:[%s0 + $0x20] sm:$0xf]
    %v126 = vld [vmem:[%s0 + $0x24] sm:$0xff]
    %v127 = vld [vmem:[%s0 + $0x2c] sm:$0xf]
    %v128 = vld [vmem:[%s0 + $0x30] sm:$0xff]
    %v129 = vld [vmem:[%s0 + $0x38] sm:$0xf]
    %v130 = vld [vmem:[%s0 + $0x3c] sm:$0xff]
    %v131 = vld [vmem:[%s0 + $0x44] sm:$0xf]
    %v132 = vld [vmem:[%s0 + $0x48] sm:$0xff]
    %v133 = vld [vmem:[%s0 + $0x50] sm:$0xf]
    %v134 = vld [vmem:[%s0 + $0x54] sm:$0xff]
    %v135 = vld [vmem:[%s0 + $0x5c] sm:$0xf]
    %v136 = vld [vmem:[#allocation2] sm:$0xff]
    %v137 = vld [vmem:[#allocation2 + $0x8] sm:$0xf]
    %v138 = vld [vmem:[#allocation2 + $0xc] sm:$0xff]
    %v139 = vld [vmem:[#allocation2 + $0x14] sm:$0xf]
    %v140 = vld [vmem:[#allocation2 + $0x18] sm:$0xff]
    %v141 = vld [vmem:[#allocation2 + $0x20] sm:$0xf]
    %v142 = vld [vmem:[#allocation2 + $0x24] sm:$0xff]
    %v143 = vld [vmem:[#allocation2 + $0x2c] sm:$0xf]
    %v144 = vld [vmem:[#allocation2 + $0x30] sm:$0xff]
    %v145 = vld [vmem:[#allocation2 + $0x38] sm:$0xf]
    %v146 = vld [vmem:[#allocation2 + $0x3c] sm:$0xff]
    %v147 = vld [vmem:[#allocation2 + $0x44] sm:$0xf]
    %v148 = vld [vmem:[#allocation2 + $0x48] sm:$0xff]
    %v149 = vld [vmem:[#allocation2 + $0x50] sm:$0xf]
    %v150 = vld [vmem:[#allocation2 + $0x54] sm:$0xff]
    %v151 = vld [vmem:[#allocation2 + $0x5c] sm:$0xf]
    %v152 = vld [vmem:[#allocation2 + $0x60] sm:$0xff]
    %v153 = vld [vmem:[#allocation2 + $0x68] sm:$0xf]
    %v154 = vld [vmem:[#allocation2 + $0x6c] sm:$0xff]
    %v155 = vld [vmem:[#allocation2 + $0x74] sm:$0xf]
    %v156 = vld [vmem:[#allocation2 + $0x78] sm:$0xff]
    %v157 = vld [vmem:[#allocation2 + $0x80] sm:$0xf]
    %v158 = vld [vmem:[#allocation2 + $0x84] sm:$0xff]
    %v159 = vld [vmem:[#allocation2 + $0x8c] sm:$0xf]
    %v160 = vld [vmem:[#allocation2 + $0x90] sm:$0xff]
    %v161 = vld [vmem:[#allocation2 + $0x98] sm:$0xf]
    %v162 = vld [vmem:[#allocation2 + $0x9c] sm:$0xff]
    %v163 = vld [vmem:[#allocation2 + $0xa4] sm:$0xf]
    %v164 = vld [vmem:[#allocation2 + $0xa8] sm:$0xff]
    %v165 = vld [vmem:[#allocation2 + $0xb0] sm:$0xf]
    %v166 = vld [vmem:[#allocation2 + $0xb4] sm:$0xff]
    %v167 = vld [vmem:[#allocation2 + $0xbc] sm:$0xf]
    %v168 = vld [vmem:[#allocation2 + $0xc0] sm:$0xff]
    %v169 = vld [vmem:[#allocation2 + $0xc8] sm:$0xf]
    %v170 = vld [vmem:[#allocation2 + $0xcc] sm:$0xff]
    %v171 = vld [vmem:[#allocation2 + $0xd4] sm:$0xf]
    %v172 = vld [vmem:[#allocation2 + $0xd8] sm:$0xff]
    %v173 = vld [vmem:[#allocation2 + $0xe0] sm:$0xf]
    %v174 = vld [vmem:[#allocation2 + $0xe4] sm:$0xff]
    %v175 = vld [vmem:[#allocation2 + $0xec] sm:$0xf]
    %v176 = vld [vmem:[#allocation2 + $0xf0] sm:$0xff]
    %v177 = vld [vmem:[#allocation2 + $0xf8] sm:$0xf]
    %v178 = vld [vmem:[#allocation2 + $0xfc] sm:$0xff]
    %v179 = vld [vmem:[#allocation2 + $0x104] sm:$0xf]
    %v180 = vld [vmem:[#allocation2 + $0x108] sm:$0xff]
    %v181 = vld [vmem:[#allocation2 + $0x110] sm:$0xf]
    %v182 = vld [vmem:[#allocation2 + $0x114] sm:$0xff]
    %v183 = vld [vmem:[#allocation2 + $0x11c] sm:$0xf]
    %v184 = vld [vmem:[#allocation2 + $0x120] sm:$0xff]
    %v185 = vld [vmem:[#allocation2 + $0x128] sm:$0xf]
    %v186 = vld [vmem:[#allocation2 + $0x12c] sm:$0xff]
    %v187 = vld [vmem:[#allocation2 + $0x134] sm:$0xf]
    %v188 = vld [vmem:[#allocation2 + $0x138] sm:$0xff]
    %v189 = vld [vmem:[#allocation2 + $0x140] sm:$0xf]
    %v190 = vld [vmem:[#allocation2 + $0x144] sm:$0xff]
    %v191 = vld [vmem:[#allocation2 + $0x14c] sm:$0xf]
    %v192 = vld [vmem:[#allocation2 + $0x150] sm:$0xff]
    %v193 = vld [vmem:[#allocation2 + $0x158] sm:$0xf]
    %v194 = vld [vmem:[#allocation2 + $0x15c] sm:$0xff]
    %v195 = vld [vmem:[#allocation2 + $0x164] sm:$0xf]
    %v196 = vld [vmem:[#allocation2 + $0x168] sm:$0xff]
    %v197 = vld [vmem:[#allocation2 + $0x170] sm:$0xf]
    %v198 = vld [vmem:[#allocation2 + $0x174] sm:$0xff]
    %v199 = vld [vmem:[#allocation2 + $0x17c] sm:$0xf]
    %v200 = vld [vmem:[#allocation2 + $0x180] sm:$0xff]
    %v201 = vld [vmem:[#allocation2 + $0x188] sm:$0xf]
    %v202 = vld [vmem:[#allocation2 + $0x18c] sm:$0xff]
    %v203 = vld [vmem:[#allocation2 + $0x194] sm:$0xf]
    %v204 = vld [vmem:[#allocation2 + $0x198] sm:$0xff]
    %v205 = vld [vmem:[#allocation2 + $0x1a0] sm:$0xf]
    %v206 = vld [vmem:[#allocation2 + $0x1a4] sm:$0xff]
    %v207 = vld [vmem:[#allocation2 + $0x1ac] sm:$0xf]
    %v208 = vld [vmem:[#allocation2 + $0x1b0] sm:$0xff]
    %v209 = vld [vmem:[#allocation2 + $0x1b8] sm:$0xf]
    %v210 = vld [vmem:[#allocation2 + $0x1bc] sm:$0xff]
    %v211 = vld [vmem:[#allocation2 + $0x1c4] sm:$0xf]
    %v212 = vld [vmem:[#allocation2 + $0x1c8] sm:$0xff]
    %v213 = vld [vmem:[#allocation2 + $0x1d0] sm:$0xf]
    %v214 = vld [vmem:[#allocation2 + $0x1d4] sm:$0xff]
    %v215 = vld [vmem:[#allocation2 + $0x1dc] sm:$0xf]
    %v216 = vld [vmem:[#allocation2 + $0x1e0] sm:$0xff]
    %v217 = vld [vmem:[#allocation2 + $0x1e8] sm:$0xf]
    %v218 = vld [vmem:[#allocation2 + $0x1ec] sm:$0xff]
    %v219 = vld [vmem:[#allocation2 + $0x1f4] sm:$0xf]
    %v220 = vld [vmem:[#allocation2 + $0x1f8] sm:$0xff]
    %v221 = vld [vmem:[#allocation2 + $0x200] sm:$0xf]
    %v222 = vld [vmem:[#allocation2 + $0x204] sm:$0xff]
    %v223 = vld [vmem:[#allocation2 + $0x20c] sm:$0xf]
    %v224 = vld [vmem:[#allocation2 + $0x210] sm:$0xff]
    %v225 = vld [vmem:[#allocation2 + $0x218] sm:$0xf]
    %v226 = vld [vmem:[#allocation2 + $0x21c] sm:$0xff]
    %v227 = vld [vmem:[#allocation2 + $0x224] sm:$0xf]
    %v228 = vld [vmem:[#allocation2 + $0x228] sm:$0xff]
    %v229 = vld [vmem:[#allocation2 + $0x230] sm:$0xf]
    %v230 = vld [vmem:[#allocation2 + $0x234] sm:$0xff]
    %v231 = vld [vmem:[#allocation2 + $0x23c] sm:$0xf]
    %s232 = scalar_lea.vmem [#allocation2], 576
    %v233 = vld [vmem:[%s232] sm:$0xff]
    %v234 = vld [vmem:[%s232 + $0x8] sm:$0xf]
    %v235 = vld [vmem:[%s232 + $0xc] sm:$0xff]
    %v236 = vld [vmem:[%s232 + $0x14] sm:$0xf]
    %v237 = vld [vmem:[%s232 + $0x18] sm:$0xff]
    %v238 = vld [vmem:[%s232 + $0x20] sm:$0xf]
    %v239 = vld [vmem:[%s232 + $0x24] sm:$0xff]
    %v240 = vld [vmem:[%s232 + $0x2c] sm:$0xf]
    %v241 = vld [vmem:[%s232 + $0x30] sm:$0xff]
    %v242 = vld [vmem:[%s232 + $0x38] sm:$0xf]
    %v243 = vld [vmem:[%s232 + $0x3c] sm:$0xff]
    %v244 = vld [vmem:[%s232 + $0x44] sm:$0xf]
    %v245 = vld [vmem:[%s232 + $0x48] sm:$0xff]
    %v246 = vld [vmem:[%s232 + $0x50] sm:$0xf]
    %v247 = vld [vmem:[%s232 + $0x54] sm:$0xff]
    %v248 = vld [vmem:[%s232 + $0x5c] sm:$0xf]
    %v249 = vld [vmem:[%s232 + $0x60] sm:$0xff]
    %v250 = vld [vmem:[%s232 + $0x68] sm:$0xf]
    %v251 = vld [vmem:[%s232 + $0x6c] sm:$0xff]
    %v252 = vld [vmem:[%s232 + $0x74] sm:$0xf]
    %v253 = vld [vmem:[%s232 + $0x78] sm:$0xff]
    %v254 = vld [vmem:[%s232 + $0x80] sm:$0xf]
    %v255 = vld [vmem:[%s232 + $0x84] sm:$0xff]
    %v256 = vld [vmem:[%s232 + $0x8c] sm:$0xf]
    %v257 = vld [vmem:[%s232 + $0x90] sm:$0xff]
    %v258 = vld [vmem:[%s232 + $0x98] sm:$0xf]
    %v259 = vld [vmem:[%s232 + $0x9c] sm:$0xff]
    %v260 = vld [vmem:[%s232 + $0xa4] sm:$0xf]
    %v261 = vld [vmem:[%s232 + $0xa8] sm:$0xff]
    %v262 = vld [vmem:[%s232 + $0xb0] sm:$0xf]
    %v263 = vld [vmem:[%s232 + $0xb4] sm:$0xff]
    %v264 = vld [vmem:[%s232 + $0xbc] sm:$0xf]
    %v265 = vld [vmem:[%s232 + $0xc0] sm:$0xff]
    %v266 = vld [vmem:[%s232 + $0xc8] sm:$0xf]
    %v267 = vld [vmem:[%s232 + $0xcc] sm:$0xff]
    %v268 = vld [vmem:[%s232 + $0xd4] sm:$0xf]
    %v269 = vld [vmem:[%s232 + $0xd8] sm:$0xff]
    %v270 = vld [vmem:[%s232 + $0xe0] sm:$0xf]
    %v271 = vld [vmem:[%s232 + $0xe4] sm:$0xff]
    %v272 = vld [vmem:[%s232 + $0xec] sm:$0xf]
    %v273 = vld [vmem:[%s232 + $0xf0] sm:$0xff]
    %v274 = vld [vmem:[%s232 + $0xf8] sm:$0xf]
    %v275 = vld [vmem:[%s232 + $0xfc] sm:$0xff]
    %v276 = vld [vmem:[%s232 + $0x104] sm:$0xf]
    %v277 = vld [vmem:[%s232 + $0x108] sm:$0xff]
    %v278 = vld [vmem:[%s232 + $0x110] sm:$0xf]
    %v279 = vld [vmem:[%s232 + $0x114] sm:$0xff]
    %v280 = vld [vmem:[%s232 + $0x11c] sm:$0xf]
    %v281 = vld [vmem:[%s232 + $0x120] sm:$0xff]
    %v282 = vld [vmem:[%s232 + $0x128] sm:$0xf]
    %v283 = vld [vmem:[%s232 + $0x12c] sm:$0xff]
    %v284 = vld [vmem:[%s232 + $0x134] sm:$0xf]
    %v285 = vld [vmem:[%s232 + $0x138] sm:$0xff]
    %v286 = vld [vmem:[%s232 + $0x140] sm:$0xf]
    %v287 = vld [vmem:[%s232 + $0x144] sm:$0xff]
    %v288 = vld [vmem:[%s232 + $0x14c] sm:$0xf]
    %v289 = vld [vmem:[%s232 + $0x150] sm:$0xff]
    %v290 = vld [vmem:[%s232 + $0x158] sm:$0xf]
    %v291 = vld [vmem:[%s232 + $0x15c] sm:$0xff]
    %v292 = vld [vmem:[%s232 + $0x164] sm:$0xf]
    %v293 = vld [vmem:[%s232 + $0x168] sm:$0xff]
    %v294 = vld [vmem:[%s232 + $0x170] sm:$0xf]
    %v295 = vld [vmem:[%s232 + $0x174] sm:$0xff]
    %v296 = vld [vmem:[%s232 + $0x17c] sm:$0xf]
    %v297 = vld [vmem:[%s232 + $0x180] sm:$0xff]
    %v298 = vld [vmem:[%s232 + $0x188] sm:$0xf]
    %v299 = vld [vmem:[%s232 + $0x18c] sm:$0xff]
    %v300 = vld [vmem:[%s232 + $0x194] sm:$0xf]
    %v301 = vld [vmem:[%s232 + $0x198] sm:$0xff]
    %v302 = vld [vmem:[%s232 + $0x1a0] sm:$0xf]
    %v303 = vld [vmem:[%s232 + $0x1a4] sm:$0xff]
    %v304 = vld [vmem:[%s232 + $0x1ac] sm:$0xf]
    %v305 = vld [vmem:[%s232 + $0x1b0] sm:$0xff]
    %v306 = vld [vmem:[%s232 + $0x1b8] sm:$0xf]
    %v307 = vld [vmem:[%s232 + $0x1bc] sm:$0xff]
    %v308 = vld [vmem:[%s232 + $0x1c4] sm:$0xf]
    %v309 = vld [vmem:[%s232 + $0x1c8] sm:$0xff]
    %v310 = vld [vmem:[%s232 + $0x1d0] sm:$0xf]
    %v311 = vld [vmem:[%s232 + $0x1d4] sm:$0xff]
    %v312 = vld [vmem:[%s232 + $0x1dc] sm:$0xf]
    %v313 = vld [vmem:[%s232 + $0x1e0] sm:$0xff]
    %v314 = vld [vmem:[%s232 + $0x1e8] sm:$0xf]
    %v315 = vld [vmem:[%s232 + $0x1ec] sm:$0xff]
    %v316 = vld [vmem:[%s232 + $0x1f4] sm:$0xf]
    %v317 = vld [vmem:[%s232 + $0x1f8] sm:$0xff]
    %v318 = vld [vmem:[%s232 + $0x200] sm:$0xf]
    %v319 = vld [vmem:[%s232 + $0x204] sm:$0xff]
    %v320 = vld [vmem:[%s232 + $0x20c] sm:$0xf]
    %v321 = vld [vmem:[%s232 + $0x210] sm:$0xff]
    %v322 = vld [vmem:[%s232 + $0x218] sm:$0xf]
    %v323 = vld [vmem:[%s232 + $0x21c] sm:$0xff]
    %v324 = vld [vmem:[%s232 + $0x224] sm:$0xf]
    %v325 = vld [vmem:[%s232 + $0x228] sm:$0xff]
    %v326 = vld [vmem:[%s232 + $0x230] sm:$0xf]
    %v327 = vld [vmem:[%s232 + $0x234] sm:$0xff]
    %v328 = vld [vmem:[%s232 + $0x23c] sm:$0xf]
    %v345 = vunpack.c.l.b16 %v120
    %v346 = vunpack.c.h.b16 %v120
    %v347 = vunpack.c.l.b16 %v121
    %v348 = vunpack.c.l.b16 %v122
    %v349 = vunpack.c.h.b16 %v122
    %v350 = vunpack.c.l.b16 %v123
    %v351 = vunpack.c.l.b16 %v124
    %v352 = vunpack.c.h.b16 %v124
    %v353 = vunpack.c.l.b16 %v125
    %v354 = vunpack.c.l.b16 %v126
    %v355 = vunpack.c.h.b16 %v126
    %v356 = vunpack.c.l.b16 %v127
    %v357 = vunpack.c.l.b16 %v128
    %v358 = vunpack.c.h.b16 %v128
    %v359 = vunpack.c.l.b16 %v129
    %v360 = vunpack.c.l.b16 %v130
    %v361 = vunpack.c.h.b16 %v130
    %v362 = vunpack.c.l.b16 %v131
    %v363 = vunpack.c.l.b16 %v132
    %v364 = vunpack.c.h.b16 %v132
    %v365 = vunpack.c.l.b16 %v133
    %v366 = vunpack.c.l.b16 %v134
    %v367 = vunpack.c.h.b16 %v134
    %v368 = vunpack.c.l.b16 %v135
    %v369 = vpack.c.b16 %v348, %v345
    %v370 = vpack.c.b16 %v349, %v346
    %v371 = vpack.c.b16 %v350, %v347
    %v372 = vpack.c.b16 %v354, %v351
    %v373 = vpack.c.b16 %v355, %v352
    %v374 = vpack.c.b16 %v356, %v353
    %v375 = vpack.c.b16 %v360, %v357
    %v376 = vpack.c.b16 %v361, %v358
    %v377 = vpack.c.b16 %v362, %v359
    %v378 = vpack.c.b16 %v366, %v363
    %v379 = vpack.c.b16 %v367, %v364
    %v380 = vpack.c.b16 %v368, %v365
    %v489 = vunpack.c.l.b16 %v233
    %v490 = vunpack.c.h.b16 %v233
    %v491 = vunpack.c.l.b16 %v234
    %v492 = vunpack.c.l.b16 %v235
    %v493 = vunpack.c.h.b16 %v235
    %v494 = vunpack.c.l.b16 %v236
    %v495 = vunpack.c.l.b16 %v237
    %v496 = vunpack.c.h.b16 %v237
    %v497 = vunpack.c.l.b16 %v238
    %v498 = vunpack.c.l.b16 %v239
    %v499 = vunpack.c.h.b16 %v239
    %v500 = vunpack.c.l.b16 %v240
    %v501 = vunpack.c.l.b16 %v241
    %v502 = vunpack.c.h.b16 %v241
    %v503 = vunpack.c.l.b16 %v242
    %v504 = vunpack.c.l.b16 %v243
    %v505 = vunpack.c.h.b16 %v243
    %v506 = vunpack.c.l.b16 %v244
    %v507 = vunpack.c.l.b16 %v245
    %v508 = vunpack.c.h.b16 %v245
    %v509 = vunpack.c.l.b16 %v246
    %v510 = vunpack.c.l.b16 %v247
    %v511 = vunpack.c.h.b16 %v247
    %v512 = vunpack.c.l.b16 %v248
    %v513 = vunpack.c.l.b16 %v249
    %v514 = vunpack.c.h.b16 %v249
    %v515 = vunpack.c.l.b16 %v250
    %v516 = vunpack.c.l.b16 %v251
    %v517 = vunpack.c.h.b16 %v251
    %v518 = vunpack.c.l.b16 %v252
    %v519 = vunpack.c.l.b16 %v253
    %v520 = vunpack.c.h.b16 %v253
    %v521 = vunpack.c.l.b16 %v254
    %v522 = vunpack.c.l.b16 %v255
    %v523 = vunpack.c.h.b16 %v255
    %v524 = vunpack.c.l.b16 %v256
    %v525 = vunpack.c.l.b16 %v257
    %v526 = vunpack.c.h.b16 %v257
    %v527 = vunpack.c.l.b16 %v258
    %v528 = vunpack.c.l.b16 %v259
    %v529 = vunpack.c.h.b16 %v259
    %v530 = vunpack.c.l.b16 %v260
    %v531 = vunpack.c.l.b16 %v261
    %v532 = vunpack.c.h.b16 %v261
    %v533 = vunpack.c.l.b16 %v262
    %v534 = vunpack.c.l.b16 %v263
    %v535 = vunpack.c.h.b16 %v263
    %v536 = vunpack.c.l.b16 %v264
    %v537 = vunpack.c.l.b16 %v265
    %v538 = vunpack.c.h.b16 %v265
    %v539 = vunpack.c.l.b16 %v266
    %v540 = vunpack.c.l.b16 %v267
    %v541 = vunpack.c.h.b16 %v267
    %v542 = vunpack.c.l.b16 %v268
    %v543 = vunpack.c.l.b16 %v269
    %v544 = vunpack.c.h.b16 %v269
    %v545 = vunpack.c.l.b16 %v270
    %v546 = vunpack.c.l.b16 %v271
    %v547 = vunpack.c.h.b16 %v271
    %v548 = vunpack.c.l.b16 %v272
    %v549 = vunpack.c.l.b16 %v273
    %v550 = vunpack.c.h.b16 %v273
    %v551 = vunpack.c.l.b16 %v274
    %v552 = vunpack.c.l.b16 %v275
    %v553 = vunpack.c.h.b16 %v275
    %v554 = vunpack.c.l.b16 %v276
    %v555 = vunpack.c.l.b16 %v277
    %v556 = vunpack.c.h.b16 %v277
    %v557 = vunpack.c.l.b16 %v278
    %v558 = vunpack.c.l.b16 %v279
    %v559 = vunpack.c.h.b16 %v279
    %v560 = vunpack.c.l.b16 %v280
    %v561 = vunpack.c.l.b16 %v281
    %v562 = vunpack.c.h.b16 %v281
    %v563 = vunpack.c.l.b16 %v282
    %v564 = vunpack.c.l.b16 %v283
    %v565 = vunpack.c.h.b16 %v283
    %v566 = vunpack.c.l.b16 %v284
    %v567 = vunpack.c.l.b16 %v285
    %v568 = vunpack.c.h.b16 %v285
    %v569 = vunpack.c.l.b16 %v286
    %v570 = vunpack.c.l.b16 %v287
    %v571 = vunpack.c.h.b16 %v287
    %v572 = vunpack.c.l.b16 %v288
    %v573 = vunpack.c.l.b16 %v289
    %v574 = vunpack.c.h.b16 %v289
    %v575 = vunpack.c.l.b16 %v290
    %v576 = vunpack.c.l.b16 %v291
    %v577 = vunpack.c.h.b16 %v291
    %v578 = vunpack.c.l.b16 %v292
    %v579 = vunpack.c.l.b16 %v293
    %v580 = vunpack.c.h.b16 %v293
    %v581 = vunpack.c.l.b16 %v294
    %v582 = vunpack.c.l.b16 %v295
    %v583 = vunpack.c.h.b16 %v295
    %v584 = vunpack.c.l.b16 %v296
    %v585 = vunpack.c.l.b16 %v297
    %v586 = vunpack.c.h.b16 %v297
    %v587 = vunpack.c.l.b16 %v298
    %v588 = vunpack.c.l.b16 %v299
    %v589 = vunpack.c.h.b16 %v299
    %v590 = vunpack.c.l.b16 %v300
    %v591 = vunpack.c.l.b16 %v301
    %v592 = vunpack.c.h.b16 %v301
    %v593 = vunpack.c.l.b16 %v302
    %v594 = vunpack.c.l.b16 %v303
    %v595 = vunpack.c.h.b16 %v303
    %v596 = vunpack.c.l.b16 %v304
    %v597 = vunpack.c.l.b16 %v305
    %v598 = vunpack.c.h.b16 %v305
    %v599 = vunpack.c.l.b16 %v306
    %v600 = vunpack.c.l.b16 %v307
    %v601 = vunpack.c.h.b16 %v307
    %v602 = vunpack.c.l.b16 %v308
    %v603 = vunpack.c.l.b16 %v309
    %v604 = vunpack.c.h.b16 %v309
    %v605 = vunpack.c.l.b16 %v310
    %v606 = vunpack.c.l.b16 %v311
    %v607 = vunpack.c.h.b16 %v311
    %v608 = vunpack.c.l.b16 %v312
    %v609 = vunpack.c.l.b16 %v313
    %v610 = vunpack.c.h.b16 %v313
    %v611 = vunpack.c.l.b16 %v314
    %v612 = vunpack.c.l.b16 %v315
    %v613 = vunpack.c.h.b16 %v315
    %v614 = vunpack.c.l.b16 %v316
    %v615 = vunpack.c.l.b16 %v317
    %v616 = vunpack.c.h.b16 %v317
    %v617 = vunpack.c.l.b16 %v318
    %v618 = vunpack.c.l.b16 %v319
    %v619 = vunpack.c.h.b16 %v319
    %v620 = vunpack.c.l.b16 %v320
    %v621 = vunpack.c.l.b16 %v321
    %v622 = vunpack.c.h.b16 %v321
    %v623 = vunpack.c.l.b16 %v322
    %v624 = vunpack.c.l.b16 %v323
    %v625 = vunpack.c.h.b16 %v323
    %v626 = vunpack.c.l.b16 %v324
    %v627 = vunpack.c.l.b16 %v325
    %v628 = vunpack.c.h.b16 %v325
    %v629 = vunpack.c.l.b16 %v326
    %v630 = vunpack.c.l.b16 %v327
    %v631 = vunpack.c.h.b16 %v327
    %v632 = vunpack.c.l.b16 %v328
    %v633 = vpack.c.b16 %v492, %v489
    %v634 = vpack.c.b16 %v493, %v490
    %v635 = vpack.c.b16 %v494, %v491
    %v636 = vpack.c.b16 %v498, %v495
    %v637 = vpack.c.b16 %v499, %v496
    %v638 = vpack.c.b16 %v500, %v497
    %v639 = vpack.c.b16 %v504, %v501
    %v640 = vpack.c.b16 %v505, %v502
    %v641 = vpack.c.b16 %v506, %v503
    %v642 = vpack.c.b16 %v510, %v507
    %v643 = vpack.c.b16 %v511, %v508
    %v644 = vpack.c.b16 %v512, %v509
    %v645 = vpack.c.b16 %v516, %v513
    %v646 = vpack.c.b16 %v517, %v514
    %v647 = vpack.c.b16 %v518, %v515
    %v648 = vpack.c.b16 %v522, %v519
    %v649 = vpack.c.b16 %v523, %v520
    %v650 = vpack.c.b16 %v524, %v521
    %v651 = vpack.c.b16 %v528, %v525
    %v652 = vpack.c.b16 %v529, %v526
    %v653 = vpack.c.b16 %v530, %v527
    %v654 = vpack.c.b16 %v534, %v531
    %v655 = vpack.c.b16 %v535, %v532
    %v656 = vpack.c.b16 %v536, %v533
    %v657 = vpack.c.b16 %v540, %v537
    %v658 = vpack.c.b16 %v541, %v538
    %v659 = vpack.c.b16 %v542, %v539
    %v660 = vpack.c.b16 %v546, %v543
    %v661 = vpack.c.b16 %v547, %v544
    %v662 = vpack.c.b16 %v548, %v545
    %v663 = vpack.c.b16 %v552, %v549
    %v664 = vpack.c.b16 %v553, %v550
    %v665 = vpack.c.b16 %v554, %v551
    %v666 = vpack.c.b16 %v558, %v555
    %v667 = vpack.c.b16 %v559, %v556
    %v668 = vpack.c.b16 %v560, %v557
    %v669 = vpack.c.b16 %v564, %v561
    %v670 = vpack.c.b16 %v565, %v562
    %v671 = vpack.c.b16 %v566, %v563
    %v672 = vpack.c.b16 %v570, %v567
    %v673 = vpack.c.b16 %v571, %v568
    %v674 = vpack.c.b16 %v572, %v569
    %v675 = vpack.c.b16 %v576, %v573
    %v676 = vpack.c.b16 %v577, %v574
    %v677 = vpack.c.b16 %v578, %v575
    %v678 = vpack.c.b16 %v582, %v579
    %v679 = vpack.c.b16 %v583, %v580
    %v680 = vpack.c.b16 %v584, %v581
    %v681 = vpack.c.b16 %v588, %v585
    %v682 = vpack.c.b16 %v589, %v586
    %v683 = vpack.c.b16 %v590, %v587
    %v684 = vpack.c.b16 %v594, %v591
    %v685 = vpack.c.b16 %v595, %v592
    %v686 = vpack.c.b16 %v596, %v593
    %v687 = vpack.c.b16 %v600, %v597
    %v688 = vpack.c.b16 %v601, %v598
    %v689 = vpack.c.b16 %v602, %v599
    %v690 = vpack.c.b16 %v606, %v603
    %v691 = vpack.c.b16 %v607, %v604
    %v692 = vpack.c.b16 %v608, %v605
    %v693 = vpack.c.b16 %v612, %v609
    %v694 = vpack.c.b16 %v613, %v610
    %v695 = vpack.c.b16 %v614, %v611
    %v696 = vpack.c.b16 %v618, %v615
    %v697 = vpack.c.b16 %v619, %v616
    %v698 = vpack.c.b16 %v620, %v617
    %v699 = vpack.c.b16 %v624, %v621
    %v700 = vpack.c.b16 %v625, %v622
    %v701 = vpack.c.b16 %v626, %v623
    %v702 = vpack.c.b16 %v630, %v627
    %v703 = vpack.c.b16 %v631, %v628
    %v704 = vpack.c.b16 %v632, %v629
    %777 = vmatprep.subr.bf16.mxu0 %v655
    %778 = vmatpush1.bf16.msra.mxu0 %v654
    %779 = vmatprep.subr.bf16.mxu0 %v652
    %780 = vmatpush1.bf16.msra.mxu0 %v651
    %781 = vmatprep.subr.bf16.mxu0 %v649
    %782 = vmatpush1.bf16.msra.mxu0 %v648
    %783 = vmatprep.subr.bf16.mxu0 %v646
    %784 = vmatpush1.bf16.msra.mxu0 %v645
    %785 = vmatprep.subr.bf16.mxu0 %v643
    %786 = vmatpush1.bf16.msra.mxu0 %v642
    %787 = vmatprep.subr.bf16.mxu0 %v640
    %788 = vmatpush1.bf16.msra.mxu0 %v639
    %789 = vmatprep.subr.bf16.mxu0 %v637
    %790 = vmatpush1.bf16.msra.mxu0 %v636
    %791 = vmatprep.subr.bf16.mxu0 %v634
    %792 = vmatpush1.bf16.msra.mxu0 %v633
    %793 = vmatprep.subr.bf16.mxu0 %v679
    %794 = vmatpush2.bf16.msra.mxu0 %v678
    %795 = vmatprep.subr.bf16.mxu0 %v676
    %796 = vmatpush2.bf16.msra.mxu0 %v675
    %797 = vmatprep.subr.bf16.mxu0 %v673
    %798 = vmatpush2.bf16.msra.mxu0 %v672
    %799 = vmatprep.subr.bf16.mxu0 %v670
    %800 = vmatpush2.bf16.msra.mxu0 %v669
    %801 = vmatprep.subr.bf16.mxu0 %v667
    %802 = vmatpush2.bf16.msra.mxu0 %v666
    %803 = vmatprep.subr.bf16.mxu0 %v664
    %804 = vmatpush2.bf16.msra.mxu0 %v663
    %805 = vmatprep.subr.bf16.mxu0 %v661
    %806 = vmatpush2.bf16.msra.mxu0 %v660
    %807 = vmatprep.subr.bf16.mxu0 %v658
    %808 = vmatpush2.bf16.msra.mxu0 %v657
    %809 = vmatprep.mubr.bf16.mxu0 %v370
    %810 = vmatmul.mubr.bf16.gmra.mxu0 %v369
    %v811 = vpop.f32.mrf.mxu0
    %v812 = vadd.f32 0.0, %v811
    %v813 = vpop.f32.mrf.mxu0
    %v814 = vadd.f32 0.0, %v813
    %v815 = vpop.f32.mrf.mxu0
    %v816 = vadd.f32 0.0, %v815
    %v817 = vpop.f32.mrf.mxu0
    %v818 = vadd.f32 0.0, %v817
    %819 = vmatprep.mubr.bf16.mxu0 %v373
    %820 = vmatmul.mubr.bf16.gmra.mxu0 %v372
    %v821 = vpop.f32.mrf.mxu0
    %v822 = vadd.f32 0.0, %v821
    %v823 = vpop.f32.mrf.mxu0
    %v824 = vadd.f32 0.0, %v823
    %v825 = vpop.f32.mrf.mxu0
    %v826 = vadd.f32 0.0, %v825
    %v827 = vpop.f32.mrf.mxu0
    %v828 = vadd.f32 0.0, %v827
    %829 = vmatprep.mubr.bf16.mxu0 %v376
    %830 = vmatmul.mubr.bf16.gmra.mxu0 %v375
    %v831 = vpop.f32.mrf.mxu0
    %v832 = vadd.f32 0.0, %v831
    %v833 = vpop.f32.mrf.mxu0
    %v834 = vadd.f32 0.0, %v833
    %v835 = vpop.f32.mrf.mxu0
    %v836 = vadd.f32 0.0, %v835
    %v837 = vpop.f32.mrf.mxu0
    %v838 = vadd.f32 0.0, %v837
    %839 = vmatprep.mubr.bf16.mxu0 %v379
    %840 = vmatmul.mubr.bf16.gmra.mxu0 %v378
    %v841 = vpop.f32.mrf.mxu0
    %v842 = vadd.f32 0.0, %v841
    %v843 = vpop.f32.mrf.mxu0
    %v844 = vadd.f32 0.0, %v843
    %v845 = vpop.f32.mrf.mxu0
    %v846 = vadd.f32 0.0, %v845
    %v847 = vpop.f32.mrf.mxu0
    %v848 = vadd.f32 0.0, %v847
    %849 = vdwg.mxu0
    %850 = vmatprep.subr.bf16.mxu0 %v703
    %851 = vmatpush1.bf16.msra.mxu0 %v702
    %852 = vmatprep.subr.bf16.mxu0 %v700
    %853 = vmatpush1.bf16.msra.mxu0 %v699
    %854 = vmatprep.subr.bf16.mxu0 %v697
    %855 = vmatpush1.bf16.msra.mxu0 %v696
    %856 = vmatprep.subr.bf16.mxu0 %v694
    %857 = vmatpush1.bf16.msra.mxu0 %v693
    %858 = vmatprep.subr.bf16.mxu0 %v691
    %859 = vmatpush1.bf16.msra.mxu0 %v690
    %860 = vmatprep.subr.bf16.mxu0 %v688
    %861 = vmatpush1.bf16.msra.mxu0 %v687
    %862 = vmatprep.subr.bf16.mxu0 %v685
    %863 = vmatpush1.bf16.msra.mxu0 %v684
    %864 = vmatprep.subr.bf16.mxu0 %v682
    %865 = vmatpush1.bf16.msra.mxu0 %v681
    %866 = vmatprep.subr.bf16.mxu0 0
    %867 = vmatpush2.bf16.msra.mxu0 0
    %868 = vmatprep.subr.bf16.mxu0 0
    %869 = vmatpush2.bf16.msra.mxu0 0
    %870 = vmatprep.subr.bf16.mxu0 0
    %871 = vmatpush2.bf16.msra.mxu0 0
    %872 = vmatprep.subr.bf16.mxu0 0
    %873 = vmatpush2.bf16.msra.mxu0 0
    %874 = vmatprep.subr.bf16.mxu0 0
    %875 = vmatpush2.bf16.msra.mxu0 0
    %876 = vmatprep.subr.bf16.mxu0 0
    %877 = vmatpush2.bf16.msra.mxu0 0
    %878 = vmatprep.subr.bf16.mxu0 0
    %879 = vmatpush2.bf16.msra.mxu0 0
    %880 = vmatprep.subr.bf16.mxu0 0
    %881 = vmatpush2.bf16.msra.mxu0 0
    %882 = vmatprep.mubr.bf16.mxu0 0
    %883 = vmatmul.mubr.bf16.gmra.mxu0 %v371
    %v884 = vpop.f32.mrf.mxu0
    %v885 = vadd.f32 %v812, %v884
    %v886 = vpop.f32.mrf.mxu0
    %v887 = vadd.f32 %v814, %v886
    %v888 = vpop.f32.mrf.mxu0
    %v889 = vadd.f32 %v816, %v888
    %v890 = vpop.f32.mrf.mxu0
    %v891 = vadd.f32 %v818, %v890
    %892 = vmatprep.mubr.bf16.mxu0 0
    %893 = vmatmul.mubr.bf16.gmra.mxu0 %v374
    %v894 = vpop.f32.mrf.mxu0
    %v895 = vadd.f32 %v822, %v894
    %v896 = vpop.f32.mrf.mxu0
    %v897 = vadd.f32 %v824, %v896
    %v898 = vpop.f32.mrf.mxu0
    %v899 = vadd.f32 %v826, %v898
    %v900 = vpop.f32.mrf.mxu0
    %v901 = vadd.f32 %v828, %v900
    %902 = vmatprep.mubr.bf16.mxu0 0
    %903 = vmatmul.mubr.bf16.gmra.mxu0 %v377
    %v904 = vpop.f32.mrf.mxu0
    %v905 = vadd.f32 %v832, %v904
    %v906 = vpop.f32.mrf.mxu0
    %v907 = vadd.f32 %v834, %v906
    %v908 = vpop.f32.mrf.mxu0
    %v909 = vadd.f32 %v836, %v908
    %v910 = vpop.f32.mrf.mxu0
    %v911 = vadd.f32 %v838, %v910
    %912 = vmatprep.mubr.bf16.mxu0 0
    %913 = vmatmul.mubr.bf16.gmra.mxu0 %v380
    %v914 = vpop.f32.mrf.mxu0
    %v915 = vadd.f32 %v842, %v914
    %v916 = vpop.f32.mrf.mxu0
    %v917 = vadd.f32 %v844, %v916
    %v918 = vpop.f32.mrf.mxu0
    %v919 = vadd.f32 %v846, %v918
    %v920 = vpop.f32.mrf.mxu0
    %v921 = vadd.f32 %v848, %v920
    %922 = vdwg.mxu0
    %923 = vmatprep.subr.bf16.mxu0 0
    %924 = vmatpush1.bf16.msra.mxu0 %v656
    %925 = vmatprep.subr.bf16.mxu0 0
    %926 = vmatpush1.bf16.msra.mxu0 %v653
    %927 = vmatprep.subr.bf16.mxu0 0
    %928 = vmatpush1.bf16.msra.mxu0 %v650
    %929 = vmatprep.subr.bf16.mxu0 0
    %930 = vmatpush1.bf16.msra.mxu0 %v647
    %931 = vmatprep.subr.bf16.mxu0 0
    %932 = vmatpush1.bf16.msra.mxu0 %v644
    %933 = vmatprep.subr.bf16.mxu0 0
    %934 = vmatpush1.bf16.msra.mxu0 %v641
    %935 = vmatprep.subr.bf16.mxu0 0
    %936 = vmatpush1.bf16.msra.mxu0 %v638
    %937 = vmatprep.subr.bf16.mxu0 0
    %938 = vmatpush1.bf16.msra.mxu0 %v635
    %939 = vmatprep.subr.bf16.mxu0 0
    %940 = vmatpush2.bf16.msra.mxu0 %v680
    %941 = vmatprep.subr.bf16.mxu0 0
    %942 = vmatpush2.bf16.msra.mxu0 %v677
    %943 = vmatprep.subr.bf16.mxu0 0
    %944 = vmatpush2.bf16.msra.mxu0 %v674
    %945 = vmatprep.subr.bf16.mxu0 0
    %946 = vmatpush2.bf16.msra.mxu0 %v671
    %947 = vmatprep.subr.bf16.mxu0 0
    %948 = vmatpush2.bf16.msra.mxu0 %v668
    %949 = vmatprep.subr.bf16.mxu0 0
    %950 = vmatpush2.bf16.msra.mxu0 %v665
    %951 = vmatprep.subr.bf16.mxu0 0
    %952 = vmatpush2.bf16.msra.mxu0 %v662
    %953 = vmatprep.subr.bf16.mxu0 0
    %954 = vmatpush2.bf16.msra.mxu0 %v659
    %955 = vmatprep.mubr.bf16.mxu0 %v370
    %956 = vmatmul.mubr.bf16.gmra.mxu0 %v369
    %v957 = vpop.f32.mrf.mxu0
    %v958 = vadd.f32 0.0, %v957
    %v959 = vpop.f32.mrf.mxu0
    %v960 = vpop.f32.mrf.mxu0
    %v961 = vadd.f32 0.0, %v960
    %v962 = vpop.f32.mrf.mxu0
    %963 = vmatprep.mubr.bf16.mxu0 %v373
    %964 = vmatmul.mubr.bf16.gmra.mxu0 %v372
    %v965 = vpop.f32.mrf.mxu0
    %v966 = vadd.f32 0.0, %v965
    %v967 = vpop.f32.mrf.mxu0
    %v968 = vpop.f32.mrf.mxu0
    %v969 = vadd.f32 0.0, %v968
    %v970 = vpop.f32.mrf.mxu0
    %971 = vmatprep.mubr.bf16.mxu0 %v376
    %972 = vmatmul.mubr.bf16.gmra.mxu0 %v375
    %v973 = vpop.f32.mrf.mxu0
    %v974 = vadd.f32 0.0, %v973
    %v975 = vpop.f32.mrf.mxu0
    %v976 = vpop.f32.mrf.mxu0
    %v977 = vadd.f32 0.0, %v976
    %v978 = vpop.f32.mrf.mxu0
    %979 = vmatprep.mubr.bf16.mxu0 %v379
    %980 = vmatmul.mubr.bf16.gmra.mxu0 %v378
    %v981 = vpop.f32.mrf.mxu0
    %v982 = vadd.f32 0.0, %v981
    %v983 = vpop.f32.mrf.mxu0
    %v984 = vpop.f32.mrf.mxu0
    %v985 = vadd.f32 0.0, %v984
    %v986 = vpop.f32.mrf.mxu0
    %987 = vdwg.mxu0
    %988 = vmatprep.subr.bf16.mxu0 0
    %989 = vmatpush1.bf16.msra.mxu0 %v704
    %990 = vmatprep.subr.bf16.mxu0 0
    %991 = vmatpush1.bf16.msra.mxu0 %v701
    %992 = vmatprep.subr.bf16.mxu0 0
    %993 = vmatpush1.bf16.msra.mxu0 %v698
    %994 = vmatprep.subr.bf16.mxu0 0
    %995 = vmatpush1.bf16.msra.mxu0 %v695
    %996 = vmatprep.subr.bf16.mxu0 0
    %997 = vmatpush1.bf16.msra.mxu0 %v692
    %998 = vmatprep.subr.bf16.mxu0 0
    %999 = vmatpush1.bf16.msra.mxu0 %v689
    %1000 = vmatprep.subr.bf16.mxu0 0
    %1001 = vmatpush1.bf16.msra.mxu0 %v686
    %1002 = vmatprep.subr.bf16.mxu0 0
    %1003 = vmatpush1.bf16.msra.mxu0 %v683
    %1004 = vmatprep.subr.bf16.mxu0 0
    %1005 = vmatpush2.bf16.msra.mxu0 0
    %1006 = vmatprep.subr.bf16.mxu0 0
    %1007 = vmatpush2.bf16.msra.mxu0 0
    %1008 = vmatprep.subr.bf16.mxu0 0
    %1009 = vmatpush2.bf16.msra.mxu0 0
    %1010 = vmatprep.subr.bf16.mxu0 0
    %1011 = vmatpush2.bf16.msra.mxu0 0
    %1012 = vmatprep.subr.bf16.mxu0 0
    %1013 = vmatpush2.bf16.msra.mxu0 0
    %1014 = vmatprep.subr.bf16.mxu0 0
    %1015 = vmatpush2.bf16.msra.mxu0 0
    %1016 = vmatprep.subr.bf16.mxu0 0
    %1017 = vmatpush2.bf16.msra.mxu0 0
    %1018 = vmatprep.subr.bf16.mxu0 0
    %1019 = vmatpush2.bf16.msra.mxu0 0
    %1020 = vmatprep.mubr.bf16.mxu0 0
    %1021 = vmatmul.mubr.bf16.gmra.mxu0 %v371
    %v1022 = vpop.f32.mrf.mxu0
    %v1023 = vadd.f32 %v958, %v1022
    %v1024 = vpop.f32.mrf.mxu0
    %v1025 = vpop.f32.mrf.mxu0
    %v1026 = vadd.f32 %v961, %v1025
    %v1027 = vpop.f32.mrf.mxu0
    %1028 = vmatprep.mubr.bf16.mxu0 0
    %1029 = vmatmul.mubr.bf16.gmra.mxu0 %v374
    %v1030 = vpop.f32.mrf.mxu0
    %v1031 = vadd.f32 %v966, %v1030
    %v1032 = vpop.f32.mrf.mxu0
    %v1033 = vpop.f32.mrf.mxu0
    %v1034 = vadd.f32 %v969, %v1033
    %v1035 = vpop.f32.mrf.mxu0
    %1036 = vmatprep.mubr.bf16.mxu0 0
    %1037 = vmatmul.mubr.bf16.gmra.mxu0 %v377
    %v1038 = vpop.f32.mrf.mxu0
    %v1039 = vadd.f32 %v974, %v1038
    %v1040 = vpop.f32.mrf.mxu0
    %v1041 = vpop.f32.mrf.mxu0
    %v1042 = vadd.f32 %v977, %v1041
    %v1043 = vpop.f32.mrf.mxu0
    %1044 = vmatprep.mubr.bf16.mxu0 0
    %1045 = vmatmul.mubr.bf16.gmra.mxu0 %v380
    %v1046 = vpop.f32.mrf.mxu0
    %v1047 = vadd.f32 %v982, %v1046
    %v1048 = vpop.f32.mrf.mxu0
    %v1049 = vpop.f32.mrf.mxu0
    %v1050 = vadd.f32 %v985, %v1049
    %v1051 = vpop.f32.mrf.mxu0
    %1052 = vdwg.mxu0
    %v1053 = vrot.slane %v885, 1
    %v1054 = vrot.slane %v887, 1
    %v1055 = vrot.slane %v1023, 1
    %v1056 = vrot.slane %v889, 1
    %v1057 = vrot.slane %v891, 1
    %v1058 = vrot.slane %v1026, 1
    %v1059 = vrot.slane %v895, 1
    %v1060 = vrot.slane %v897, 1
    %v1061 = vrot.slane %v1031, 1
    %v1062 = vrot.slane %v899, 1
    %v1063 = vrot.slane %v901, 1
    %v1064 = vrot.slane %v1034, 1
    %v1065 = vrot.slane %v905, 1
    %v1066 = vrot.slane %v907, 1
    %v1067 = vrot.slane %v1039, 1
    %v1068 = vrot.slane %v909, 1
    %v1069 = vrot.slane %v911, 1
    %v1070 = vrot.slane %v1042, 1
    %v1071 = vrot.slane %v915, 1
    %v1072 = vrot.slane %v917, 1
    %v1073 = vrot.slane %v1047, 1
    %v1074 = vrot.slane %v919, 1
    %v1075 = vrot.slane %v921, 1
    %v1076 = vrot.slane %v1050, 1
    %v1077 = vlaneseq
    %v1078 = vshrl.u32 %v1077, 7
    %vm1079 = vcmp.lt.s32.totalorder %v1078, 7
    %v1080 = vsel %vm1079, %v1071, %v1074
    %v1081 = vsel %vm1079, %v1072, %v1075
    %v1082 = vsel %vm1079, %v1073, %v1076
    %v1083 = vsel %vm1079, %v1068, %v1071
    %v1084 = vsel %vm1079, %v1069, %v1072
    %v1085 = vsel %vm1079, %v1070, %v1073
    %v1086 = vsel %vm1079, %v1065, %v1068
    %v1087 = vsel %vm1079, %v1066, %v1069
    %v1088 = vsel %vm1079, %v1067, %v1070
    %v1089 = vsel %vm1079, %v1062, %v1065
    %v1090 = vsel %vm1079, %v1063, %v1066
    %v1091 = vsel %vm1079, %v1064, %v1067
    %v1092 = vsel %vm1079, %v1059, %v1062
    %v1093 = vsel %vm1079, %v1060, %v1063
    %v1094 = vsel %vm1079, %v1061, %v1064
    %v1095 = vsel %vm1079, %v1056, %v1059
    %v1096 = vsel %vm1079, %v1057, %v1060
    %v1097 = vsel %vm1079, %v1058, %v1061
    %v1098 = vsel %vm1079, %v1053, %v1056
    %v1099 = vsel %vm1079, %v1054, %v1057
    %v1100 = vsel %vm1079, %v1055, %v1058
    %v1101 = vsel %vm1079, %v1074, %v1053
    %v1102 = vsel %vm1079, %v1075, %v1054
    %v1103 = vsel %vm1079, %v1076, %v1055
    %v1200 = vunpack.c.l.b16 %v136
    %v1201 = vunpack.c.h.b16 %v136
    %v1202 = vunpack.c.l.b16 %v137
    %v1203 = vunpack.c.l.b16 %v138
    %v1204 = vunpack.c.h.b16 %v138
    %v1205 = vunpack.c.l.b16 %v139
    %v1206 = vunpack.c.l.b16 %v140
    %v1207 = vunpack.c.h.b16 %v140
    %v1208 = vunpack.c.l.b16 %v141
    %v1209 = vunpack.c.l.b16 %v142
    %v1210 = vunpack.c.h.b16 %v142
    %v1211 = vunpack.c.l.b16 %v143
    %v1212 = vunpack.c.l.b16 %v144
    %v1213 = vunpack.c.h.b16 %v144
    %v1214 = vunpack.c.l.b16 %v145
    %v1215 = vunpack.c.l.b16 %v146
    %v1216 = vunpack.c.h.b16 %v146
    %v1217 = vunpack.c.l.b16 %v147
    %v1218 = vunpack.c.l.b16 %v148
    %v1219 = vunpack.c.h.b16 %v148
    %v1220 = vunpack.c.l.b16 %v149
    %v1221 = vunpack.c.l.b16 %v150
    %v1222 = vunpack.c.h.b16 %v150
    %v1223 = vunpack.c.l.b16 %v151
    %v1224 = vunpack.c.l.b16 %v152
    %v1225 = vunpack.c.h.b16 %v152
    %v1226 = vunpack.c.l.b16 %v153
    %v1227 = vunpack.c.l.b16 %v154
    %v1228 = vunpack.c.h.b16 %v154
    %v1229 = vunpack.c.l.b16 %v155
    %v1230 = vunpack.c.l.b16 %v156
    %v1231 = vunpack.c.h.b16 %v156
    %v1232 = vunpack.c.l.b16 %v157
    %v1233 = vunpack.c.l.b16 %v158
    %v1234 = vunpack.c.h.b16 %v158
    %v1235 = vunpack.c.l.b16 %v159
    %v1236 = vunpack.c.l.b16 %v160
    %v1237 = vunpack.c.h.b16 %v160
    %v1238 = vunpack.c.l.b16 %v161
    %v1239 = vunpack.c.l.b16 %v162
    %v1240 = vunpack.c.h.b16 %v162
    %v1241 = vunpack.c.l.b16 %v163
    %v1242 = vunpack.c.l.b16 %v164
    %v1243 = vunpack.c.h.b16 %v164
    %v1244 = vunpack.c.l.b16 %v165
    %v1245 = vunpack.c.l.b16 %v166
    %v1246 = vunpack.c.h.b16 %v166
    %v1247 = vunpack.c.l.b16 %v167
    %v1248 = vunpack.c.l.b16 %v168
    %v1249 = vunpack.c.h.b16 %v168
    %v1250 = vunpack.c.l.b16 %v169
    %v1251 = vunpack.c.l.b16 %v170
    %v1252 = vunpack.c.h.b16 %v170
    %v1253 = vunpack.c.l.b16 %v171
    %v1254 = vunpack.c.l.b16 %v172
    %v1255 = vunpack.c.h.b16 %v172
    %v1256 = vunpack.c.l.b16 %v173
    %v1257 = vunpack.c.l.b16 %v174
    %v1258 = vunpack.c.h.b16 %v174
    %v1259 = vunpack.c.l.b16 %v175
    %v1260 = vunpack.c.l.b16 %v176
    %v1261 = vunpack.c.h.b16 %v176
    %v1262 = vunpack.c.l.b16 %v177
    %v1263 = vunpack.c.l.b16 %v178
    %v1264 = vunpack.c.h.b16 %v178
    %v1265 = vunpack.c.l.b16 %v179
    %v1266 = vunpack.c.l.b16 %v180
    %v1267 = vunpack.c.h.b16 %v180
    %v1268 = vunpack.c.l.b16 %v181
    %v1269 = vunpack.c.l.b16 %v182
    %v1270 = vunpack.c.h.b16 %v182
    %v1271 = vunpack.c.l.b16 %v183
    %v1272 = vunpack.c.l.b16 %v184
    %v1273 = vunpack.c.h.b16 %v184
    %v1274 = vunpack.c.l.b16 %v185
    %v1275 = vunpack.c.l.b16 %v186
    %v1276 = vunpack.c.h.b16 %v186
    %v1277 = vunpack.c.l.b16 %v187
    %v1278 = vunpack.c.l.b16 %v188
    %v1279 = vunpack.c.h.b16 %v188
    %v1280 = vunpack.c.l.b16 %v189
    %v1281 = vunpack.c.l.b16 %v190
    %v1282 = vunpack.c.h.b16 %v190
    %v1283 = vunpack.c.l.b16 %v191
    %v1284 = vunpack.c.l.b16 %v192
    %v1285 = vunpack.c.h.b16 %v192
    %v1286 = vunpack.c.l.b16 %v193
    %v1287 = vunpack.c.l.b16 %v194
    %v1288 = vunpack.c.h.b16 %v194
    %v1289 = vunpack.c.l.b16 %v195
    %v1290 = vunpack.c.l.b16 %v196
    %v1291 = vunpack.c.h.b16 %v196
    %v1292 = vunpack.c.l.b16 %v197
    %v1293 = vunpack.c.l.b16 %v198
    %v1294 = vunpack.c.h.b16 %v198
    %v1295 = vunpack.c.l.b16 %v199
    %v1296 = vunpack.c.l.b16 %v200
    %v1297 = vunpack.c.h.b16 %v200
    %v1298 = vunpack.c.l.b16 %v201
    %v1299 = vunpack.c.l.b16 %v202
    %v1300 = vunpack.c.h.b16 %v202
    %v1301 = vunpack.c.l.b16 %v203
    %v1302 = vunpack.c.l.b16 %v204
    %v1303 = vunpack.c.h.b16 %v204
    %v1304 = vunpack.c.l.b16 %v205
    %v1305 = vunpack.c.l.b16 %v206
    %v1306 = vunpack.c.h.b16 %v206
    %v1307 = vunpack.c.l.b16 %v207
    %v1308 = vunpack.c.l.b16 %v208
    %v1309 = vunpack.c.h.b16 %v208
    %v1310 = vunpack.c.l.b16 %v209
    %v1311 = vunpack.c.l.b16 %v210
    %v1312 = vunpack.c.h.b16 %v210
    %v1313 = vunpack.c.l.b16 %v211
    %v1314 = vunpack.c.l.b16 %v212
    %v1315 = vunpack.c.h.b16 %v212
    %v1316 = vunpack.c.l.b16 %v213
    %v1317 = vunpack.c.l.b16 %v214
    %v1318 = vunpack.c.h.b16 %v214
    %v1319 = vunpack.c.l.b16 %v215
    %v1320 = vunpack.c.l.b16 %v216
    %v1321 = vunpack.c.h.b16 %v216
    %v1322 = vunpack.c.l.b16 %v217
    %v1323 = vunpack.c.l.b16 %v218
    %v1324 = vunpack.c.h.b16 %v218
    %v1325 = vunpack.c.l.b16 %v219
    %v1326 = vunpack.c.l.b16 %v220
    %v1327 = vunpack.c.h.b16 %v220
    %v1328 = vunpack.c.l.b16 %v221
    %v1329 = vunpack.c.l.b16 %v222
    %v1330 = vunpack.c.h.b16 %v222
    %v1331 = vunpack.c.l.b16 %v223
    %v1332 = vunpack.c.l.b16 %v224
    %v1333 = vunpack.c.h.b16 %v224
    %v1334 = vunpack.c.l.b16 %v225
    %v1335 = vunpack.c.l.b16 %v226
    %v1336 = vunpack.c.h.b16 %v226
    %v1337 = vunpack.c.l.b16 %v227
    %v1338 = vunpack.c.l.b16 %v228
    %v1339 = vunpack.c.h.b16 %v228
    %v1340 = vunpack.c.l.b16 %v229
    %v1341 = vunpack.c.l.b16 %v230
    %v1342 = vunpack.c.h.b16 %v230
    %v1343 = vunpack.c.l.b16 %v231
    %v1344 = vpack.c.b16 %v1203, %v1200
    %v1345 = vpack.c.b16 %v1204, %v1201
    %v1346 = vpack.c.b16 %v1205, %v1202
    %v1347 = vpack.c.b16 %v1209, %v1206
    %v1348 = vpack.c.b16 %v1210, %v1207
    %v1349 = vpack.c.b16 %v1211, %v1208
    %v1350 = vpack.c.b16 %v1215, %v1212
    %v1351 = vpack.c.b16 %v1216, %v1213
    %v1352 = vpack.c.b16 %v1217, %v1214
    %v1353 = vpack.c.b16 %v1221, %v1218
    %v1354 = vpack.c.b16 %v1222, %v1219
    %v1355 = vpack.c.b16 %v1223, %v1220
    %v1356 = vpack.c.b16 %v1227, %v1224
    %v1357 = vpack.c.b16 %v1228, %v1225
    %v1358 = vpack.c.b16 %v1229, %v1226
    %v1359 = vpack.c.b16 %v1233, %v1230
    %v1360 = vpack.c.b16 %v1234, %v1231
    %v1361 = vpack.c.b16 %v1235, %v1232
    %v1362 = vpack.c.b16 %v1239, %v1236
    %v1363 = vpack.c.b16 %v1240, %v1237
    %v1364 = vpack.c.b16 %v1241, %v1238
    %v1365 = vpack.c.b16 %v1245, %v1242
    %v1366 = vpack.c.b16 %v1246, %v1243
    %v1367 = vpack.c.b16 %v1247, %v1244
    %v1368 = vpack.c.b16 %v1251, %v1248
    %v1369 = vpack.c.b16 %v1252, %v1249
    %v1370 = vpack.c.b16 %v1253, %v1250
    %v1371 = vpack.c.b16 %v1257, %v1254
    %v1372 = vpack.c.b16 %v1258, %v1255
    %v1373 = vpack.c.b16 %v1259, %v1256
    %v1374 = vpack.c.b16 %v1263, %v1260
    %v1375 = vpack.c.b16 %v1264, %v1261
    %v1376 = vpack.c.b16 %v1265, %v1262
    %v1377 = vpack.c.b16 %v1269, %v1266
    %v1378 = vpack.c.b16 %v1270, %v1267
    %v1379 = vpack.c.b16 %v1271, %v1268
    %v1380 = vpack.c.b16 %v1275, %v1272
    %v1381 = vpack.c.b16 %v1276, %v1273
    %v1382 = vpack.c.b16 %v1277, %v1274
    %v1383 = vpack.c.b16 %v1281, %v1278
    %v1384 = vpack.c.b16 %v1282, %v1279
    %v1385 = vpack.c.b16 %v1283, %v1280
    %v1386 = vpack.c.b16 %v1287, %v1284
    %v1387 = vpack.c.b16 %v1288, %v1285
    %v1388 = vpack.c.b16 %v1289, %v1286
    %v1389 = vpack.c.b16 %v1293, %v1290
    %v1390 = vpack.c.b16 %v1294, %v1291
    %v1391 = vpack.c.b16 %v1295, %v1292
    %v1392 = vpack.c.b16 %v1299, %v1296
    %v1393 = vpack.c.b16 %v1300, %v1297
    %v1394 = vpack.c.b16 %v1301, %v1298
    %v1395 = vpack.c.b16 %v1305, %v1302
    %v1396 = vpack.c.b16 %v1306, %v1303
    %v1397 = vpack.c.b16 %v1307, %v1304
    %v1398 = vpack.c.b16 %v1311, %v1308
    %v1399 = vpack.c.b16 %v1312, %v1309
    %v1400 = vpack.c.b16 %v1313, %v1310
    %v1401 = vpack.c.b16 %v1317, %v1314
    %v1402 = vpack.c.b16 %v1318, %v1315
    %v1403 = vpack.c.b16 %v1319, %v1316
    %v1404 = vpack.c.b16 %v1323, %v1320
    %v1405 = vpack.c.b16 %v1324, %v1321
    %v1406 = vpack.c.b16 %v1325, %v1322
    %v1407 = vpack.c.b16 %v1329, %v1326
    %v1408 = vpack.c.b16 %v1330, %v1327
    %v1409 = vpack.c.b16 %v1331, %v1328
    %v1410 = vpack.c.b16 %v1335, %v1332
    %v1411 = vpack.c.b16 %v1336, %v1333
    %v1412 = vpack.c.b16 %v1337, %v1334
    %v1413 = vpack.c.b16 %v1341, %v1338
    %v1414 = vpack.c.b16 %v1342, %v1339
    %v1415 = vpack.c.b16 %v1343, %v1340
    %1488 = vmatprep.subr.bf16.mxu0 %v1366
    %1489 = vmatpush1.bf16.msra.mxu0 %v1365
    %1490 = vmatprep.subr.bf16.mxu0 %v1363
    %1491 = vmatpush1.bf16.msra.mxu0 %v1362
    %1492 = vmatprep.subr.bf16.mxu0 %v1360
    %1493 = vmatpush1.bf16.msra.mxu0 %v1359
    %1494 = vmatprep.subr.bf16.mxu0 %v1357
    %1495 = vmatpush1.bf16.msra.mxu0 %v1356
    %1496 = vmatprep.subr.bf16.mxu0 %v1354
    %1497 = vmatpush1.bf16.msra.mxu0 %v1353
    %1498 = vmatprep.subr.bf16.mxu0 %v1351
    %1499 = vmatpush1.bf16.msra.mxu0 %v1350
    %1500 = vmatprep.subr.bf16.mxu0 %v1348
    %1501 = vmatpush1.bf16.msra.mxu0 %v1347
    %1502 = vmatprep.subr.bf16.mxu0 %v1345
    %1503 = vmatpush1.bf16.msra.mxu0 %v1344
    %1504 = vmatprep.subr.bf16.mxu0 %v1390
    %1505 = vmatpush2.bf16.msra.mxu0 %v1389
    %1506 = vmatprep.subr.bf16.mxu0 %v1387
    %1507 = vmatpush2.bf16.msra.mxu0 %v1386
    %1508 = vmatprep.subr.bf16.mxu0 %v1384
    %1509 = vmatpush2.bf16.msra.mxu0 %v1383
    %1510 = vmatprep.subr.bf16.mxu0 %v1381
    %1511 = vmatpush2.bf16.msra.mxu0 %v1380
    %1512 = vmatprep.subr.bf16.mxu0 %v1378
    %1513 = vmatpush2.bf16.msra.mxu0 %v1377
    %1514 = vmatprep.subr.bf16.mxu0 %v1375
    %1515 = vmatpush2.bf16.msra.mxu0 %v1374
    %1516 = vmatprep.subr.bf16.mxu0 %v1372
    %1517 = vmatpush2.bf16.msra.mxu0 %v1371
    %1518 = vmatprep.subr.bf16.mxu0 %v1369
    %1519 = vmatpush2.bf16.msra.mxu0 %v1368
    %1520 = vmatprep.mubr.bf16.mxu0 %v370
    %1521 = vmatmul.mubr.bf16.gmra.mxu0 %v369
    %v1522 = vpop.f32.mrf.mxu0
    %v1523 = vadd.f32 %v1098, %v1522
    %v1524 = vpop.f32.mrf.mxu0
    %v1525 = vadd.f32 %v1099, %v1524
    %v1526 = vpop.f32.mrf.mxu0
    %v1527 = vadd.f32 %v1095, %v1526
    %v1528 = vpop.f32.mrf.mxu0
    %v1529 = vadd.f32 %v1096, %v1528
    %1530 = vmatprep.mubr.bf16.mxu0 %v373
    %1531 = vmatmul.mubr.bf16.gmra.mxu0 %v372
    %v1532 = vpop.f32.mrf.mxu0
    %v1533 = vadd.f32 %v1092, %v1532
    %v1534 = vpop.f32.mrf.mxu0
    %v1535 = vadd.f32 %v1093, %v1534
    %v1536 = vpop.f32.mrf.mxu0
    %v1537 = vadd.f32 %v1089, %v1536
    %v1538 = vpop.f32.mrf.mxu0
    %v1539 = vadd.f32 %v1090, %v1538
    %1540 = vmatprep.mubr.bf16.mxu0 %v376
    %1541 = vmatmul.mubr.bf16.gmra.mxu0 %v375
    %v1542 = vpop.f32.mrf.mxu0
    %v1543 = vadd.f32 %v1086, %v1542
    %v1544 = vpop.f32.mrf.mxu0
    %v1545 = vadd.f32 %v1087, %v1544
    %v1546 = vpop.f32.mrf.mxu0
    %v1547 = vadd.f32 %v1083, %v1546
    %v1548 = vpop.f32.mrf.mxu0
    %v1549 = vadd.f32 %v1084, %v1548
    %1550 = vmatprep.mubr.bf16.mxu0 %v379
    %1551 = vmatmul.mubr.bf16.gmra.mxu0 %v378
    %v1552 = vpop.f32.mrf.mxu0
    %v1553 = vadd.f32 %v1080, %v1552
    %v1554 = vpop.f32.mrf.mxu0
    %v1555 = vadd.f32 %v1081, %v1554
    %v1556 = vpop.f32.mrf.mxu0
    %v1557 = vadd.f32 %v1101, %v1556
    %v1558 = vpop.f32.mrf.mxu0
    %v1559 = vadd.f32 %v1102, %v1558
    %1560 = vdwg.mxu0
    %1561 = vmatprep.subr.bf16.mxu0 %v1414
    %1562 = vmatpush1.bf16.msra.mxu0 %v1413
    %1563 = vmatprep.subr.bf16.mxu0 %v1411
    %1564 = vmatpush1.bf16.msra.mxu0 %v1410
    %1565 = vmatprep.subr.bf16.mxu0 %v1408
    %1566 = vmatpush1.bf16.msra.mxu0 %v1407
    %1567 = vmatprep.subr.bf16.mxu0 %v1405
    %1568 = vmatpush1.bf16.msra.mxu0 %v1404
    %1569 = vmatprep.subr.bf16.mxu0 %v1402
    %1570 = vmatpush1.bf16.msra.mxu0 %v1401
    %1571 = vmatprep.subr.bf16.mxu0 %v1399
    %1572 = vmatpush1.bf16.msra.mxu0 %v1398
    %1573 = vmatprep.subr.bf16.mxu0 %v1396
    %1574 = vmatpush1.bf16.msra.mxu0 %v1395
    %1575 = vmatprep.subr.bf16.mxu0 %v1393
    %1576 = vmatpush1.bf16.msra.mxu0 %v1392
    %1577 = vmatprep.subr.bf16.mxu0 0
    %1578 = vmatpush2.bf16.msra.mxu0 0
    %1579 = vmatprep.subr.bf16.mxu0 0
    %1580 = vmatpush2.bf16.msra.mxu0 0
    %1581 = vmatprep.subr.bf16.mxu0 0
    %1582 = vmatpush2.bf16.msra.mxu0 0
    %1583 = vmatprep.subr.bf16.mxu0 0
    %1584 = vmatpush2.bf16.msra.mxu0 0
    %1585 = vmatprep.subr.bf16.mxu0 0
    %1586 = vmatpush2.bf16.msra.mxu0 0
    %1587 = vmatprep.subr.bf16.mxu0 0
    %1588 = vmatpush2.bf16.msra.mxu0 0
    %1589 = vmatprep.subr.bf16.mxu0 0
    %1590 = vmatpush2.bf16.msra.mxu0 0
    %1591 = vmatprep.subr.bf16.mxu0 0
    %1592 = vmatpush2.bf16.msra.mxu0 0
    %1593 = vmatprep.mubr.bf16.mxu0 0
    %1594 = vmatmul.mubr.bf16.gmra.mxu0 %v371
    %v1595 = vpop.f32.mrf.mxu0
    %v1596 = vadd.f32 %v1523, %v1595
    %v1597 = vpop.f32.mrf.mxu0
    %v1598 = vadd.f32 %v1525, %v1597
    %v1599 = vpop.f32.mrf.mxu0
    %v1600 = vadd.f32 %v1527, %v1599
    %v1601 = vpop.f32.mrf.mxu0
    %v1602 = vadd.f32 %v1529, %v1601
    %1603 = vmatprep.mubr.bf16.mxu0 0
    %1604 = vmatmul.mubr.bf16.gmra.mxu0 %v374
    %v1605 = vpop.f32.mrf.mxu0
    %v1606 = vadd.f32 %v1533, %v1605
    %v1607 = vpop.f32.mrf.mxu0
    %v1608 = vadd.f32 %v1535, %v1607
    %v1609 = vpop.f32.mrf.mxu0
    %v1610 = vadd.f32 %v1537, %v1609
    %v1611 = vpop.f32.mrf.mxu0
    %v1612 = vadd.f32 %v1539, %v1611
    %1613 = vmatprep.mubr.bf16.mxu0 0
    %1614 = vmatmul.mubr.bf16.gmra.mxu0 %v377
    %v1615 = vpop.f32.mrf.mxu0
    %v1616 = vadd.f32 %v1543, %v1615
    %v1617 = vpop.f32.mrf.mxu0
    %v1618 = vadd.f32 %v1545, %v1617
    %v1619 = vpop.f32.mrf.mxu0
    %v1620 = vadd.f32 %v1547, %v1619
    %v1621 = vpop.f32.mrf.mxu0
    %v1622 = vadd.f32 %v1549, %v1621
    %1623 = vmatprep.mubr.bf16.mxu0 0
    %1624 = vmatmul.mubr.bf16.gmra.mxu0 %v380
    %v1625 = vpop.f32.mrf.mxu0
    %v1626 = vadd.f32 %v1553, %v1625
    %v1627 = vpop.f32.mrf.mxu0
    %v1628 = vadd.f32 %v1555, %v1627
    %v1629 = vpop.f32.mrf.mxu0
    %v1630 = vadd.f32 %v1557, %v1629
    %v1631 = vpop.f32.mrf.mxu0
    %v1632 = vadd.f32 %v1559, %v1631
    %1633 = vdwg.mxu0
    %1634 = vmatprep.subr.bf16.mxu0 0
    %1635 = vmatpush1.bf16.msra.mxu0 %v1367
    %1636 = vmatprep.subr.bf16.mxu0 0
    %1637 = vmatpush1.bf16.msra.mxu0 %v1364
    %1638 = vmatprep.subr.bf16.mxu0 0
    %1639 = vmatpush1.bf16.msra.mxu0 %v1361
    %1640 = vmatprep.subr.bf16.mxu0 0
    %1641 = vmatpush1.bf16.msra.mxu0 %v1358
    %1642 = vmatprep.subr.bf16.mxu0 0
    %1643 = vmatpush1.bf16.msra.mxu0 %v1355
    %1644 = vmatprep.subr.bf16.mxu0 0
    %1645 = vmatpush1.bf16.msra.mxu0 %v1352
    %1646 = vmatprep.subr.bf16.mxu0 0
    %1647 = vmatpush1.bf16.msra.mxu0 %v1349
    %1648 = vmatprep.subr.bf16.mxu0 0
    %1649 = vmatpush1.bf16.msra.mxu0 %v1346
    %1650 = vmatprep.subr.bf16.mxu0 0
    %1651 = vmatpush2.bf16.msra.mxu0 %v1391
    %1652 = vmatprep.subr.bf16.mxu0 0
    %1653 = vmatpush2.bf16.msra.mxu0 %v1388
    %1654 = vmatprep.subr.bf16.mxu0 0
    %1655 = vmatpush2.bf16.msra.mxu0 %v1385
    %1656 = vmatprep.subr.bf16.mxu0 0
    %1657 = vmatpush2.bf16.msra.mxu0 %v1382
    %1658 = vmatprep.subr.bf16.mxu0 0
    %1659 = vmatpush2.bf16.msra.mxu0 %v1379
    %1660 = vmatprep.subr.bf16.mxu0 0
    %1661 = vmatpush2.bf16.msra.mxu0 %v1376
    %1662 = vmatprep.subr.bf16.mxu0 0
    %1663 = vmatpush2.bf16.msra.mxu0 %v1373
    %1664 = vmatprep.subr.bf16.mxu0 0
    %1665 = vmatpush2.bf16.msra.mxu0 %v1370
    %1666 = vmatprep.mubr.bf16.mxu0 %v370
    %1667 = vmatmul.mubr.bf16.gmra.mxu0 %v369
    %v1668 = vpop.f32.mrf.mxu0
    %v1669 = vadd.f32 %v1100, %v1668
    %v1670 = vpop.f32.mrf.mxu0
    %v1671 = vpop.f32.mrf.mxu0
    %v1672 = vadd.f32 %v1097, %v1671
    %v1673 = vpop.f32.mrf.mxu0
    %1674 = vmatprep.mubr.bf16.mxu0 %v373
    %1675 = vmatmul.mubr.bf16.gmra.mxu0 %v372
    %v1676 = vpop.f32.mrf.mxu0
    %v1677 = vadd.f32 %v1094, %v1676
    %v1678 = vpop.f32.mrf.mxu0
    %v1679 = vpop.f32.mrf.mxu0
    %v1680 = vadd.f32 %v1091, %v1679
    %v1681 = vpop.f32.mrf.mxu0
    %1682 = vmatprep.mubr.bf16.mxu0 %v376
    %1683 = vmatmul.mubr.bf16.gmra.mxu0 %v375
    %v1684 = vpop.f32.mrf.mxu0
    %v1685 = vadd.f32 %v1088, %v1684
    %v1686 = vpop.f32.mrf.mxu0
    %v1687 = vpop.f32.mrf.mxu0
    %v1688 = vadd.f32 %v1085, %v1687
    %v1689 = vpop.f32.mrf.mxu0
    %1690 = vmatprep.mubr.bf16.mxu0 %v379
    %1691 = vmatmul.mubr.bf16.gmra.mxu0 %v378
    %v1692 = vpop.f32.mrf.mxu0
    %v1693 = vadd.f32 %v1082, %v1692
    %v1694 = vpop.f32.mrf.mxu0
    %v1695 = vpop.f32.mrf.mxu0
    %v1696 = vadd.f32 %v1103, %v1695
    %v1697 = vpop.f32.mrf.mxu0
    %1698 = vdwg.mxu0
    %1699 = vmatprep.subr.bf16.mxu0 0
    %1700 = vmatpush1.bf16.msra.mxu0 %v1415
    %1701 = vmatprep.subr.bf16.mxu0 0
    %1702 = vmatpush1.bf16.msra.mxu0 %v1412
    %1703 = vmatprep.subr.bf16.mxu0 0
    %1704 = vmatpush1.bf16.msra.mxu0 %v1409
    %1705 = vmatprep.subr.bf16.mxu0 0
    %1706 = vmatpush1.bf16.msra.mxu0 %v1406
    %1707 = vmatprep.subr.bf16.mxu0 0
    %1708 = vmatpush1.bf16.msra.mxu0 %v1403
    %1709 = vmatprep.subr.bf16.mxu0 0
    %1710 = vmatpush1.bf16.msra.mxu0 %v1400
    %1711 = vmatprep.subr.bf16.mxu0 0
    %1712 = vmatpush1.bf16.msra.mxu0 %v1397
    %1713 = vmatprep.subr.bf16.mxu0 0
    %1714 = vmatpush1.bf16.msra.mxu0 %v1394
    %1715 = vmatprep.subr.bf16.mxu0 0
    %1716 = vmatpush2.bf16.msra.mxu0 0
    %1717 = vmatprep.subr.bf16.mxu0 0
    %1718 = vmatpush2.bf16.msra.mxu0 0
    %1719 = vmatprep.subr.bf16.mxu0 0
    %1720 = vmatpush2.bf16.msra.mxu0 0
    %1721 = vmatprep.subr.bf16.mxu0 0
    %1722 = vmatpush2.bf16.msra.mxu0 0
    %1723 = vmatprep.subr.bf16.mxu0 0
    %1724 = vmatpush2.bf16.msra.mxu0 0
    %1725 = vmatprep.subr.bf16.mxu0 0
    %1726 = vmatpush2.bf16.msra.mxu0 0
    %1727 = vmatprep.subr.bf16.mxu0 0
    %1728 = vmatpush2.bf16.msra.mxu0 0
    %1729 = vmatprep.subr.bf16.mxu0 0
    %1730 = vmatpush2.bf16.msra.mxu0 0
    %1731 = vmatprep.mubr.bf16.mxu0 0
    %1732 = vmatmul.mubr.bf16.gmra.mxu0 %v371
    %v1733 = vpop.f32.mrf.mxu0
    %v1734 = vadd.f32 %v1669, %v1733
    %v1735 = vpop.f32.mrf.mxu0
    %v1736 = vpop.f32.mrf.mxu0
    %v1737 = vadd.f32 %v1672, %v1736
    %v1738 = vpop.f32.mrf.mxu0
    %1739 = vmatprep.mubr.bf16.mxu0 0
    %1740 = vmatmul.mubr.bf16.gmra.mxu0 %v374
    %v1741 = vpop.f32.mrf.mxu0
    %v1742 = vadd.f32 %v1677, %v1741
    %v1743 = vpop.f32.mrf.mxu0
    %v1744 = vpop.f32.mrf.mxu0
    %v1745 = vadd.f32 %v1680, %v1744
    %v1746 = vpop.f32.mrf.mxu0
    %1747 = vmatprep.mubr.bf16.mxu0 0
    %1748 = vmatmul.mubr.bf16.gmra.mxu0 %v377
    %v1749 = vpop.f32.mrf.mxu0
    %v1750 = vadd.f32 %v1685, %v1749
    %v1751 = vpop.f32.mrf.mxu0
    %v1752 = vpop.f32.mrf.mxu0
    %v1753 = vadd.f32 %v1688, %v1752
    %v1754 = vpop.f32.mrf.mxu0
    %1755 = vmatprep.mubr.bf16.mxu0 0
    %1756 = vmatmul.mubr.bf16.gmra.mxu0 %v380
    %v1757 = vpop.f32.mrf.mxu0
    %v1758 = vadd.f32 %v1693, %v1757
    %v1759 = vpop.f32.mrf.mxu0
    %v1760 = vpop.f32.mrf.mxu0
    %v1761 = vadd.f32 %v1696, %v1760
    %v1762 = vpop.f32.mrf.mxu0
    %1763 = vdwg.mxu0
    %s1764 = scalar_lea.vmem [#allocation2], 1152
    %v1765 = vld [vmem:[%s1764] sm:$0xff]
    %v1766 = vld [vmem:[%s1764 + $0x8] sm:$0xf]
    %v1767 = vld [vmem:[%s1764 + $0xc] sm:$0xff]
    %v1768 = vld [vmem:[%s1764 + $0x14] sm:$0xf]
    %v1769 = vld [vmem:[%s1764 + $0x18] sm:$0xff]
    %v1770 = vld [vmem:[%s1764 + $0x20] sm:$0xf]
    %v1771 = vld [vmem:[%s1764 + $0x24] sm:$0xff]
    %v1772 = vld [vmem:[%s1764 + $0x2c] sm:$0xf]
    %v1773 = vld [vmem:[%s1764 + $0x30] sm:$0xff]
    %v1774 = vld [vmem:[%s1764 + $0x38] sm:$0xf]
    %v1775 = vld [vmem:[%s1764 + $0x3c] sm:$0xff]
    %v1776 = vld [vmem:[%s1764 + $0x44] sm:$0xf]
    %v1777 = vld [vmem:[%s1764 + $0x48] sm:$0xff]
    %v1778 = vld [vmem:[%s1764 + $0x50] sm:$0xf]
    %v1779 = vld [vmem:[%s1764 + $0x54] sm:$0xff]
    %v1780 = vld [vmem:[%s1764 + $0x5c] sm:$0xf]
    %v1781 = vld [vmem:[%s1764 + $0x60] sm:$0xff]
    %v1782 = vld [vmem:[%s1764 + $0x68] sm:$0xf]
    %v1783 = vld [vmem:[%s1764 + $0x6c] sm:$0xff]
    %v1784 = vld [vmem:[%s1764 + $0x74] sm:$0xf]
    %v1785 = vld [vmem:[%s1764 + $0x78] sm:$0xff]
    %v1786 = vld [vmem:[%s1764 + $0x80] sm:$0xf]
    %v1787 = vld [vmem:[%s1764 + $0x84] sm:$0xff]
    %v1788 = vld [vmem:[%s1764 + $0x8c] sm:$0xf]
    %v1789 = vld [vmem:[%s1764 + $0x90] sm:$0xff]
    %v1790 = vld [vmem:[%s1764 + $0x98] sm:$0xf]
    %v1791 = vld [vmem:[%s1764 + $0x9c] sm:$0xff]
    %v1792 = vld [vmem:[%s1764 + $0xa4] sm:$0xf]
    %v1793 = vld [vmem:[%s1764 + $0xa8] sm:$0xff]
    %v1794 = vld [vmem:[%s1764 + $0xb0] sm:$0xf]
    %v1795 = vld [vmem:[%s1764 + $0xb4] sm:$0xff]
    %v1796 = vld [vmem:[%s1764 + $0xbc] sm:$0xf]
    %v1797 = vld [vmem:[%s1764 + $0xc0] sm:$0xff]
    %v1798 = vld [vmem:[%s1764 + $0xc8] sm:$0xf]
    %v1799 = vld [vmem:[%s1764 + $0xcc] sm:$0xff]
    %v1800 = vld [vmem:[%s1764 + $0xd4] sm:$0xf]
    %v1801 = vld [vmem:[%s1764 + $0xd8] sm:$0xff]
    %v1802 = vld [vmem:[%s1764 + $0xe0] sm:$0xf]
    %v1803 = vld [vmem:[%s1764 + $0xe4] sm:$0xff]
    %v1804 = vld [vmem:[%s1764 + $0xec] sm:$0xf]
    %v1805 = vld [vmem:[%s1764 + $0xf0] sm:$0xff]
    %v1806 = vld [vmem:[%s1764 + $0xf8] sm:$0xf]
    %v1807 = vld [vmem:[%s1764 + $0xfc] sm:$0xff]
    %v1808 = vld [vmem:[%s1764 + $0x104] sm:$0xf]
    %v1809 = vld [vmem:[%s1764 + $0x108] sm:$0xff]
    %v1810 = vld [vmem:[%s1764 + $0x110] sm:$0xf]
    %v1811 = vld [vmem:[%s1764 + $0x114] sm:$0xff]
    %v1812 = vld [vmem:[%s1764 + $0x11c] sm:$0xf]
    %v1813 = vld [vmem:[%s1764 + $0x120] sm:$0xff]
    %v1814 = vld [vmem:[%s1764 + $0x128] sm:$0xf]
    %v1815 = vld [vmem:[%s1764 + $0x12c] sm:$0xff]
    %v1816 = vld [vmem:[%s1764 + $0x134] sm:$0xf]
    %v1817 = vld [vmem:[%s1764 + $0x138] sm:$0xff]
    %v1818 = vld [vmem:[%s1764 + $0x140] sm:$0xf]
    %v1819 = vld [vmem:[%s1764 + $0x144] sm:$0xff]
    %v1820 = vld [vmem:[%s1764 + $0x14c] sm:$0xf]
    %v1821 = vld [vmem:[%s1764 + $0x150] sm:$0xff]
    %v1822 = vld [vmem:[%s1764 + $0x158] sm:$0xf]
    %v1823 = vld [vmem:[%s1764 + $0x15c] sm:$0xff]
    %v1824 = vld [vmem:[%s1764 + $0x164] sm:$0xf]
    %v1825 = vld [vmem:[%s1764 + $0x168] sm:$0xff]
    %v1826 = vld [vmem:[%s1764 + $0x170] sm:$0xf]
    %v1827 = vld [vmem:[%s1764 + $0x174] sm:$0xff]
    %v1828 = vld [vmem:[%s1764 + $0x17c] sm:$0xf]
    %v1829 = vld [vmem:[%s1764 + $0x180] sm:$0xff]
    %v1830 = vld [vmem:[%s1764 + $0x188] sm:$0xf]
    %v1831 = vld [vmem:[%s1764 + $0x18c] sm:$0xff]
    %v1832 = vld [vmem:[%s1764 + $0x194] sm:$0xf]
    %v1833 = vld [vmem:[%s1764 + $0x198] sm:$0xff]
    %v1834 = vld [vmem:[%s1764 + $0x1a0] sm:$0xf]
    %v1835 = vld [vmem:[%s1764 + $0x1a4] sm:$0xff]
    %v1836 = vld [vmem:[%s1764 + $0x1ac] sm:$0xf]
    %v1837 = vld [vmem:[%s1764 + $0x1b0] sm:$0xff]
    %v1838 = vld [vmem:[%s1764 + $0x1b8] sm:$0xf]
    %v1839 = vld [vmem:[%s1764 + $0x1bc] sm:$0xff]
    %v1840 = vld [vmem:[%s1764 + $0x1c4] sm:$0xf]
    %v1841 = vld [vmem:[%s1764 + $0x1c8] sm:$0xff]
    %v1842 = vld [vmem:[%s1764 + $0x1d0] sm:$0xf]
    %v1843 = vld [vmem:[%s1764 + $0x1d4] sm:$0xff]
    %v1844 = vld [vmem:[%s1764 + $0x1dc] sm:$0xf]
    %v1845 = vld [vmem:[%s1764 + $0x1e0] sm:$0xff]
    %v1846 = vld [vmem:[%s1764 + $0x1e8] sm:$0xf]
    %v1847 = vld [vmem:[%s1764 + $0x1ec] sm:$0xff]
    %v1848 = vld [vmem:[%s1764 + $0x1f4] sm:$0xf]
    %v1849 = vld [vmem:[%s1764 + $0x1f8] sm:$0xff]
    %v1850 = vld [vmem:[%s1764 + $0x200] sm:$0xf]
    %v1851 = vld [vmem:[%s1764 + $0x204] sm:$0xff]
    %v1852 = vld [vmem:[%s1764 + $0x20c] sm:$0xf]
    %v1853 = vld [vmem:[%s1764 + $0x210] sm:$0xff]
    %v1854 = vld [vmem:[%s1764 + $0x218] sm:$0xf]
    %v1855 = vld [vmem:[%s1764 + $0x21c] sm:$0xff]
    %v1856 = vld [vmem:[%s1764 + $0x224] sm:$0xf]
    %v1857 = vld [vmem:[%s1764 + $0x228] sm:$0xff]
    %v1858 = vld [vmem:[%s1764 + $0x230] sm:$0xf]
    %v1859 = vld [vmem:[%s1764 + $0x234] sm:$0xff]
    %v1860 = vld [vmem:[%s1764 + $0x23c] sm:$0xf]
    %v1957 = vunpack.c.l.b16 %v1765
    %v1958 = vunpack.c.h.b16 %v1765
    %v1959 = vunpack.c.l.b16 %v1766
    %v1960 = vunpack.c.l.b16 %v1767
    %v1961 = vunpack.c.h.b16 %v1767
    %v1962 = vunpack.c.l.b16 %v1768
    %v1963 = vunpack.c.l.b16 %v1769
    %v1964 = vunpack.c.h.b16 %v1769
    %v1965 = vunpack.c.l.b16 %v1770
    %v1966 = vunpack.c.l.b16 %v1771
    %v1967 = vunpack.c.h.b16 %v1771
    %v1968 = vunpack.c.l.b16 %v1772
    %v1969 = vunpack.c.l.b16 %v1773
    %v1970 = vunpack.c.h.b16 %v1773
    %v1971 = vunpack.c.l.b16 %v1774
    %v1972 = vunpack.c.l.b16 %v1775
    %v1973 = vunpack.c.h.b16 %v1775
    %v1974 = vunpack.c.l.b16 %v1776
    %v1975 = vunpack.c.l.b16 %v1777
    %v1976 = vunpack.c.h.b16 %v1777
    %v1977 = vunpack.c.l.b16 %v1778
    %v1978 = vunpack.c.l.b16 %v1779
    %v1979 = vunpack.c.h.b16 %v1779
    %v1980 = vunpack.c.l.b16 %v1780
    %v1981 = vunpack.c.l.b16 %v1781
    %v1982 = vunpack.c.h.b16 %v1781
    %v1983 = vunpack.c.l.b16 %v1782
    %v1984 = vunpack.c.l.b16 %v1783
    %v1985 = vunpack.c.h.b16 %v1783
    %v1986 = vunpack.c.l.b16 %v1784
    %v1987 = vunpack.c.l.b16 %v1785
    %v1988 = vunpack.c.h.b16 %v1785
    %v1989 = vunpack.c.l.b16 %v1786
    %v1990 = vunpack.c.l.b16 %v1787
    %v1991 = vunpack.c.h.b16 %v1787
    %v1992 = vunpack.c.l.b16 %v1788
    %v1993 = vunpack.c.l.b16 %v1789
    %v1994 = vunpack.c.h.b16 %v1789
    %v1995 = vunpack.c.l.b16 %v1790
    %v1996 = vunpack.c.l.b16 %v1791
    %v1997 = vunpack.c.h.b16 %v1791
    %v1998 = vunpack.c.l.b16 %v1792
    %v1999 = vunpack.c.l.b16 %v1793
    %v2000 = vunpack.c.h.b16 %v1793
    %v2001 = vunpack.c.l.b16 %v1794
    %v2002 = vunpack.c.l.b16 %v1795
    %v2003 = vunpack.c.h.b16 %v1795
    %v2004 = vunpack.c.l.b16 %v1796
    %v2005 = vunpack.c.l.b16 %v1797
    %v2006 = vunpack.c.h.b16 %v1797
    %v2007 = vunpack.c.l.b16 %v1798
    %v2008 = vunpack.c.l.b16 %v1799
    %v2009 = vunpack.c.h.b16 %v1799
    %v2010 = vunpack.c.l.b16 %v1800
    %v2011 = vunpack.c.l.b16 %v1801
    %v2012 = vunpack.c.h.b16 %v1801
    %v2013 = vunpack.c.l.b16 %v1802
    %v2014 = vunpack.c.l.b16 %v1803
    %v2015 = vunpack.c.h.b16 %v1803
    %v2016 = vunpack.c.l.b16 %v1804
    %v2017 = vunpack.c.l.b16 %v1805
    %v2018 = vunpack.c.h.b16 %v1805
    %v2019 = vunpack.c.l.b16 %v1806
    %v2020 = vunpack.c.l.b16 %v1807
    %v2021 = vunpack.c.h.b16 %v1807
    %v2022 = vunpack.c.l.b16 %v1808
    %v2023 = vunpack.c.l.b16 %v1809
    %v2024 = vunpack.c.h.b16 %v1809
    %v2025 = vunpack.c.l.b16 %v1810
    %v2026 = vunpack.c.l.b16 %v1811
    %v2027 = vunpack.c.h.b16 %v1811
    %v2028 = vunpack.c.l.b16 %v1812
    %v2029 = vunpack.c.l.b16 %v1813
    %v2030 = vunpack.c.h.b16 %v1813
    %v2031 = vunpack.c.l.b16 %v1814
    %v2032 = vunpack.c.l.b16 %v1815
    %v2033 = vunpack.c.h.b16 %v1815
    %v2034 = vunpack.c.l.b16 %v1816
    %v2035 = vunpack.c.l.b16 %v1817
    %v2036 = vunpack.c.h.b16 %v1817
    %v2037 = vunpack.c.l.b16 %v1818
    %v2038 = vunpack.c.l.b16 %v1819
    %v2039 = vunpack.c.h.b16 %v1819
    %v2040 = vunpack.c.l.b16 %v1820
    %v2041 = vunpack.c.l.b16 %v1821
    %v2042 = vunpack.c.h.b16 %v1821
    %v2043 = vunpack.c.l.b16 %v1822
    %v2044 = vunpack.c.l.b16 %v1823
    %v2045 = vunpack.c.h.b16 %v1823
    %v2046 = vunpack.c.l.b16 %v1824
    %v2047 = vunpack.c.l.b16 %v1825
    %v2048 = vunpack.c.h.b16 %v1825
    %v2049 = vunpack.c.l.b16 %v1826
    %v2050 = vunpack.c.l.b16 %v1827
    %v2051 = vunpack.c.h.b16 %v1827
    %v2052 = vunpack.c.l.b16 %v1828
    %v2053 = vunpack.c.l.b16 %v1829
    %v2054 = vunpack.c.h.b16 %v1829
    %v2055 = vunpack.c.l.b16 %v1830
    %v2056 = vunpack.c.l.b16 %v1831
    %v2057 = vunpack.c.h.b16 %v1831
    %v2058 = vunpack.c.l.b16 %v1832
    %v2059 = vunpack.c.l.b16 %v1833
    %v2060 = vunpack.c.h.b16 %v1833
    %v2061 = vunpack.c.l.b16 %v1834
    %v2062 = vunpack.c.l.b16 %v1835
    %v2063 = vunpack.c.h.b16 %v1835
    %v2064 = vunpack.c.l.b16 %v1836
    %v2065 = vunpack.c.l.b16 %v1837
    %v2066 = vunpack.c.h.b16 %v1837
    %v2067 = vunpack.c.l.b16 %v1838
    %v2068 = vunpack.c.l.b16 %v1839
    %v2069 = vunpack.c.h.b16 %v1839
    %v2070 = vunpack.c.l.b16 %v1840
    %v2071 = vunpack.c.l.b16 %v1841
    %v2072 = vunpack.c.h.b16 %v1841
    %v2073 = vunpack.c.l.b16 %v1842
    %v2074 = vunpack.c.l.b16 %v1843
    %v2075 = vunpack.c.h.b16 %v1843
    %v2076 = vunpack.c.l.b16 %v1844
    %v2077 = vunpack.c.l.b16 %v1845
    %v2078 = vunpack.c.h.b16 %v1845
    %v2079 = vunpack.c.l.b16 %v1846
    %v2080 = vunpack.c.l.b16 %v1847
    %v2081 = vunpack.c.h.b16 %v1847
    %v2082 = vunpack.c.l.b16 %v1848
    %v2083 = vunpack.c.l.b16 %v1849
    %v2084 = vunpack.c.h.b16 %v1849
    %v2085 = vunpack.c.l.b16 %v1850
    %v2086 = vunpack.c.l.b16 %v1851
    %v2087 = vunpack.c.h.b16 %v1851
    %v2088 = vunpack.c.l.b16 %v1852
    %v2089 = vunpack.c.l.b16 %v1853
    %v2090 = vunpack.c.h.b16 %v1853
    %v2091 = vunpack.c.l.b16 %v1854
    %v2092 = vunpack.c.l.b16 %v1855
    %v2093 = vunpack.c.h.b16 %v1855
    %v2094 = vunpack.c.l.b16 %v1856
    %v2095 = vunpack.c.l.b16 %v1857
    %v2096 = vunpack.c.h.b16 %v1857
    %v2097 = vunpack.c.l.b16 %v1858
    %v2098 = vunpack.c.l.b16 %v1859
    %v2099 = vunpack.c.h.b16 %v1859
    %v2100 = vunpack.c.l.b16 %v1860
    %v2101 = vpack.c.b16 %v1960, %v1957
    %v2102 = vpack.c.b16 %v1961, %v1958
    %v2103 = vpack.c.b16 %v1962, %v1959
    %v2104 = vpack.c.b16 %v1966, %v1963
    %v2105 = vpack.c.b16 %v1967, %v1964
    %v2106 = vpack.c.b16 %v1968, %v1965
    %v2107 = vpack.c.b16 %v1972, %v1969
    %v2108 = vpack.c.b16 %v1973, %v1970
    %v2109 = vpack.c.b16 %v1974, %v1971
    %v2110 = vpack.c.b16 %v1978, %v1975
    %v2111 = vpack.c.b16 %v1979, %v1976
    %v2112 = vpack.c.b16 %v1980, %v1977
    %v2113 = vpack.c.b16 %v1984, %v1981
    %v2114 = vpack.c.b16 %v1985, %v1982
    %v2115 = vpack.c.b16 %v1986, %v1983
    %v2116 = vpack.c.b16 %v1990, %v1987
    %v2117 = vpack.c.b16 %v1991, %v1988
    %v2118 = vpack.c.b16 %v1992, %v1989
    %v2119 = vpack.c.b16 %v1996, %v1993
    %v2120 = vpack.c.b16 %v1997, %v1994
    %v2121 = vpack.c.b16 %v1998, %v1995
    %v2122 = vpack.c.b16 %v2002, %v1999
    %v2123 = vpack.c.b16 %v2003, %v2000
    %v2124 = vpack.c.b16 %v2004, %v2001
    %v2125 = vpack.c.b16 %v2008, %v2005
    %v2126 = vpack.c.b16 %v2009, %v2006
    %v2127 = vpack.c.b16 %v2010, %v2007
    %v2128 = vpack.c.b16 %v2014, %v2011
    %v2129 = vpack.c.b16 %v2015, %v2012
    %v2130 = vpack.c.b16 %v2016, %v2013
    %v2131 = vpack.c.b16 %v2020, %v2017
    %v2132 = vpack.c.b16 %v2021, %v2018
    %v2133 = vpack.c.b16 %v2022, %v2019
    %v2134 = vpack.c.b16 %v2026, %v2023
    %v2135 = vpack.c.b16 %v2027, %v2024
    %v2136 = vpack.c.b16 %v2028, %v2025
    %v2137 = vpack.c.b16 %v2032, %v2029
    %v2138 = vpack.c.b16 %v2033, %v2030
    %v2139 = vpack.c.b16 %v2034, %v2031
    %v2140 = vpack.c.b16 %v2038, %v2035
    %v2141 = vpack.c.b16 %v2039, %v2036
    %v2142 = vpack.c.b16 %v2040, %v2037
    %v2143 = vpack.c.b16 %v2044, %v2041
    %v2144 = vpack.c.b16 %v2045, %v2042
    %v2145 = vpack.c.b16 %v2046, %v2043
    %v2146 = vpack.c.b16 %v2050, %v2047
    %v2147 = vpack.c.b16 %v2051, %v2048
    %v2148 = vpack.c.b16 %v2052, %v2049
    %v2149 = vpack.c.b16 %v2056, %v2053
    %v2150 = vpack.c.b16 %v2057, %v2054
    %v2151 = vpack.c.b16 %v2058, %v2055
    %v2152 = vpack.c.b16 %v2062, %v2059
    %v2153 = vpack.c.b16 %v2063, %v2060
    %v2154 = vpack.c.b16 %v2064, %v2061
    %v2155 = vpack.c.b16 %v2068, %v2065
    %v2156 = vpack.c.b16 %v2069, %v2066
    %v2157 = vpack.c.b16 %v2070, %v2067
    %v2158 = vpack.c.b16 %v2074, %v2071
    %v2159 = vpack.c.b16 %v2075, %v2072
    %v2160 = vpack.c.b16 %v2076, %v2073
    %v2161 = vpack.c.b16 %v2080, %v2077
    %v2162 = vpack.c.b16 %v2081, %v2078
    %v2163 = vpack.c.b16 %v2082, %v2079
    %v2164 = vpack.c.b16 %v2086, %v2083
    %v2165 = vpack.c.b16 %v2087, %v2084
    %v2166 = vpack.c.b16 %v2088, %v2085
    %v2167 = vpack.c.b16 %v2092, %v2089
    %v2168 = vpack.c.b16 %v2093, %v2090
    %v2169 = vpack.c.b16 %v2094, %v2091
    %v2170 = vpack.c.b16 %v2098, %v2095
    %v2171 = vpack.c.b16 %v2099, %v2096
    %v2172 = vpack.c.b16 %v2100, %v2097
    %2245 = vmatprep.subr.bf16.mxu0 %v2123
    %2246 = vmatpush1.bf16.msra.mxu0 %v2122
    %2247 = vmatprep.subr.bf16.mxu0 %v2120
    %2248 = vmatpush1.bf16.msra.mxu0 %v2119
    %2249 = vmatprep.subr.bf16.mxu0 %v2117
    %2250 = vmatpush1.bf16.msra.mxu0 %v2116
    %2251 = vmatprep.subr.bf16.mxu0 %v2114
    %2252 = vmatpush1.bf16.msra.mxu0 %v2113
    %2253 = vmatprep.subr.bf16.mxu0 %v2111
    %2254 = vmatpush1.bf16.msra.mxu0 %v2110
    %2255 = vmatprep.subr.bf16.mxu0 %v2108
    %2256 = vmatpush1.bf16.msra.mxu0 %v2107
    %2257 = vmatprep.subr.bf16.mxu0 %v2105
    %2258 = vmatpush1.bf16.msra.mxu0 %v2104
    %2259 = vmatprep.subr.bf16.mxu0 %v2102
    %2260 = vmatpush1.bf16.msra.mxu0 %v2101
    %2261 = vmatprep.subr.bf16.mxu0 %v2147
    %2262 = vmatpush2.bf16.msra.mxu0 %v2146
    %2263 = vmatprep.subr.bf16.mxu0 %v2144
    %2264 = vmatpush2.bf16.msra.mxu0 %v2143
    %2265 = vmatprep.subr.bf16.mxu0 %v2141
    %2266 = vmatpush2.bf16.msra.mxu0 %v2140
    %2267 = vmatprep.subr.bf16.mxu0 %v2138
    %2268 = vmatpush2.bf16.msra.mxu0 %v2137
    %2269 = vmatprep.subr.bf16.mxu0 %v2135
    %2270 = vmatpush2.bf16.msra.mxu0 %v2134
    %2271 = vmatprep.subr.bf16.mxu0 %v2132
    %2272 = vmatpush2.bf16.msra.mxu0 %v2131
    %2273 = vmatprep.subr.bf16.mxu0 %v2129
    %2274 = vmatpush2.bf16.msra.mxu0 %v2128
    %2275 = vmatprep.subr.bf16.mxu0 %v2126
    %2276 = vmatpush2.bf16.msra.mxu0 %v2125
    %2277 = vmatprep.mubr.bf16.mxu0 %v370
    %2278 = vmatmul.mubr.bf16.gmra.mxu0 %v369
    %v2279 = vpop.f32.mrf.mxu0
    %v2280 = vadd.f32 0.0, %v2279
    %v2281 = vpop.f32.mrf.mxu0
    %v2282 = vadd.f32 0.0, %v2281
    %v2283 = vpop.f32.mrf.mxu0
    %v2284 = vadd.f32 0.0, %v2283
    %v2285 = vpop.f32.mrf.mxu0
    %v2286 = vadd.f32 0.0, %v2285
    %2287 = vmatprep.mubr.bf16.mxu0 %v373
    %2288 = vmatmul.mubr.bf16.gmra.mxu0 %v372
    %v2289 = vpop.f32.mrf.mxu0
    %v2290 = vadd.f32 0.0, %v2289
    %v2291 = vpop.f32.mrf.mxu0
    %v2292 = vadd.f32 0.0, %v2291
    %v2293 = vpop.f32.mrf.mxu0
    %v2294 = vadd.f32 0.0, %v2293
    %v2295 = vpop.f32.mrf.mxu0
    %v2296 = vadd.f32 0.0, %v2295
    %2297 = vmatprep.mubr.bf16.mxu0 %v376
    %2298 = vmatmul.mubr.bf16.gmra.mxu0 %v375
    %v2299 = vpop.f32.mrf.mxu0
    %v2300 = vadd.f32 0.0, %v2299
    %v2301 = vpop.f32.mrf.mxu0
    %v2302 = vadd.f32 0.0, %v2301
    %v2303 = vpop.f32.mrf.mxu0
    %v2304 = vadd.f32 0.0, %v2303
    %v2305 = vpop.f32.mrf.mxu0
    %v2306 = vadd.f32 0.0, %v2305
    %2307 = vmatprep.mubr.bf16.mxu0 %v379
    %2308 = vmatmul.mubr.bf16.gmra.mxu0 %v378
    %v2309 = vpop.f32.mrf.mxu0
    %v2310 = vadd.f32 0.0, %v2309
    %v2311 = vpop.f32.mrf.mxu0
    %v2312 = vadd.f32 0.0, %v2311
    %v2313 = vpop.f32.mrf.mxu0
    %v2314 = vadd.f32 0.0, %v2313
    %v2315 = vpop.f32.mrf.mxu0
    %v2316 = vadd.f32 0.0, %v2315
    %2317 = vdwg.mxu0
    %2318 = vmatprep.subr.bf16.mxu0 %v2171
    %2319 = vmatpush1.bf16.msra.mxu0 %v2170
    %2320 = vmatprep.subr.bf16.mxu0 %v2168
    %2321 = vmatpush1.bf16.msra.mxu0 %v2167
    %2322 = vmatprep.subr.bf16.mxu0 %v2165
    %2323 = vmatpush1.bf16.msra.mxu0 %v2164
    %2324 = vmatprep.subr.bf16.mxu0 %v2162
    %2325 = vmatpush1.bf16.msra.mxu0 %v2161
    %2326 = vmatprep.subr.bf16.mxu0 %v2159
    %2327 = vmatpush1.bf16.msra.mxu0 %v2158
    %2328 = vmatprep.subr.bf16.mxu0 %v2156
    %2329 = vmatpush1.bf16.msra.mxu0 %v2155
    %2330 = vmatprep.subr.bf16.mxu0 %v2153
    %2331 = vmatpush1.bf16.msra.mxu0 %v2152
    %2332 = vmatprep.subr.bf16.mxu0 %v2150
    %2333 = vmatpush1.bf16.msra.mxu0 %v2149
    %2334 = vmatprep.subr.bf16.mxu0 0
    %2335 = vmatpush2.bf16.msra.mxu0 0
    %2336 = vmatprep.subr.bf16.mxu0 0
    %2337 = vmatpush2.bf16.msra.mxu0 0
    %2338 = vmatprep.subr.bf16.mxu0 0
    %2339 = vmatpush2.bf16.msra.mxu0 0
    %2340 = vmatprep.subr.bf16.mxu0 0
    %2341 = vmatpush2.bf16.msra.mxu0 0
    %2342 = vmatprep.subr.bf16.mxu0 0
    %2343 = vmatpush2.bf16.msra.mxu0 0
    %2344 = vmatprep.subr.bf16.mxu0 0
    %2345 = vmatpush2.bf16.msra.mxu0 0
    %2346 = vmatprep.subr.bf16.mxu0 0
    %2347 = vmatpush2.bf16.msra.mxu0 0
    %2348 = vmatprep.subr.bf16.mxu0 0
    %2349 = vmatpush2.bf16.msra.mxu0 0
    %2350 = vmatprep.mubr.bf16.mxu0 0
    %2351 = vmatmul.mubr.bf16.gmra.mxu0 %v371
    %v2352 = vpop.f32.mrf.mxu0
    %v2353 = vadd.f32 %v2280, %v2352
    %v2354 = vpop.f32.mrf.mxu0
    %v2355 = vadd.f32 %v2282, %v2354
    %v2356 = vpop.f32.mrf.mxu0
    %v2357 = vadd.f32 %v2284, %v2356
    %v2358 = vpop.f32.mrf.mxu0
    %v2359 = vadd.f32 %v2286, %v2358
    %2360 = vmatprep.mubr.bf16.mxu0 0
    %2361 = vmatmul.mubr.bf16.gmra.mxu0 %v374
    %v2362 = vpop.f32.mrf.mxu0
    %v2363 = vadd.f32 %v2290, %v2362
    %v2364 = vpop.f32.mrf.mxu0
    %v2365 = vadd.f32 %v2292, %v2364
    %v2366 = vpop.f32.mrf.mxu0
    %v2367 = vadd.f32 %v2294, %v2366
    %v2368 = vpop.f32.mrf.mxu0
    %v2369 = vadd.f32 %v2296, %v2368
    %2370 = vmatprep.mubr.bf16.mxu0 0
    %2371 = vmatmul.mubr.bf16.gmra.mxu0 %v377
    %v2372 = vpop.f32.mrf.mxu0
    %v2373 = vadd.f32 %v2300, %v2372
    %v2374 = vpop.f32.mrf.mxu0
    %v2375 = vadd.f32 %v2302, %v2374
    %v2376 = vpop.f32.mrf.mxu0
    %v2377 = vadd.f32 %v2304, %v2376
    %v2378 = vpop.f32.mrf.mxu0
    %v2379 = vadd.f32 %v2306, %v2378
    %2380 = vmatprep.mubr.bf16.mxu0 0
    %2381 = vmatmul.mubr.bf16.gmra.mxu0 %v380
    %v2382 = vpop.f32.mrf.mxu0
    %v2383 = vadd.f32 %v2310, %v2382
    %v2384 = vpop.f32.mrf.mxu0
    %v2385 = vadd.f32 %v2312, %v2384
    %v2386 = vpop.f32.mrf.mxu0
    %v2387 = vadd.f32 %v2314, %v2386
    %v2388 = vpop.f32.mrf.mxu0
    %v2389 = vadd.f32 %v2316, %v2388
    %2390 = vdwg.mxu0
    %2391 = vmatprep.subr.bf16.mxu0 0
    %2392 = vmatpush1.bf16.msra.mxu0 %v2124
    %2393 = vmatprep.subr.bf16.mxu0 0
    %2394 = vmatpush1.bf16.msra.mxu0 %v2121
    %2395 = vmatprep.subr.bf16.mxu0 0
    %2396 = vmatpush1.bf16.msra.mxu0 %v2118
    %2397 = vmatprep.subr.bf16.mxu0 0
    %2398 = vmatpush1.bf16.msra.mxu0 %v2115
    %2399 = vmatprep.subr.bf16.mxu0 0
    %2400 = vmatpush1.bf16.msra.mxu0 %v2112
    %2401 = vmatprep.subr.bf16.mxu0 0
    %2402 = vmatpush1.bf16.msra.mxu0 %v2109
    %2403 = vmatprep.subr.bf16.mxu0 0
    %2404 = vmatpush1.bf16.msra.mxu0 %v2106
    %2405 = vmatprep.subr.bf16.mxu0 0
    %2406 = vmatpush1.bf16.msra.mxu0 %v2103
    %2407 = vmatprep.subr.bf16.mxu0 0
    %2408 = vmatpush2.bf16.msra.mxu0 %v2148
    %2409 = vmatprep.subr.bf16.mxu0 0
    %2410 = vmatpush2.bf16.msra.mxu0 %v2145
    %2411 = vmatprep.subr.bf16.mxu0 0
    %2412 = vmatpush2.bf16.msra.mxu0 %v2142
    %2413 = vmatprep.subr.bf16.mxu0 0
    %2414 = vmatpush2.bf16.msra.mxu0 %v2139
    %2415 = vmatprep.subr.bf16.mxu0 0
    %2416 = vmatpush2.bf16.msra.mxu0 %v2136
    %2417 = vmatprep.subr.bf16.mxu0 0
    %2418 = vmatpush2.bf16.msra.mxu0 %v2133
    %2419 = vmatprep.subr.bf16.mxu0 0
    %2420 = vmatpush2.bf16.msra.mxu0 %v2130
    %2421 = vmatprep.subr.bf16.mxu0 0
    %2422 = vmatpush2.bf16.msra.mxu0 %v2127
    %2423 = vmatprep.mubr.bf16.mxu0 %v370
    %2424 = vmatmul.mubr.bf16.gmra.mxu0 %v369
    %v2425 = vpop.f32.mrf.mxu0
    %v2426 = vadd.f32 0.0, %v2425
    %v2427 = vpop.f32.mrf.mxu0
    %v2428 = vpop.f32.mrf.mxu0
    %v2429 = vadd.f32 0.0, %v2428
    %v2430 = vpop.f32.mrf.mxu0
    %2431 = vmatprep.mubr.bf16.mxu0 %v373
    %2432 = vmatmul.mubr.bf16.gmra.mxu0 %v372
    %v2433 = vpop.f32.mrf.mxu0
    %v2434 = vadd.f32 0.0, %v2433
    %v2435 = vpop.f32.mrf.mxu0
    %v2436 = vpop.f32.mrf.mxu0
    %v2437 = vadd.f32 0.0, %v2436
    %v2438 = vpop.f32.mrf.mxu0
    %2439 = vmatprep.mubr.bf16.mxu0 %v376
    %2440 = vmatmul.mubr.bf16.gmra.mxu0 %v375
    %v2441 = vpop.f32.mrf.mxu0
    %v2442 = vadd.f32 0.0, %v2441
    %v2443 = vpop.f32.mrf.mxu0
    %v2444 = vpop.f32.mrf.mxu0
    %v2445 = vadd.f32 0.0, %v2444
    %v2446 = vpop.f32.mrf.mxu0
    %2447 = vmatprep.mubr.bf16.mxu0 %v379
    %2448 = vmatmul.mubr.bf16.gmra.mxu0 %v378
    %v2449 = vpop.f32.mrf.mxu0
    %v2450 = vadd.f32 0.0, %v2449
    %v2451 = vpop.f32.mrf.mxu0
    %v2452 = vpop.f32.mrf.mxu0
    %v2453 = vadd.f32 0.0, %v2452
    %v2454 = vpop.f32.mrf.mxu0
    %2455 = vdwg.mxu0
    %2456 = vmatprep.subr.bf16.mxu0 0
    %2457 = vmatpush1.bf16.msra.mxu0 %v2172
    %2458 = vmatprep.subr.bf16.mxu0 0
    %2459 = vmatpush1.bf16.msra.mxu0 %v2169
    %2460 = vmatprep.subr.bf16.mxu0 0
    %2461 = vmatpush1.bf16.msra.mxu0 %v2166
    %2462 = vmatprep.subr.bf16.mxu0 0
    %2463 = vmatpush1.bf16.msra.mxu0 %v2163
    %2464 = vmatprep.subr.bf16.mxu0 0
    %2465 = vmatpush1.bf16.msra.mxu0 %v2160
    %2466 = vmatprep.subr.bf16.mxu0 0
    %2467 = vmatpush1.bf16.msra.mxu0 %v2157
    %2468 = vmatprep.subr.bf16.mxu0 0
    %2469 = vmatpush1.bf16.msra.mxu0 %v2154
    %2470 = vmatprep.subr.bf16.mxu0 0
    %2471 = vmatpush1.bf16.msra.mxu0 %v2151
    %2472 = vmatprep.subr.bf16.mxu0 0
    %2473 = vmatpush2.bf16.msra.mxu0 0
    %2474 = vmatprep.subr.bf16.mxu0 0
    %2475 = vmatpush2.bf16.msra.mxu0 0
    %2476 = vmatprep.subr.bf16.mxu0 0
    %2477 = vmatpush2.bf16.msra.mxu0 0
    %2478 = vmatprep.subr.bf16.mxu0 0
    %2479 = vmatpush2.bf16.msra.mxu0 0
    %2480 = vmatprep.subr.bf16.mxu0 0
    %2481 = vmatpush2.bf16.msra.mxu0 0
    %2482 = vmatprep.subr.bf16.mxu0 0
    %2483 = vmatpush2.bf16.msra.mxu0 0
    %2484 = vmatprep.subr.bf16.mxu0 0
    %2485 = vmatpush2.bf16.msra.mxu0 0
    %2486 = vmatprep.subr.bf16.mxu0 0
    %2487 = vmatpush2.bf16.msra.mxu0 0
    %2488 = vmatprep.mubr.bf16.mxu0 0
    %2489 = vmatmul.mubr.bf16.gmra.mxu0 %v371
    %v2490 = vpop.f32.mrf.mxu0
    %v2491 = vadd.f32 %v2426, %v2490
    %v2492 = vpop.f32.mrf.mxu0
    %v2493 = vpop.f32.mrf.mxu0
    %v2494 = vadd.f32 %v2429, %v2493
    %v2495 = vpop.f32.mrf.mxu0
    %2496 = vmatprep.mubr.bf16.mxu0 0
    %2497 = vmatmul.mubr.bf16.gmra.mxu0 %v374
    %v2498 = vpop.f32.mrf.mxu0
    %v2499 = vadd.f32 %v2434, %v2498
    %v2500 = vpop.f32.mrf.mxu0
    %v2501 = vpop.f32.mrf.mxu0
    %v2502 = vadd.f32 %v2437, %v2501
    %v2503 = vpop.f32.mrf.mxu0
    %2504 = vmatprep.mubr.bf16.mxu0 0
    %2505 = vmatmul.mubr.bf16.gmra.mxu0 %v377
    %v2506 = vpop.f32.mrf.mxu0
    %v2507 = vadd.f32 %v2442, %v2506
    %v2508 = vpop.f32.mrf.mxu0
    %v2509 = vpop.f32.mrf.mxu0
    %v2510 = vadd.f32 %v2445, %v2509
    %v2511 = vpop.f32.mrf.mxu0
    %2512 = vmatprep.mubr.bf16.mxu0 0
    %2513 = vmatmul.mubr.bf16.gmra.mxu0 %v380
    %v2514 = vpop.f32.mrf.mxu0
    %v2515 = vadd.f32 %v2450, %v2514
    %v2516 = vpop.f32.mrf.mxu0
    %v2517 = vpop.f32.mrf.mxu0
    %v2518 = vadd.f32 %v2453, %v2517
    %v2519 = vpop.f32.mrf.mxu0
    %2520 = vdwg.mxu0
    %v2521 = vrot.slane %v2353, 2
    %v2522 = vrot.slane %v2355, 2
    %v2523 = vrot.slane %v2491, 2
    %v2524 = vrot.slane %v2357, 2
    %v2525 = vrot.slane %v2359, 2
    %v2526 = vrot.slane %v2494, 2
    %v2527 = vrot.slane %v2363, 2
    %v2528 = vrot.slane %v2365, 2
    %v2529 = vrot.slane %v2499, 2
    %v2530 = vrot.slane %v2367, 2
    %v2531 = vrot.slane %v2369, 2
    %v2532 = vrot.slane %v2502, 2
    %v2533 = vrot.slane %v2373, 2
    %v2534 = vrot.slane %v2375, 2
    %v2535 = vrot.slane %v2507, 2
    %v2536 = vrot.slane %v2377, 2
    %v2537 = vrot.slane %v2379, 2
    %v2538 = vrot.slane %v2510, 2
    %v2539 = vrot.slane %v2383, 2
    %v2540 = vrot.slane %v2385, 2
    %v2541 = vrot.slane %v2515, 2
    %v2542 = vrot.slane %v2387, 2
    %v2543 = vrot.slane %v2389, 2
    %v2544 = vrot.slane %v2518, 2
    %vm2545 = vcmp.lt.s32.totalorder %v1078, 6
    %v2546 = vsel %vm2545, %v2539, %v2542
    %v2547 = vsel %vm2545, %v2540, %v2543
    %v2548 = vsel %vm2545, %v2541, %v2544
    %v2549 = vsel %vm2545, %v2536, %v2539
    %v2550 = vsel %vm2545, %v2537, %v2540
    %v2551 = vsel %vm2545, %v2538, %v2541
    %v2552 = vsel %vm2545, %v2533, %v2536
    %v2553 = vsel %vm2545, %v2534, %v2537
    %v2554 = vsel %vm2545, %v2535, %v2538
    %v2555 = vsel %vm2545, %v2530, %v2533
    %v2556 = vsel %vm2545, %v2531, %v2534
    %v2557 = vsel %vm2545, %v2532, %v2535
    %v2558 = vsel %vm2545, %v2527, %v2530
    %v2559 = vsel %vm2545, %v2528, %v2531
    %v2560 = vsel %vm2545, %v2529, %v2532
    %v2561 = vsel %vm2545, %v2524, %v2527
    %v2562 = vsel %vm2545, %v2525, %v2528
    %v2563 = vsel %vm2545, %v2526, %v2529
    %v2564 = vsel %vm2545, %v2521, %v2524
    %v2565 = vsel %vm2545, %v2522, %v2525
    %v2566 = vsel %vm2545, %v2523, %v2526
    %v2567 = vsel %vm2545, %v2542, %v2521
    %v2568 = vsel %vm2545, %v2543, %v2522
    %v2569 = vsel %vm2545, %v2544, %v2523
    %v2570 = vadd.f32 %v1596, %v2564
    %v2571 = vadd.f32 %v1598, %v2565
    %v2572 = vadd.f32 %v1734, %v2566
    %v2573 = vadd.f32 %v1600, %v2561
    %v2574 = vadd.f32 %v1602, %v2562
    %v2575 = vadd.f32 %v1737, %v2563
    %v2576 = vadd.f32 %v1606, %v2558
    %v2577 = vadd.f32 %v1608, %v2559
    %v2578 = vadd.f32 %v1742, %v2560
    %v2579 = vadd.f32 %v1610, %v2555
    %v2580 = vadd.f32 %v1612, %v2556
    %v2581 = vadd.f32 %v1745, %v2557
    %v2582 = vadd.f32 %v1616, %v2552
    %v2583 = vadd.f32 %v1618, %v2553
    %v2584 = vadd.f32 %v1750, %v2554
    %v2585 = vadd.f32 %v1620, %v2549
    %v2586 = vadd.f32 %v1622, %v2550
    %v2587 = vadd.f32 %v1753, %v2551
    %v2588 = vadd.f32 %v1626, %v2546
    %v2589 = vadd.f32 %v1628, %v2547
    %v2590 = vadd.f32 %v1758, %v2548
    %v2591 = vadd.f32 %v1630, %v2567
    %v2592 = vadd.f32 %v1632, %v2568
    %v2593 = vadd.f32 %v1761, %v2569
    %s2594 = scalar_lea.vmem [#allocation2], 1728
    %v2595 = vld [vmem:[%s2594] sm:$0xff]
    %v2596 = vld [vmem:[%s2594 + $0x8] sm:$0xf]
    %v2597 = vld [vmem:[%s2594 + $0xc] sm:$0xff]
    %v2598 = vld [vmem:[%s2594 + $0x14] sm:$0xf]
    %v2599 = vld [vmem:[%s2594 + $0x18] sm:$0xff]
    %v2600 = vld [vmem:[%s2594 + $0x20] sm:$0xf]
    %v2601 = vld [vmem:[%s2594 + $0x24] sm:$0xff]
    %v2602 = vld [vmem:[%s2594 + $0x2c] sm:$0xf]
    %v2603 = vld [vmem:[%s2594 + $0x30] sm:$0xff]
    %v2604 = vld [vmem:[%s2594 + $0x38] sm:$0xf]
    %v2605 = vld [vmem:[%s2594 + $0x3c] sm:$0xff]
    %v2606 = vld [vmem:[%s2594 + $0x44] sm:$0xf]
    %v2607 = vld [vmem:[%s2594 + $0x48] sm:$0xff]
    %v2608 = vld [vmem:[%s2594 + $0x50] sm:$0xf]
    %v2609 = vld [vmem:[%s2594 + $0x54] sm:$0xff]
    %v2610 = vld [vmem:[%s2594 + $0x5c] sm:$0xf]
    %v2611 = vld [vmem:[%s2594 + $0x60] sm:$0xff]
    %v2612 = vld [vmem:[%s2594 + $0x68] sm:$0xf]
    %v2613 = vld [vmem:[%s2594 + $0x6c] sm:$0xff]
    %v2614 = vld [vmem:[%s2594 + $0x74] sm:$0xf]
    %v2615 = vld [vmem:[%s2594 + $0x78] sm:$0xff]
    %v2616 = vld [vmem:[%s2594 + $0x80] sm:$0xf]
    %v2617 = vld [vmem:[%s2594 + $0x84] sm:$0xff]
    %v2618 = vld [vmem:[%s2594 + $0x8c] sm:$0xf]
    %v2619 = vld [vmem:[%s2594 + $0x90] sm:$0xff]
    %v2620 = vld [vmem:[%s2594 + $0x98] sm:$0xf]
    %v2621 = vld [vmem:[%s2594 + $0x9c] sm:$0xff]
    %v2622 = vld [vmem:[%s2594 + $0xa4] sm:$0xf]
    %v2623 = vld [vmem:[%s2594 + $0xa8] sm:$0xff]
    %v2624 = vld [vmem:[%s2594 + $0xb0] sm:$0xf]
    %v2625 = vld [vmem:[%s2594 + $0xb4] sm:$0xff]
    %v2626 = vld [vmem:[%s2594 + $0xbc] sm:$0xf]
    %v2627 = vld [vmem:[%s2594 + $0xc0] sm:$0xff]
    %v2628 = vld [vmem:[%s2594 + $0xc8] sm:$0xf]
    %v2629 = vld [vmem:[%s2594 + $0xcc] sm:$0xff]
    %v2630 = vld [vmem:[%s2594 + $0xd4] sm:$0xf]
    %v2631 = vld [vmem:[%s2594 + $0xd8] sm:$0xff]
    %v2632 = vld [vmem:[%s2594 + $0xe0] sm:$0xf]
    %v2633 = vld [vmem:[%s2594 + $0xe4] sm:$0xff]
    %v2634 = vld [vmem:[%s2594 + $0xec] sm:$0xf]
    %v2635 = vld [vmem:[%s2594 + $0xf0] sm:$0xff]
    %v2636 = vld [vmem:[%s2594 + $0xf8] sm:$0xf]
    %v2637 = vld [vmem:[%s2594 + $0xfc] sm:$0xff]
    %v2638 = vld [vmem:[%s2594 + $0x104] sm:$0xf]
    %v2639 = vld [vmem:[%s2594 + $0x108] sm:$0xff]
    %v2640 = vld [vmem:[%s2594 + $0x110] sm:$0xf]
    %v2641 = vld [vmem:[%s2594 + $0x114] sm:$0xff]
    %v2642 = vld [vmem:[%s2594 + $0x11c] sm:$0xf]
    %v2643 = vld [vmem:[%s2594 + $0x120] sm:$0xff]
    %v2644 = vld [vmem:[%s2594 + $0x128] sm:$0xf]
    %v2645 = vld [vmem:[%s2594 + $0x12c] sm:$0xff]
    %v2646 = vld [vmem:[%s2594 + $0x134] sm:$0xf]
    %v2647 = vld [vmem:[%s2594 + $0x138] sm:$0xff]
    %v2648 = vld [vmem:[%s2594 + $0x140] sm:$0xf]
    %v2649 = vld [vmem:[%s2594 + $0x144] sm:$0xff]
    %v2650 = vld [vmem:[%s2594 + $0x14c] sm:$0xf]
    %v2651 = vld [vmem:[%s2594 + $0x150] sm:$0xff]
    %v2652 = vld [vmem:[%s2594 + $0x158] sm:$0xf]
    %v2653 = vld [vmem:[%s2594 + $0x15c] sm:$0xff]
    %v2654 = vld [vmem:[%s2594 + $0x164] sm:$0xf]
    %v2655 = vld [vmem:[%s2594 + $0x168] sm:$0xff]
    %v2656 = vld [vmem:[%s2594 + $0x170] sm:$0xf]
    %v2657 = vld [vmem:[%s2594 + $0x174] sm:$0xff]
    %v2658 = vld [vmem:[%s2594 + $0x17c] sm:$0xf]
    %v2659 = vld [vmem:[%s2594 + $0x180] sm:$0xff]
    %v2660 = vld [vmem:[%s2594 + $0x188] sm:$0xf]
    %v2661 = vld [vmem:[%s2594 + $0x18c] sm:$0xff]
    %v2662 = vld [vmem:[%s2594 + $0x194] sm:$0xf]
    %v2663 = vld [vmem:[%s2594 + $0x198] sm:$0xff]
    %v2664 = vld [vmem:[%s2594 + $0x1a0] sm:$0xf]
    %v2665 = vld [vmem:[%s2594 + $0x1a4] sm:$0xff]
    %v2666 = vld [vmem:[%s2594 + $0x1ac] sm:$0xf]
    %v2667 = vld [vmem:[%s2594 + $0x1b0] sm:$0xff]
    %v2668 = vld [vmem:[%s2594 + $0x1b8] sm:$0xf]
    %v2669 = vld [vmem:[%s2594 + $0x1bc] sm:$0xff]
    %v2670 = vld [vmem:[%s2594 + $0x1c4] sm:$0xf]
    %v2671 = vld [vmem:[%s2594 + $0x1c8] sm:$0xff]
    %v2672 = vld [vmem:[%s2594 + $0x1d0] sm:$0xf]
    %v2673 = vld [vmem:[%s2594 + $0x1d4] sm:$0xff]
    %v2674 = vld [vmem:[%s2594 + $0x1dc] sm:$0xf]
    %v2675 = vld [vmem:[%s2594 + $0x1e0] sm:$0xff]
    %v2676 = vld [vmem:[%s2594 + $0x1e8] sm:$0xf]
    %v2677 = vld [vmem:[%s2594 + $0x1ec] sm:$0xff]
    %v2678 = vld [vmem:[%s2594 + $0x1f4] sm:$0xf]
    %v2679 = vld [vmem:[%s2594 + $0x1f8] sm:$0xff]
    %v2680 = vld [vmem:[%s2594 + $0x200] sm:$0xf]
    %v2681 = vld [vmem:[%s2594 + $0x204] sm:$0xff]
    %v2682 = vld [vmem:[%s2594 + $0x20c] sm:$0xf]
    %v2683 = vld [vmem:[%s2594 + $0x210] sm:$0xff]
    %v2684 = vld [vmem:[%s2594 + $0x218] sm:$0xf]
    %v2685 = vld [vmem:[%s2594 + $0x21c] sm:$0xff]
    %v2686 = vld [vmem:[%s2594 + $0x224] sm:$0xf]
    %v2687 = vld [vmem:[%s2594 + $0x228] sm:$0xff]
    %v2688 = vld [vmem:[%s2594 + $0x230] sm:$0xf]
    %v2689 = vld [vmem:[%s2594 + $0x234] sm:$0xff]
    %v2690 = vld [vmem:[%s2594 + $0x23c] sm:$0xf]
    %v2787 = vunpack.c.l.b16 %v2595
    %v2788 = vunpack.c.h.b16 %v2595
    %v2789 = vunpack.c.l.b16 %v2596
    %v2790 = vunpack.c.l.b16 %v2597
    %v2791 = vunpack.c.h.b16 %v2597
    %v2792 = vunpack.c.l.b16 %v2598
    %v2793 = vunpack.c.l.b16 %v2599
    %v2794 = vunpack.c.h.b16 %v2599
    %v2795 = vunpack.c.l.b16 %v2600
    %v2796 = vunpack.c.l.b16 %v2601
    %v2797 = vunpack.c.h.b16 %v2601
    %v2798 = vunpack.c.l.b16 %v2602
    %v2799 = vunpack.c.l.b16 %v2603
    %v2800 = vunpack.c.h.b16 %v2603
    %v2801 = vunpack.c.l.b16 %v2604
    %v2802 = vunpack.c.l.b16 %v2605
    %v2803 = vunpack.c.h.b16 %v2605
    %v2804 = vunpack.c.l.b16 %v2606
    %v2805 = vunpack.c.l.b16 %v2607
    %v2806 = vunpack.c.h.b16 %v2607
    %v2807 = vunpack.c.l.b16 %v2608
    %v2808 = vunpack.c.l.b16 %v2609
    %v2809 = vunpack.c.h.b16 %v2609
    %v2810 = vunpack.c.l.b16 %v2610
    %v2811 = vunpack.c.l.b16 %v2611
    %v2812 = vunpack.c.h.b16 %v2611
    %v2813 = vunpack.c.l.b16 %v2612
    %v2814 = vunpack.c.l.b16 %v2613
    %v2815 = vunpack.c.h.b16 %v2613
    %v2816 = vunpack.c.l.b16 %v2614
    %v2817 = vunpack.c.l.b16 %v2615
    %v2818 = vunpack.c.h.b16 %v2615
    %v2819 = vunpack.c.l.b16 %v2616
    %v2820 = vunpack.c.l.b16 %v2617
    %v2821 = vunpack.c.h.b16 %v2617
    %v2822 = vunpack.c.l.b16 %v2618
    %v2823 = vunpack.c.l.b16 %v2619
    %v2824 = vunpack.c.h.b16 %v2619
    %v2825 = vunpack.c.l.b16 %v2620
    %v2826 = vunpack.c.l.b16 %v2621
    %v2827 = vunpack.c.h.b16 %v2621
    %v2828 = vunpack.c.l.b16 %v2622
    %v2829 = vunpack.c.l.b16 %v2623
    %v2830 = vunpack.c.h.b16 %v2623
    %v2831 = vunpack.c.l.b16 %v2624
    %v2832 = vunpack.c.l.b16 %v2625
    %v2833 = vunpack.c.h.b16 %v2625
    %v2834 = vunpack.c.l.b16 %v2626
    %v2835 = vunpack.c.l.b16 %v2627
    %v2836 = vunpack.c.h.b16 %v2627
    %v2837 = vunpack.c.l.b16 %v2628
    %v2838 = vunpack.c.l.b16 %v2629
    %v2839 = vunpack.c.h.b16 %v2629
    %v2840 = vunpack.c.l.b16 %v2630
    %v2841 = vunpack.c.l.b16 %v2631
    %v2842 = vunpack.c.h.b16 %v2631
    %v2843 = vunpack.c.l.b16 %v2632
    %v2844 = vunpack.c.l.b16 %v2633
    %v2845 = vunpack.c.h.b16 %v2633
    %v2846 = vunpack.c.l.b16 %v2634
    %v2847 = vunpack.c.l.b16 %v2635
    %v2848 = vunpack.c.h.b16 %v2635
    %v2849 = vunpack.c.l.b16 %v2636
    %v2850 = vunpack.c.l.b16 %v2637
    %v2851 = vunpack.c.h.b16 %v2637
    %v2852 = vunpack.c.l.b16 %v2638
    %v2853 = vunpack.c.l.b16 %v2639
    %v2854 = vunpack.c.h.b16 %v2639
    %v2855 = vunpack.c.l.b16 %v2640
    %v2856 = vunpack.c.l.b16 %v2641
    %v2857 = vunpack.c.h.b16 %v2641
    %v2858 = vunpack.c.l.b16 %v2642
    %v2859 = vunpack.c.l.b16 %v2643
    %v2860 = vunpack.c.h.b16 %v2643
    %v2861 = vunpack.c.l.b16 %v2644
    %v2862 = vunpack.c.l.b16 %v2645
    %v2863 = vunpack.c.h.b16 %v2645
    %v2864 = vunpack.c.l.b16 %v2646
    %v2865 = vunpack.c.l.b16 %v2647
    %v2866 = vunpack.c.h.b16 %v2647
    %v2867 = vunpack.c.l.b16 %v2648
    %v2868 = vunpack.c.l.b16 %v2649
    %v2869 = vunpack.c.h.b16 %v2649
    %v2870 = vunpack.c.l.b16 %v2650
    %v2871 = vunpack.c.l.b16 %v2651
    %v2872 = vunpack.c.h.b16 %v2651
    %v2873 = vunpack.c.l.b16 %v2652
    %v2874 = vunpack.c.l.b16 %v2653
    %v2875 = vunpack.c.h.b16 %v2653
    %v2876 = vunpack.c.l.b16 %v2654
    %v2877 = vunpack.c.l.b16 %v2655
    %v2878 = vunpack.c.h.b16 %v2655
    %v2879 = vunpack.c.l.b16 %v2656
    %v2880 = vunpack.c.l.b16 %v2657
    %v2881 = vunpack.c.h.b16 %v2657
    %v2882 = vunpack.c.l.b16 %v2658
    %v2883 = vunpack.c.l.b16 %v2659
    %v2884 = vunpack.c.h.b16 %v2659
    %v2885 = vunpack.c.l.b16 %v2660
    %v2886 = vunpack.c.l.b16 %v2661
    %v2887 = vunpack.c.h.b16 %v2661
    %v2888 = vunpack.c.l.b16 %v2662
    %v2889 = vunpack.c.l.b16 %v2663
    %v2890 = vunpack.c.h.b16 %v2663
    %v2891 = vunpack.c.l.b16 %v2664
    %v2892 = vunpack.c.l.b16 %v2665
    %v2893 = vunpack.c.h.b16 %v2665
    %v2894 = vunpack.c.l.b16 %v2666
    %v2895 = vunpack.c.l.b16 %v2667
    %v2896 = vunpack.c.h.b16 %v2667
    %v2897 = vunpack.c.l.b16 %v2668
    %v2898 = vunpack.c.l.b16 %v2669
    %v2899 = vunpack.c.h.b16 %v2669
    %v2900 = vunpack.c.l.b16 %v2670
    %v2901 = vunpack.c.l.b16 %v2671
    %v2902 = vunpack.c.h.b16 %v2671
    %v2903 = vunpack.c.l.b16 %v2672
    %v2904 = vunpack.c.l.b16 %v2673
    %v2905 = vunpack.c.h.b16 %v2673
    %v2906 = vunpack.c.l.b16 %v2674
    %v2907 = vunpack.c.l.b16 %v2675
    %v2908 = vunpack.c.h.b16 %v2675
    %v2909 = vunpack.c.l.b16 %v2676
    %v2910 = vunpack.c.l.b16 %v2677
    %v2911 = vunpack.c.h.b16 %v2677
    %v2912 = vunpack.c.l.b16 %v2678
    %v2913 = vunpack.c.l.b16 %v2679
    %v2914 = vunpack.c.h.b16 %v2679
    %v2915 = vunpack.c.l.b16 %v2680
    %v2916 = vunpack.c.l.b16 %v2681
    %v2917 = vunpack.c.h.b16 %v2681
    %v2918 = vunpack.c.l.b16 %v2682
    %v2919 = vunpack.c.l.b16 %v2683
    %v2920 = vunpack.c.h.b16 %v2683
    %v2921 = vunpack.c.l.b16 %v2684
    %v2922 = vunpack.c.l.b16 %v2685
    %v2923 = vunpack.c.h.b16 %v2685
    %v2924 = vunpack.c.l.b16 %v2686
    %v2925 = vunpack.c.l.b16 %v2687
    %v2926 = vunpack.c.h.b16 %v2687
    %v2927 = vunpack.c.l.b16 %v2688
    %v2928 = vunpack.c.l.b16 %v2689
    %v2929 = vunpack.c.h.b16 %v2689
    %v2930 = vunpack.c.l.b16 %v2690
    %v2931 = vpack.c.b16 %v2790, %v2787
    %v2932 = vpack.c.b16 %v2791, %v2788
    %v2933 = vpack.c.b16 %v2792, %v2789
    %v2934 = vpack.c.b16 %v2796, %v2793
    %v2935 = vpack.c.b16 %v2797, %v2794
    %v2936 = vpack.c.b16 %v2798, %v2795
    %v2937 = vpack.c.b16 %v2802, %v2799
    %v2938 = vpack.c.b16 %v2803, %v2800
    %v2939 = vpack.c.b16 %v2804, %v2801
    %v2940 = vpack.c.b16 %v2808, %v2805
    %v2941 = vpack.c.b16 %v2809, %v2806
    %v2942 = vpack.c.b16 %v2810, %v2807
    %v2943 = vpack.c.b16 %v2814, %v2811
    %v2944 = vpack.c.b16 %v2815, %v2812
    %v2945 = vpack.c.b16 %v2816, %v2813
    %v2946 = vpack.c.b16 %v2820, %v2817
    %v2947 = vpack.c.b16 %v2821, %v2818
    %v2948 = vpack.c.b16 %v2822, %v2819
    %v2949 = vpack.c.b16 %v2826, %v2823
    %v2950 = vpack.c.b16 %v2827, %v2824
    %v2951 = vpack.c.b16 %v2828, %v2825
    %v2952 = vpack.c.b16 %v2832, %v2829
    %v2953 = vpack.c.b16 %v2833, %v2830
    %v2954 = vpack.c.b16 %v2834, %v2831
    %v2955 = vpack.c.b16 %v2838, %v2835
    %v2956 = vpack.c.b16 %v2839, %v2836
    %v2957 = vpack.c.b16 %v2840, %v2837
    %v2958 = vpack.c.b16 %v2844, %v2841
    %v2959 = vpack.c.b16 %v2845, %v2842
    %v2960 = vpack.c.b16 %v2846, %v2843
    %v2961 = vpack.c.b16 %v2850, %v2847
    %v2962 = vpack.c.b16 %v2851, %v2848
    %v2963 = vpack.c.b16 %v2852, %v2849
    %v2964 = vpack.c.b16 %v2856, %v2853
    %v2965 = vpack.c.b16 %v2857, %v2854
    %v2966 = vpack.c.b16 %v2858, %v2855
    %v2967 = vpack.c.b16 %v2862, %v2859
    %v2968 = vpack.c.b16 %v2863, %v2860
    %v2969 = vpack.c.b16 %v2864, %v2861
    %v2970 = vpack.c.b16 %v2868, %v2865
    %v2971 = vpack.c.b16 %v2869, %v2866
    %v2972 = vpack.c.b16 %v2870, %v2867
    %v2973 = vpack.c.b16 %v2874, %v2871
    %v2974 = vpack.c.b16 %v2875, %v2872
    %v2975 = vpack.c.b16 %v2876, %v2873
    %v2976 = vpack.c.b16 %v2880, %v2877
    %v2977 = vpack.c.b16 %v2881, %v2878
    %v2978 = vpack.c.b16 %v2882, %v2879
    %v2979 = vpack.c.b16 %v2886, %v2883
    %v2980 = vpack.c.b16 %v2887, %v2884
    %v2981 = vpack.c.b16 %v2888, %v2885
    %v2982 = vpack.c.b16 %v2892, %v2889
    %v2983 = vpack.c.b16 %v2893, %v2890
    %v2984 = vpack.c.b16 %v2894, %v2891
    %v2985 = vpack.c.b16 %v2898, %v2895
    %v2986 = vpack.c.b16 %v2899, %v2896
    %v2987 = vpack.c.b16 %v2900, %v2897
    %v2988 = vpack.c.b16 %v2904, %v2901
    %v2989 = vpack.c.b16 %v2905, %v2902
    %v2990 = vpack.c.b16 %v2906, %v2903
    %v2991 = vpack.c.b16 %v2910, %v2907
    %v2992 = vpack.c.b16 %v2911, %v2908
    %v2993 = vpack.c.b16 %v2912, %v2909
    %v2994 = vpack.c.b16 %v2916, %v2913
    %v2995 = vpack.c.b16 %v2917, %v2914
    %v2996 = vpack.c.b16 %v2918, %v2915
    %v2997 = vpack.c.b16 %v2922, %v2919
    %v2998 = vpack.c.b16 %v2923, %v2920
    %v2999 = vpack.c.b16 %v2924, %v2921
    %v3000 = vpack.c.b16 %v2928, %v2925
    %v3001 = vpack.c.b16 %v2929, %v2926
    %v3002 = vpack.c.b16 %v2930, %v2927
    %3075 = vmatprep.subr.bf16.mxu0 %v2953
    %3076 = vmatpush1.bf16.msra.mxu0 %v2952
    %3077 = vmatprep.subr.bf16.mxu0 %v2950
    %3078 = vmatpush1.bf16.msra.mxu0 %v2949
    %3079 = vmatprep.subr.bf16.mxu0 %v2947
    %3080 = vmatpush1.bf16.msra.mxu0 %v2946
    %3081 = vmatprep.subr.bf16.mxu0 %v2944
    %3082 = vmatpush1.bf16.msra.mxu0 %v2943
    %3083 = vmatprep.subr.bf16.mxu0 %v2941
    %3084 = vmatpush1.bf16.msra.mxu0 %v2940
    %3085 = vmatprep.subr.bf16.mxu0 %v2938
    %3086 = vmatpush1.bf16.msra.mxu0 %v2937
    %3087 = vmatprep.subr.bf16.mxu0 %v2935
    %3088 = vmatpush1.bf16.msra.mxu0 %v2934
    %3089 = vmatprep.subr.bf16.mxu0 %v2932
    %3090 = vmatpush1.bf16.msra.mxu0 %v2931
    %3091 = vmatprep.subr.bf16.mxu0 %v2977
    %3092 = vmatpush2.bf16.msra.mxu0 %v2976
    %3093 = vmatprep.subr.bf16.mxu0 %v2974
    %3094 = vmatpush2.bf16.msra.mxu0 %v2973
    %3095 = vmatprep.subr.bf16.mxu0 %v2971
    %3096 = vmatpush2.bf16.msra.mxu0 %v2970
    %3097 = vmatprep.subr.bf16.mxu0 %v2968
    %3098 = vmatpush2.bf16.msra.mxu0 %v2967
    %3099 = vmatprep.subr.bf16.mxu0 %v2965
    %3100 = vmatpush2.bf16.msra.mxu0 %v2964
    %3101 = vmatprep.subr.bf16.mxu0 %v2962
    %3102 = vmatpush2.bf16.msra.mxu0 %v2961
    %3103 = vmatprep.subr.bf16.mxu0 %v2959
    %3104 = vmatpush2.bf16.msra.mxu0 %v2958
    %3105 = vmatprep.subr.bf16.mxu0 %v2956
    %3106 = vmatpush2.bf16.msra.mxu0 %v2955
    %3107 = vmatprep.mubr.bf16.mxu0 %v370
    %3108 = vmatmul.mubr.bf16.gmra.mxu0 %v369
    %v3109 = vpop.f32.mrf.mxu0
    %v3110 = vadd.f32 0.0, %v3109
    %v3111 = vpop.f32.mrf.mxu0
    %v3112 = vadd.f32 0.0, %v3111
    %v3113 = vpop.f32.mrf.mxu0
    %v3114 = vadd.f32 0.0, %v3113
    %v3115 = vpop.f32.mrf.mxu0
    %v3116 = vadd.f32 0.0, %v3115
    %3117 = vmatprep.mubr.bf16.mxu0 %v373
    %3118 = vmatmul.mubr.bf16.gmra.mxu0 %v372
    %v3119 = vpop.f32.mrf.mxu0
    %v3120 = vadd.f32 0.0, %v3119
    %v3121 = vpop.f32.mrf.mxu0
    %v3122 = vadd.f32 0.0, %v3121
    %v3123 = vpop.f32.mrf.mxu0
    %v3124 = vadd.f32 0.0, %v3123
    %v3125 = vpop.f32.mrf.mxu0
    %v3126 = vadd.f32 0.0, %v3125
    %3127 = vmatprep.mubr.bf16.mxu0 %v376
    %3128 = vmatmul.mubr.bf16.gmra.mxu0 %v375
    %v3129 = vpop.f32.mrf.mxu0
    %v3130 = vadd.f32 0.0, %v3129
    %v3131 = vpop.f32.mrf.mxu0
    %v3132 = vadd.f32 0.0, %v3131
    %v3133 = vpop.f32.mrf.mxu0
    %v3134 = vadd.f32 0.0, %v3133
    %v3135 = vpop.f32.mrf.mxu0
    %v3136 = vadd.f32 0.0, %v3135
    %3137 = vmatprep.mubr.bf16.mxu0 %v379
    %3138 = vmatmul.mubr.bf16.gmra.mxu0 %v378
    %v3139 = vpop.f32.mrf.mxu0
    %v3140 = vadd.f32 0.0, %v3139
    %v3141 = vpop.f32.mrf.mxu0
    %v3142 = vadd.f32 0.0, %v3141
    %v3143 = vpop.f32.mrf.mxu0
    %v3144 = vadd.f32 0.0, %v3143
    %v3145 = vpop.f32.mrf.mxu0
    %v3146 = vadd.f32 0.0, %v3145
    %3147 = vdwg.mxu0
    %3148 = vmatprep.subr.bf16.mxu0 %v3001
    %3149 = vmatpush1.bf16.msra.mxu0 %v3000
    %3150 = vmatprep.subr.bf16.mxu0 %v2998
    %3151 = vmatpush1.bf16.msra.mxu0 %v2997
    %3152 = vmatprep.subr.bf16.mxu0 %v2995
    %3153 = vmatpush1.bf16.msra.mxu0 %v2994
    %3154 = vmatprep.subr.bf16.mxu0 %v2992
    %3155 = vmatpush1.bf16.msra.mxu0 %v2991
    %3156 = vmatprep.subr.bf16.mxu0 %v2989
    %3157 = vmatpush1.bf16.msra.mxu0 %v2988
    %3158 = vmatprep.subr.bf16.mxu0 %v2986
    %3159 = vmatpush1.bf16.msra.mxu0 %v2985
    %3160 = vmatprep.subr.bf16.mxu0 %v2983
    %3161 = vmatpush1.bf16.msra.mxu0 %v2982
    %3162 = vmatprep.subr.bf16.mxu0 %v2980
    %3163 = vmatpush1.bf16.msra.mxu0 %v2979
    %3164 = vmatprep.subr.bf16.mxu0 0
    %3165 = vmatpush2.bf16.msra.mxu0 0
    %3166 = vmatprep.subr.bf16.mxu0 0
    %3167 = vmatpush2.bf16.msra.mxu0 0
    %3168 = vmatprep.subr.bf16.mxu0 0
    %3169 = vmatpush2.bf16.msra.mxu0 0
    %3170 = vmatprep.subr.bf16.mxu0 0
    %3171 = vmatpush2.bf16.msra.mxu0 0
    %3172 = vmatprep.subr.bf16.mxu0 0
    %3173 = vmatpush2.bf16.msra.mxu0 0
    %3174 = vmatprep.subr.bf16.mxu0 0
    %3175 = vmatpush2.bf16.msra.mxu0 0
    %3176 = vmatprep.subr.bf16.mxu0 0
    %3177 = vmatpush2.bf16.msra.mxu0 0
    %3178 = vmatprep.subr.bf16.mxu0 0
    %3179 = vmatpush2.bf16.msra.mxu0 0
    %3180 = vmatprep.mubr.bf16.mxu0 0
    %3181 = vmatmul.mubr.bf16.gmra.mxu0 %v371
    %v3182 = vpop.f32.mrf.mxu0
    %v3183 = vadd.f32 %v3110, %v3182
    %v3184 = vpop.f32.mrf.mxu0
    %v3185 = vadd.f32 %v3112, %v3184
    %v3186 = vpop.f32.mrf.mxu0
    %v3187 = vadd.f32 %v3114, %v3186
    %v3188 = vpop.f32.mrf.mxu0
    %v3189 = vadd.f32 %v3116, %v3188
    %3190 = vmatprep.mubr.bf16.mxu0 0
    %3191 = vmatmul.mubr.bf16.gmra.mxu0 %v374
    %v3192 = vpop.f32.mrf.mxu0
    %v3193 = vadd.f32 %v3120, %v3192
    %v3194 = vpop.f32.mrf.mxu0
    %v3195 = vadd.f32 %v3122, %v3194
    %v3196 = vpop.f32.mrf.mxu0
    %v3197 = vadd.f32 %v3124, %v3196
    %v3198 = vpop.f32.mrf.mxu0
    %v3199 = vadd.f32 %v3126, %v3198
    %3200 = vmatprep.mubr.bf16.mxu0 0
    %3201 = vmatmul.mubr.bf16.gmra.mxu0 %v377
    %v3202 = vpop.f32.mrf.mxu0
    %v3203 = vadd.f32 %v3130, %v3202
    %v3204 = vpop.f32.mrf.mxu0
    %v3205 = vadd.f32 %v3132, %v3204
    %v3206 = vpop.f32.mrf.mxu0
    %v3207 = vadd.f32 %v3134, %v3206
    %v3208 = vpop.f32.mrf.mxu0
    %v3209 = vadd.f32 %v3136, %v3208
    %3210 = vmatprep.mubr.bf16.mxu0 0
    %3211 = vmatmul.mubr.bf16.gmra.mxu0 %v380
    %v3212 = vpop.f32.mrf.mxu0
    %v3213 = vadd.f32 %v3140, %v3212
    %v3214 = vpop.f32.mrf.mxu0
    %v3215 = vadd.f32 %v3142, %v3214
    %v3216 = vpop.f32.mrf.mxu0
    %v3217 = vadd.f32 %v3144, %v3216
    %v3218 = vpop.f32.mrf.mxu0
    %v3219 = vadd.f32 %v3146, %v3218
    %3220 = vdwg.mxu0
    %3221 = vmatprep.subr.bf16.mxu0 0
    %3222 = vmatpush1.bf16.msra.mxu0 %v2954
    %3223 = vmatprep.subr.bf16.mxu0 0
    %3224 = vmatpush1.bf16.msra.mxu0 %v2951
    %3225 = vmatprep.subr.bf16.mxu0 0
    %3226 = vmatpush1.bf16.msra.mxu0 %v2948
    %3227 = vmatprep.subr.bf16.mxu0 0
    %3228 = vmatpush1.bf16.msra.mxu0 %v2945
    %3229 = vmatprep.subr.bf16.mxu0 0
    %3230 = vmatpush1.bf16.msra.mxu0 %v2942
    %3231 = vmatprep.subr.bf16.mxu0 0
    %3232 = vmatpush1.bf16.msra.mxu0 %v2939
    %3233 = vmatprep.subr.bf16.mxu0 0
    %3234 = vmatpush1.bf16.msra.mxu0 %v2936
    %3235 = vmatprep.subr.bf16.mxu0 0
    %3236 = vmatpush1.bf16.msra.mxu0 %v2933
    %3237 = vmatprep.subr.bf16.mxu0 0
    %3238 = vmatpush2.bf16.msra.mxu0 %v2978
    %3239 = vmatprep.subr.bf16.mxu0 0
    %3240 = vmatpush2.bf16.msra.mxu0 %v2975
    %3241 = vmatprep.subr.bf16.mxu0 0
    %3242 = vmatpush2.bf16.msra.mxu0 %v2972
    %3243 = vmatprep.subr.bf16.mxu0 0
    %3244 = vmatpush2.bf16.msra.mxu0 %v2969
    %3245 = vmatprep.subr.bf16.mxu0 0
    %3246 = vmatpush2.bf16.msra.mxu0 %v2966
    %3247 = vmatprep.subr.bf16.mxu0 0
    %3248 = vmatpush2.bf16.msra.mxu0 %v2963
    %3249 = vmatprep.subr.bf16.mxu0 0
    %3250 = vmatpush2.bf16.msra.mxu0 %v2960
    %3251 = vmatprep.subr.bf16.mxu0 0
    %3252 = vmatpush2.bf16.msra.mxu0 %v2957
    %3253 = vmatprep.mubr.bf16.mxu0 %v370
    %3254 = vmatmul.mubr.bf16.gmra.mxu0 %v369
    %v3255 = vpop.f32.mrf.mxu0
    %v3256 = vadd.f32 0.0, %v3255
    %v3257 = vpop.f32.mrf.mxu0
    %v3258 = vpop.f32.mrf.mxu0
    %v3259 = vadd.f32 0.0, %v3258
    %v3260 = vpop.f32.mrf.mxu0
    %3261 = vmatprep.mubr.bf16.mxu0 %v373
    %3262 = vmatmul.mubr.bf16.gmra.mxu0 %v372
    %v3263 = vpop.f32.mrf.mxu0
    %v3264 = vadd.f32 0.0, %v3263
    %v3265 = vpop.f32.mrf.mxu0
    %v3266 = vpop.f32.mrf.mxu0
    %v3267 = vadd.f32 0.0, %v3266
    %v3268 = vpop.f32.mrf.mxu0
    %3269 = vmatprep.mubr.bf16.mxu0 %v376
    %3270 = vmatmul.mubr.bf16.gmra.mxu0 %v375
    %v3271 = vpop.f32.mrf.mxu0
    %v3272 = vadd.f32 0.0, %v3271
    %v3273 = vpop.f32.mrf.mxu0
    %v3274 = vpop.f32.mrf.mxu0
    %v3275 = vadd.f32 0.0, %v3274
    %v3276 = vpop.f32.mrf.mxu0
    %3277 = vmatprep.mubr.bf16.mxu0 %v379
    %3278 = vmatmul.mubr.bf16.gmra.mxu0 %v378
    %v3279 = vpop.f32.mrf.mxu0
    %v3280 = vadd.f32 0.0, %v3279
    %v3281 = vpop.f32.mrf.mxu0
    %v3282 = vpop.f32.mrf.mxu0
    %v3283 = vadd.f32 0.0, %v3282
    %v3284 = vpop.f32.mrf.mxu0
    %3285 = vdwg.mxu0
    %3286 = vmatprep.subr.bf16.mxu0 0
    %3287 = vmatpush1.bf16.msra.mxu0 %v3002
    %3288 = vmatprep.subr.bf16.mxu0 0
    %3289 = vmatpush1.bf16.msra.mxu0 %v2999
    %3290 = vmatprep.subr.bf16.mxu0 0
    %3291 = vmatpush1.bf16.msra.mxu0 %v2996
    %3292 = vmatprep.subr.bf16.mxu0 0
    %3293 = vmatpush1.bf16.msra.mxu0 %v2993
    %3294 = vmatprep.subr.bf16.mxu0 0
    %3295 = vmatpush1.bf16.msra.mxu0 %v2990
    %3296 = vmatprep.subr.bf16.mxu0 0
    %3297 = vmatpush1.bf16.msra.mxu0 %v2987
    %3298 = vmatprep.subr.bf16.mxu0 0
    %3299 = vmatpush1.bf16.msra.mxu0 %v2984
    %3300 = vmatprep.subr.bf16.mxu0 0
    %3301 = vmatpush1.bf16.msra.mxu0 %v2981
    %3302 = vmatprep.subr.bf16.mxu0 0
    %3303 = vmatpush2.bf16.msra.mxu0 0
    %3304 = vmatprep.subr.bf16.mxu0 0
    %3305 = vmatpush2.bf16.msra.mxu0 0
    %3306 = vmatprep.subr.bf16.mxu0 0
    %3307 = vmatpush2.bf16.msra.mxu0 0
    %3308 = vmatprep.subr.bf16.mxu0 0
    %3309 = vmatpush2.bf16.msra.mxu0 0
    %3310 = vmatprep.subr.bf16.mxu0 0
    %3311 = vmatpush2.bf16.msra.mxu0 0
    %3312 = vmatprep.subr.bf16.mxu0 0
    %3313 = vmatpush2.bf16.msra.mxu0 0
    %3314 = vmatprep.subr.bf16.mxu0 0
    %3315 = vmatpush2.bf16.msra.mxu0 0
    %3316 = vmatprep.subr.bf16.mxu0 0
    %3317 = vmatpush2.bf16.msra.mxu0 0
    %3318 = vmatprep.mubr.bf16.mxu0 0
    %3319 = vmatmul.mubr.bf16.gmra.mxu0 %v371
    %v3320 = vpop.f32.mrf.mxu0
    %v3321 = vadd.f32 %v3256, %v3320
    %v3322 = vpop.f32.mrf.mxu0
    %v3323 = vpop.f32.mrf.mxu0
    %v3324 = vadd.f32 %v3259, %v3323
    %v3325 = vpop.f32.mrf.mxu0
    %3326 = vmatprep.mubr.bf16.mxu0 0
    %3327 = vmatmul.mubr.bf16.gmra.mxu0 %v374
    %v3328 = vpop.f32.mrf.mxu0
    %v3329 = vadd.f32 %v3264, %v3328
    %v3330 = vpop.f32.mrf.mxu0
    %v3331 = vpop.f32.mrf.mxu0
    %v3332 = vadd.f32 %v3267, %v3331
    %v3333 = vpop.f32.mrf.mxu0
    %3334 = vmatprep.mubr.bf16.mxu0 0
    %3335 = vmatmul.mubr.bf16.gmra.mxu0 %v377
    %v3336 = vpop.f32.mrf.mxu0
    %v3337 = vadd.f32 %v3272, %v3336
    %v3338 = vpop.f32.mrf.mxu0
    %v3339 = vpop.f32.mrf.mxu0
    %v3340 = vadd.f32 %v3275, %v3339
    %v3341 = vpop.f32.mrf.mxu0
    %3342 = vmatprep.mubr.bf16.mxu0 0
    %3343 = vmatmul.mubr.bf16.gmra.mxu0 %v380
    %v3344 = vpop.f32.mrf.mxu0
    %v3345 = vadd.f32 %v3280, %v3344
    %v3346 = vpop.f32.mrf.mxu0
    %v3347 = vpop.f32.mrf.mxu0
    %v3348 = vadd.f32 %v3283, %v3347
    %v3349 = vpop.f32.mrf.mxu0
    %3350 = vdwg.mxu0
    %v3351 = vrot.slane %v3183, 3
    %v3352 = vrot.slane %v3185, 3
    %v3353 = vrot.slane %v3321, 3
    %v3354 = vrot.slane %v3187, 3
    %v3355 = vrot.slane %v3189, 3
    %v3356 = vrot.slane %v3324, 3
    %v3357 = vrot.slane %v3193, 3
    %v3358 = vrot.slane %v3195, 3
    %v3359 = vrot.slane %v3329, 3
    %v3360 = vrot.slane %v3197, 3
    %v3361 = vrot.slane %v3199, 3
    %v3362 = vrot.slane %v3332, 3
    %v3363 = vrot.slane %v3203, 3
    %v3364 = vrot.slane %v3205, 3
    %v3365 = vrot.slane %v3337, 3
    %v3366 = vrot.slane %v3207, 3
    %v3367 = vrot.slane %v3209, 3
    %v3368 = vrot.slane %v3340, 3
    %v3369 = vrot.slane %v3213, 3
    %v3370 = vrot.slane %v3215, 3
    %v3371 = vrot.slane %v3345, 3
    %v3372 = vrot.slane %v3217, 3
    %v3373 = vrot.slane %v3219, 3
    %v3374 = vrot.slane %v3348, 3
    %vm3375 = vcmp.lt.s32.totalorder %v1078, 5
    %v3376 = vsel %vm3375, %v3369, %v3372
    %v3377 = vsel %vm3375, %v3370, %v3373
    %v3378 = vsel %vm3375, %v3371, %v3374
    %v3379 = vsel %vm3375, %v3366, %v3369
    %v3380 = vsel %vm3375, %v3367, %v3370
    %v3381 = vsel %vm3375, %v3368, %v3371
    %v3382 = vsel %vm3375, %v3363, %v3366
    %v3383 = vsel %vm3375, %v3364, %v3367
    %v3384 = vsel %vm3375, %v3365, %v3368
    %v3385 = vsel %vm3375, %v3360, %v3363
    %v3386 = vsel %vm3375, %v3361, %v3364
    %v3387 = vsel %vm3375, %v3362, %v3365
    %v3388 = vsel %vm3375, %v3357, %v3360
    %v3389 = vsel %vm3375, %v3358, %v3361
    %v3390 = vsel %vm3375, %v3359, %v3362
    %v3391 = vsel %vm3375, %v3354, %v3357
    %v3392 = vsel %vm3375, %v3355, %v3358
    %v3393 = vsel %vm3375, %v3356, %v3359
    %v3394 = vsel %vm3375, %v3351, %v3354
    %v3395 = vsel %vm3375, %v3352, %v3355
    %v3396 = vsel %vm3375, %v3353, %v3356
    %v3397 = vsel %vm3375, %v3372, %v3351
    %v3398 = vsel %vm3375, %v3373, %v3352
    %v3399 = vsel %vm3375, %v3374, %v3353
    %v3400 = vadd.f32 %v2570, %v3394
    %v3401 = vadd.f32 %v2571, %v3395
    %v3402 = vadd.f32 %v2572, %v3396
    %v3403 = vadd.f32 %v2573, %v3391
    %v3404 = vadd.f32 %v2574, %v3392
    %v3405 = vadd.f32 %v2575, %v3393
    %v3406 = vadd.f32 %v2576, %v3388
    %v3407 = vadd.f32 %v2577, %v3389
    %v3408 = vadd.f32 %v2578, %v3390
    %v3409 = vadd.f32 %v2579, %v3385
    %v3410 = vadd.f32 %v2580, %v3386
    %v3411 = vadd.f32 %v2581, %v3387
    %v3412 = vadd.f32 %v2582, %v3382
    %v3413 = vadd.f32 %v2583, %v3383
    %v3414 = vadd.f32 %v2584, %v3384
    %v3415 = vadd.f32 %v2585, %v3379
    %v3416 = vadd.f32 %v2586, %v3380
    %v3417 = vadd.f32 %v2587, %v3381
    %v3418 = vadd.f32 %v2588, %v3376
    %v3419 = vadd.f32 %v2589, %v3377
    %v3420 = vadd.f32 %v2590, %v3378
    %v3421 = vadd.f32 %v2591, %v3397
    %v3422 = vadd.f32 %v2592, %v3398
    %v3423 = vadd.f32 %v2593, %v3399
    %s3424 = scalar_lea.vmem [#allocation2], 2304
    %v3425 = vld [vmem:[%s3424] sm:$0xff]
    %v3426 = vld [vmem:[%s3424 + $0x8] sm:$0xf]
    %v3427 = vld [vmem:[%s3424 + $0xc] sm:$0xff]
    %v3428 = vld [vmem:[%s3424 + $0x14] sm:$0xf]
    %v3429 = vld [vmem:[%s3424 + $0x18] sm:$0xff]
    %v3430 = vld [vmem:[%s3424 + $0x20] sm:$0xf]
    %v3431 = vld [vmem:[%s3424 + $0x24] sm:$0xff]
    %v3432 = vld [vmem:[%s3424 + $0x2c] sm:$0xf]
    %v3433 = vld [vmem:[%s3424 + $0x30] sm:$0xff]
    %v3434 = vld [vmem:[%s3424 + $0x38] sm:$0xf]
    %v3435 = vld [vmem:[%s3424 + $0x3c] sm:$0xff]
    %v3436 = vld [vmem:[%s3424 + $0x44] sm:$0xf]
    %v3437 = vld [vmem:[%s3424 + $0x48] sm:$0xff]
    %v3438 = vld [vmem:[%s3424 + $0x50] sm:$0xf]
    %v3439 = vld [vmem:[%s3424 + $0x54] sm:$0xff]
    %v3440 = vld [vmem:[%s3424 + $0x5c] sm:$0xf]
    %v3441 = vld [vmem:[%s3424 + $0x60] sm:$0xff]
    %v3442 = vld [vmem:[%s3424 + $0x68] sm:$0xf]
    %v3443 = vld [vmem:[%s3424 + $0x6c] sm:$0xff]
    %v3444 = vld [vmem:[%s3424 + $0x74] sm:$0xf]
    %v3445 = vld [vmem:[%s3424 + $0x78] sm:$0xff]
    %v3446 = vld [vmem:[%s3424 + $0x80] sm:$0xf]
    %v3447 = vld [vmem:[%s3424 + $0x84] sm:$0xff]
    %v3448 = vld [vmem:[%s3424 + $0x8c] sm:$0xf]
    %v3449 = vld [vmem:[%s3424 + $0x90] sm:$0xff]
    %v3450 = vld [vmem:[%s3424 + $0x98] sm:$0xf]
    %v3451 = vld [vmem:[%s3424 + $0x9c] sm:$0xff]
    %v3452 = vld [vmem:[%s3424 + $0xa4] sm:$0xf]
    %v3453 = vld [vmem:[%s3424 + $0xa8] sm:$0xff]
    %v3454 = vld [vmem:[%s3424 + $0xb0] sm:$0xf]
    %v3455 = vld [vmem:[%s3424 + $0xb4] sm:$0xff]
    %v3456 = vld [vmem:[%s3424 + $0xbc] sm:$0xf]
    %v3457 = vld [vmem:[%s3424 + $0xc0] sm:$0xff]
    %v3458 = vld [vmem:[%s3424 + $0xc8] sm:$0xf]
    %v3459 = vld [vmem:[%s3424 + $0xcc] sm:$0xff]
    %v3460 = vld [vmem:[%s3424 + $0xd4] sm:$0xf]
    %v3461 = vld [vmem:[%s3424 + $0xd8] sm:$0xff]
    %v3462 = vld [vmem:[%s3424 + $0xe0] sm:$0xf]
    %v3463 = vld [vmem:[%s3424 + $0xe4] sm:$0xff]
    %v3464 = vld [vmem:[%s3424 + $0xec] sm:$0xf]
    %v3465 = vld [vmem:[%s3424 + $0xf0] sm:$0xff]
    %v3466 = vld [vmem:[%s3424 + $0xf8] sm:$0xf]
    %v3467 = vld [vmem:[%s3424 + $0xfc] sm:$0xff]
    %v3468 = vld [vmem:[%s3424 + $0x104] sm:$0xf]
    %v3469 = vld [vmem:[%s3424 + $0x108] sm:$0xff]
    %v3470 = vld [vmem:[%s3424 + $0x110] sm:$0xf]
    %v3471 = vld [vmem:[%s3424 + $0x114] sm:$0xff]
    %v3472 = vld [vmem:[%s3424 + $0x11c] sm:$0xf]
    %v3473 = vld [vmem:[%s3424 + $0x120] sm:$0xff]
    %v3474 = vld [vmem:[%s3424 + $0x128] sm:$0xf]
    %v3475 = vld [vmem:[%s3424 + $0x12c] sm:$0xff]
    %v3476 = vld [vmem:[%s3424 + $0x134] sm:$0xf]
    %v3477 = vld [vmem:[%s3424 + $0x138] sm:$0xff]
    %v3478 = vld [vmem:[%s3424 + $0x140] sm:$0xf]
    %v3479 = vld [vmem:[%s3424 + $0x144] sm:$0xff]
    %v3480 = vld [vmem:[%s3424 + $0x14c] sm:$0xf]
    %v3481 = vld [vmem:[%s3424 + $0x150] sm:$0xff]
    %v3482 = vld [vmem:[%s3424 + $0x158] sm:$0xf]
    %v3483 = vld [vmem:[%s3424 + $0x15c] sm:$0xff]
    %v3484 = vld [vmem:[%s3424 + $0x164] sm:$0xf]
    %v3485 = vld [vmem:[%s3424 + $0x168] sm:$0xff]
    %v3486 = vld [vmem:[%s3424 + $0x170] sm:$0xf]
    %v3487 = vld [vmem:[%s3424 + $0x174] sm:$0xff]
    %v3488 = vld [vmem:[%s3424 + $0x17c] sm:$0xf]
    %v3489 = vld [vmem:[%s3424 + $0x180] sm:$0xff]
    %v3490 = vld [vmem:[%s3424 + $0x188] sm:$0xf]
    %v3491 = vld [vmem:[%s3424 + $0x18c] sm:$0xff]
    %v3492 = vld [vmem:[%s3424 + $0x194] sm:$0xf]
    %v3493 = vld [vmem:[%s3424 + $0x198] sm:$0xff]
    %v3494 = vld [vmem:[%s3424 + $0x1a0] sm:$0xf]
    %v3495 = vld [vmem:[%s3424 + $0x1a4] sm:$0xff]
    %v3496 = vld [vmem:[%s3424 + $0x1ac] sm:$0xf]
    %v3497 = vld [vmem:[%s3424 + $0x1b0] sm:$0xff]
    %v3498 = vld [vmem:[%s3424 + $0x1b8] sm:$0xf]
    %v3499 = vld [vmem:[%s3424 + $0x1bc] sm:$0xff]
    %v3500 = vld [vmem:[%s3424 + $0x1c4] sm:$0xf]
    %v3501 = vld [vmem:[%s3424 + $0x1c8] sm:$0xff]
    %v3502 = vld [vmem:[%s3424 + $0x1d0] sm:$0xf]
    %v3503 = vld [vmem:[%s3424 + $0x1d4] sm:$0xff]
    %v3504 = vld [vmem:[%s3424 + $0x1dc] sm:$0xf]
    %v3505 = vld [vmem:[%s3424 + $0x1e0] sm:$0xff]
    %v3506 = vld [vmem:[%s3424 + $0x1e8] sm:$0xf]
    %v3507 = vld [vmem:[%s3424 + $0x1ec] sm:$0xff]
    %v3508 = vld [vmem:[%s3424 + $0x1f4] sm:$0xf]
    %v3509 = vld [vmem:[%s3424 + $0x1f8] sm:$0xff]
    %v3510 = vld [vmem:[%s3424 + $0x200] sm:$0xf]
    %v3511 = vld [vmem:[%s3424 + $0x204] sm:$0xff]
    %v3512 = vld [vmem:[%s3424 + $0x20c] sm:$0xf]
    %v3513 = vld [vmem:[%s3424 + $0x210] sm:$0xff]
    %v3514 = vld [vmem:[%s3424 + $0x218] sm:$0xf]
    %v3515 = vld [vmem:[%s3424 + $0x21c] sm:$0xff]
    %v3516 = vld [vmem:[%s3424 + $0x224] sm:$0xf]
    %v3517 = vld [vmem:[%s3424 + $0x228] sm:$0xff]
    %v3518 = vld [vmem:[%s3424 + $0x230] sm:$0xf]
    %v3519 = vld [vmem:[%s3424 + $0x234] sm:$0xff]
    %v3520 = vld [vmem:[%s3424 + $0x23c] sm:$0xf]
    %v3617 = vunpack.c.l.b16 %v3425
    %v3618 = vunpack.c.h.b16 %v3425
    %v3619 = vunpack.c.l.b16 %v3426
    %v3620 = vunpack.c.l.b16 %v3427
    %v3621 = vunpack.c.h.b16 %v3427
    %v3622 = vunpack.c.l.b16 %v3428
    %v3623 = vunpack.c.l.b16 %v3429
    %v3624 = vunpack.c.h.b16 %v3429
    %v3625 = vunpack.c.l.b16 %v3430
    %v3626 = vunpack.c.l.b16 %v3431
    %v3627 = vunpack.c.h.b16 %v3431
    %v3628 = vunpack.c.l.b16 %v3432
    %v3629 = vunpack.c.l.b16 %v3433
    %v3630 = vunpack.c.h.b16 %v3433
    %v3631 = vunpack.c.l.b16 %v3434
    %v3632 = vunpack.c.l.b16 %v3435
    %v3633 = vunpack.c.h.b16 %v3435
    %v3634 = vunpack.c.l.b16 %v3436
    %v3635 = vunpack.c.l.b16 %v3437
    %v3636 = vunpack.c.h.b16 %v3437
    %v3637 = vunpack.c.l.b16 %v3438
    %v3638 = vunpack.c.l.b16 %v3439
    %v3639 = vunpack.c.h.b16 %v3439
    %v3640 = vunpack.c.l.b16 %v3440
    %v3641 = vunpack.c.l.b16 %v3441
    %v3642 = vunpack.c.h.b16 %v3441
    %v3643 = vunpack.c.l.b16 %v3442
    %v3644 = vunpack.c.l.b16 %v3443
    %v3645 = vunpack.c.h.b16 %v3443
    %v3646 = vunpack.c.l.b16 %v3444
    %v3647 = vunpack.c.l.b16 %v3445
    %v3648 = vunpack.c.h.b16 %v3445
    %v3649 = vunpack.c.l.b16 %v3446
    %v3650 = vunpack.c.l.b16 %v3447
    %v3651 = vunpack.c.h.b16 %v3447
    %v3652 = vunpack.c.l.b16 %v3448
    %v3653 = vunpack.c.l.b16 %v3449
    %v3654 = vunpack.c.h.b16 %v3449
    %v3655 = vunpack.c.l.b16 %v3450
    %v3656 = vunpack.c.l.b16 %v3451
    %v3657 = vunpack.c.h.b16 %v3451
    %v3658 = vunpack.c.l.b16 %v3452
    %v3659 = vunpack.c.l.b16 %v3453
    %v3660 = vunpack.c.h.b16 %v3453
    %v3661 = vunpack.c.l.b16 %v3454
    %v3662 = vunpack.c.l.b16 %v3455
    %v3663 = vunpack.c.h.b16 %v3455
    %v3664 = vunpack.c.l.b16 %v3456
    %v3665 = vunpack.c.l.b16 %v3457
    %v3666 = vunpack.c.h.b16 %v3457
    %v3667 = vunpack.c.l.b16 %v3458
    %v3668 = vunpack.c.l.b16 %v3459
    %v3669 = vunpack.c.h.b16 %v3459
    %v3670 = vunpack.c.l.b16 %v3460
    %v3671 = vunpack.c.l.b16 %v3461
    %v3672 = vunpack.c.h.b16 %v3461
    %v3673 = vunpack.c.l.b16 %v3462
    %v3674 = vunpack.c.l.b16 %v3463
    %v3675 = vunpack.c.h.b16 %v3463
    %v3676 = vunpack.c.l.b16 %v3464
    %v3677 = vunpack.c.l.b16 %v3465
    %v3678 = vunpack.c.h.b16 %v3465
    %v3679 = vunpack.c.l.b16 %v3466
    %v3680 = vunpack.c.l.b16 %v3467
    %v3681 = vunpack.c.h.b16 %v3467
    %v3682 = vunpack.c.l.b16 %v3468
    %v3683 = vunpack.c.l.b16 %v3469
    %v3684 = vunpack.c.h.b16 %v3469
    %v3685 = vunpack.c.l.b16 %v3470
    %v3686 = vunpack.c.l.b16 %v3471
    %v3687 = vunpack.c.h.b16 %v3471
    %v3688 = vunpack.c.l.b16 %v3472
    %v3689 = vunpack.c.l.b16 %v3473
    %v3690 = vunpack.c.h.b16 %v3473
    %v3691 = vunpack.c.l.b16 %v3474
    %v3692 = vunpack.c.l.b16 %v3475
    %v3693 = vunpack.c.h.b16 %v3475
    %v3694 = vunpack.c.l.b16 %v3476
    %v3695 = vunpack.c.l.b16 %v3477
    %v3696 = vunpack.c.h.b16 %v3477
    %v3697 = vunpack.c.l.b16 %v3478
    %v3698 = vunpack.c.l.b16 %v3479
    %v3699 = vunpack.c.h.b16 %v3479
    %v3700 = vunpack.c.l.b16 %v3480
    %v3701 = vunpack.c.l.b16 %v3481
    %v3702 = vunpack.c.h.b16 %v3481
    %v3703 = vunpack.c.l.b16 %v3482
    %v3704 = vunpack.c.l.b16 %v3483
    %v3705 = vunpack.c.h.b16 %v3483
    %v3706 = vunpack.c.l.b16 %v3484
    %v3707 = vunpack.c.l.b16 %v3485
    %v3708 = vunpack.c.h.b16 %v3485
    %v3709 = vunpack.c.l.b16 %v3486
    %v3710 = vunpack.c.l.b16 %v3487
    %v3711 = vunpack.c.h.b16 %v3487
    %v3712 = vunpack.c.l.b16 %v3488
    %v3713 = vunpack.c.l.b16 %v3489
    %v3714 = vunpack.c.h.b16 %v3489
    %v3715 = vunpack.c.l.b16 %v3490
    %v3716 = vunpack.c.l.b16 %v3491
    %v3717 = vunpack.c.h.b16 %v3491
    %v3718 = vunpack.c.l.b16 %v3492
    %v3719 = vunpack.c.l.b16 %v3493
    %v3720 = vunpack.c.h.b16 %v3493
    %v3721 = vunpack.c.l.b16 %v3494
    %v3722 = vunpack.c.l.b16 %v3495
    %v3723 = vunpack.c.h.b16 %v3495
    %v3724 = vunpack.c.l.b16 %v3496
    %v3725 = vunpack.c.l.b16 %v3497
    %v3726 = vunpack.c.h.b16 %v3497
    %v3727 = vunpack.c.l.b16 %v3498
    %v3728 = vunpack.c.l.b16 %v3499
    %v3729 = vunpack.c.h.b16 %v3499
    %v3730 = vunpack.c.l.b16 %v3500
    %v3731 = vunpack.c.l.b16 %v3501
    %v3732 = vunpack.c.h.b16 %v3501
    %v3733 = vunpack.c.l.b16 %v3502
    %v3734 = vunpack.c.l.b16 %v3503
    %v3735 = vunpack.c.h.b16 %v3503
    %v3736 = vunpack.c.l.b16 %v3504
    %v3737 = vunpack.c.l.b16 %v3505
    %v3738 = vunpack.c.h.b16 %v3505
    %v3739 = vunpack.c.l.b16 %v3506
    %v3740 = vunpack.c.l.b16 %v3507
    %v3741 = vunpack.c.h.b16 %v3507
    %v3742 = vunpack.c.l.b16 %v3508
    %v3743 = vunpack.c.l.b16 %v3509
    %v3744 = vunpack.c.h.b16 %v3509
    %v3745 = vunpack.c.l.b16 %v3510
    %v3746 = vunpack.c.l.b16 %v3511
    %v3747 = vunpack.c.h.b16 %v3511
    %v3748 = vunpack.c.l.b16 %v3512
    %v3749 = vunpack.c.l.b16 %v3513
    %v3750 = vunpack.c.h.b16 %v3513
    %v3751 = vunpack.c.l.b16 %v3514
    %v3752 = vunpack.c.l.b16 %v3515
    %v3753 = vunpack.c.h.b16 %v3515
    %v3754 = vunpack.c.l.b16 %v3516
    %v3755 = vunpack.c.l.b16 %v3517
    %v3756 = vunpack.c.h.b16 %v3517
    %v3757 = vunpack.c.l.b16 %v3518
    %v3758 = vunpack.c.l.b16 %v3519
    %v3759 = vunpack.c.h.b16 %v3519
    %v3760 = vunpack.c.l.b16 %v3520
    %v3761 = vpack.c.b16 %v3620, %v3617
    %v3762 = vpack.c.b16 %v3621, %v3618
    %v3763 = vpack.c.b16 %v3622, %v3619
    %v3764 = vpack.c.b16 %v3626, %v3623
    %v3765 = vpack.c.b16 %v3627, %v3624
    %v3766 = vpack.c.b16 %v3628, %v3625
    %v3767 = vpack.c.b16 %v3632, %v3629
    %v3768 = vpack.c.b16 %v3633, %v3630
    %v3769 = vpack.c.b16 %v3634, %v3631
    %v3770 = vpack.c.b16 %v3638, %v3635
    %v3771 = vpack.c.b16 %v3639, %v3636
    %v3772 = vpack.c.b16 %v3640, %v3637
    %v3773 = vpack.c.b16 %v3644, %v3641
    %v3774 = vpack.c.b16 %v3645, %v3642
    %v3775 = vpack.c.b16 %v3646, %v3643
    %v3776 = vpack.c.b16 %v3650, %v3647
    %v3777 = vpack.c.b16 %v3651, %v3648
    %v3778 = vpack.c.b16 %v3652, %v3649
    %v3779 = vpack.c.b16 %v3656, %v3653
    %v3780 = vpack.c.b16 %v3657, %v3654
    %v3781 = vpack.c.b16 %v3658, %v3655
    %v3782 = vpack.c.b16 %v3662, %v3659
    %v3783 = vpack.c.b16 %v3663, %v3660
    %v3784 = vpack.c.b16 %v3664, %v3661
    %v3785 = vpack.c.b16 %v3668, %v3665
    %v3786 = vpack.c.b16 %v3669, %v3666
    %v3787 = vpack.c.b16 %v3670, %v3667
    %v3788 = vpack.c.b16 %v3674, %v3671
    %v3789 = vpack.c.b16 %v3675, %v3672
    %v3790 = vpack.c.b16 %v3676, %v3673
    %v3791 = vpack.c.b16 %v3680, %v3677
    %v3792 = vpack.c.b16 %v3681, %v3678
    %v3793 = vpack.c.b16 %v3682, %v3679
    %v3794 = vpack.c.b16 %v3686, %v3683
    %v3795 = vpack.c.b16 %v3687, %v3684
    %v3796 = vpack.c.b16 %v3688, %v3685
    %v3797 = vpack.c.b16 %v3692, %v3689
    %v3798 = vpack.c.b16 %v3693, %v3690
    %v3799 = vpack.c.b16 %v3694, %v3691
    %v3800 = vpack.c.b16 %v3698, %v3695
    %v3801 = vpack.c.b16 %v3699, %v3696
    %v3802 = vpack.c.b16 %v3700, %v3697
    %v3803 = vpack.c.b16 %v3704, %v3701
    %v3804 = vpack.c.b16 %v3705, %v3702
    %v3805 = vpack.c.b16 %v3706, %v3703
    %v3806 = vpack.c.b16 %v3710, %v3707
    %v3807 = vpack.c.b16 %v3711, %v3708
    %v3808 = vpack.c.b16 %v3712, %v3709
    %v3809 = vpack.c.b16 %v3716, %v3713
    %v3810 = vpack.c.b16 %v3717, %v3714
    %v3811 = vpack.c.b16 %v3718, %v3715
    %v3812 = vpack.c.b16 %v3722, %v3719
    %v3813 = vpack.c.b16 %v3723, %v3720
    %v3814 = vpack.c.b16 %v3724, %v3721
    %v3815 = vpack.c.b16 %v3728, %v3725
    %v3816 = vpack.c.b16 %v3729, %v3726
    %v3817 = vpack.c.b16 %v3730, %v3727
    %v3818 = vpack.c.b16 %v3734, %v3731
    %v3819 = vpack.c.b16 %v3735, %v3732
    %v3820 = vpack.c.b16 %v3736, %v3733
    %v3821 = vpack.c.b16 %v3740, %v3737
    %v3822 = vpack.c.b16 %v3741, %v3738
    %v3823 = vpack.c.b16 %v3742, %v3739
    %v3824 = vpack.c.b16 %v3746, %v3743
    %v3825 = vpack.c.b16 %v3747, %v3744
    %v3826 = vpack.c.b16 %v3748, %v3745
    %v3827 = vpack.c.b16 %v3752, %v3749
    %v3828 = vpack.c.b16 %v3753, %v3750
    %v3829 = vpack.c.b16 %v3754, %v3751
    %v3830 = vpack.c.b16 %v3758, %v3755
    %v3831 = vpack.c.b16 %v3759, %v3756
    %v3832 = vpack.c.b16 %v3760, %v3757
    %3905 = vmatprep.subr.bf16.mxu0 %v3783
    %3906 = vmatpush1.bf16.msra.mxu0 %v3782
    %3907 = vmatprep.subr.bf16.mxu0 %v3780
    %3908 = vmatpush1.bf16.msra.mxu0 %v3779
    %3909 = vmatprep.subr.bf16.mxu0 %v3777
    %3910 = vmatpush1.bf16.msra.mxu0 %v3776
    %3911 = vmatprep.subr.bf16.mxu0 %v3774
    %3912 = vmatpush1.bf16.msra.mxu0 %v3773
    %3913 = vmatprep.subr.bf16.mxu0 %v3771
    %3914 = vmatpush1.bf16.msra.mxu0 %v3770
    %3915 = vmatprep.subr.bf16.mxu0 %v3768
    %3916 = vmatpush1.bf16.msra.mxu0 %v3767
    %3917 = vmatprep.subr.bf16.mxu0 %v3765
    %3918 = vmatpush1.bf16.msra.mxu0 %v3764
    %3919 = vmatprep.subr.bf16.mxu0 %v3762
    %3920 = vmatpush1.bf16.msra.mxu0 %v3761
    %3921 = vmatprep.subr.bf16.mxu0 %v3807
    %3922 = vmatpush2.bf16.msra.mxu0 %v3806
    %3923 = vmatprep.subr.bf16.mxu0 %v3804
    %3924 = vmatpush2.bf16.msra.mxu0 %v3803
    %3925 = vmatprep.subr.bf16.mxu0 %v3801
    %3926 = vmatpush2.bf16.msra.mxu0 %v3800
    %3927 = vmatprep.subr.bf16.mxu0 %v3798
    %3928 = vmatpush2.bf16.msra.mxu0 %v3797
    %3929 = vmatprep.subr.bf16.mxu0 %v3795
    %3930 = vmatpush2.bf16.msra.mxu0 %v3794
    %3931 = vmatprep.subr.bf16.mxu0 %v3792
    %3932 = vmatpush2.bf16.msra.mxu0 %v3791
    %3933 = vmatprep.subr.bf16.mxu0 %v3789
    %3934 = vmatpush2.bf16.msra.mxu0 %v3788
    %3935 = vmatprep.subr.bf16.mxu0 %v3786
    %3936 = vmatpush2.bf16.msra.mxu0 %v3785
    %3937 = vmatprep.mubr.bf16.mxu0 %v370
    %3938 = vmatmul.mubr.bf16.gmra.mxu0 %v369
    %v3939 = vpop.f32.mrf.mxu0
    %v3940 = vadd.f32 0.0, %v3939
    %v3941 = vpop.f32.mrf.mxu0
    %v3942 = vadd.f32 0.0, %v3941
    %v3943 = vpop.f32.mrf.mxu0
    %v3944 = vadd.f32 0.0, %v3943
    %v3945 = vpop.f32.mrf.mxu0
    %v3946 = vadd.f32 0.0, %v3945
    %3947 = vmatprep.mubr.bf16.mxu0 %v373
    %3948 = vmatmul.mubr.bf16.gmra.mxu0 %v372
    %v3949 = vpop.f32.mrf.mxu0
    %v3950 = vadd.f32 0.0, %v3949
    %v3951 = vpop.f32.mrf.mxu0
    %v3952 = vadd.f32 0.0, %v3951
    %v3953 = vpop.f32.mrf.mxu0
    %v3954 = vadd.f32 0.0, %v3953
    %v3955 = vpop.f32.mrf.mxu0
    %v3956 = vadd.f32 0.0, %v3955
    %3957 = vmatprep.mubr.bf16.mxu0 %v376
    %3958 = vmatmul.mubr.bf16.gmra.mxu0 %v375
    %v3959 = vpop.f32.mrf.mxu0
    %v3960 = vadd.f32 0.0, %v3959
    %v3961 = vpop.f32.mrf.mxu0
    %v3962 = vadd.f32 0.0, %v3961
    %v3963 = vpop.f32.mrf.mxu0
    %v3964 = vadd.f32 0.0, %v3963
    %v3965 = vpop.f32.mrf.mxu0
    %v3966 = vadd.f32 0.0, %v3965
    %3967 = vmatprep.mubr.bf16.mxu0 %v379
    %3968 = vmatmul.mubr.bf16.gmra.mxu0 %v378
    %v3969 = vpop.f32.mrf.mxu0
    %v3970 = vadd.f32 0.0, %v3969
    %v3971 = vpop.f32.mrf.mxu0
    %v3972 = vadd.f32 0.0, %v3971
    %v3973 = vpop.f32.mrf.mxu0
    %v3974 = vadd.f32 0.0, %v3973
    %v3975 = vpop.f32.mrf.mxu0
    %v3976 = vadd.f32 0.0, %v3975
    %3977 = vdwg.mxu0
    %3978 = vmatprep.subr.bf16.mxu0 %v3831
    %3979 = vmatpush1.bf16.msra.mxu0 %v3830
    %3980 = vmatprep.subr.bf16.mxu0 %v3828
    %3981 = vmatpush1.bf16.msra.mxu0 %v3827
    %3982 = vmatprep.subr.bf16.mxu0 %v3825
    %3983 = vmatpush1.bf16.msra.mxu0 %v3824
    %3984 = vmatprep.subr.bf16.mxu0 %v3822
    %3985 = vmatpush1.bf16.msra.mxu0 %v3821
    %3986 = vmatprep.subr.bf16.mxu0 %v3819
    %3987 = vmatpush1.bf16.msra.mxu0 %v3818
    %3988 = vmatprep.subr.bf16.mxu0 %v3816
    %3989 = vmatpush1.bf16.msra.mxu0 %v3815
    %3990 = vmatprep.subr.bf16.mxu0 %v3813
    %3991 = vmatpush1.bf16.msra.mxu0 %v3812
    %3992 = vmatprep.subr.bf16.mxu0 %v3810
    %3993 = vmatpush1.bf16.msra.mxu0 %v3809
    %3994 = vmatprep.subr.bf16.mxu0 0
    %3995 = vmatpush2.bf16.msra.mxu0 0
    %3996 = vmatprep.subr.bf16.mxu0 0
    %3997 = vmatpush2.bf16.msra.mxu0 0
    %3998 = vmatprep.subr.bf16.mxu0 0
    %3999 = vmatpush2.bf16.msra.mxu0 0
    %4000 = vmatprep.subr.bf16.mxu0 0
    %4001 = vmatpush2.bf16.msra.mxu0 0
    %4002 = vmatprep.subr.bf16.mxu0 0
    %4003 = vmatpush2.bf16.msra.mxu0 0
    %4004 = vmatprep.subr.bf16.mxu0 0
    %4005 = vmatpush2.bf16.msra.mxu0 0
    %4006 = vmatprep.subr.bf16.mxu0 0
    %4007 = vmatpush2.bf16.msra.mxu0 0
    %4008 = vmatprep.subr.bf16.mxu0 0
    %4009 = vmatpush2.bf16.msra.mxu0 0
    %4010 = vmatprep.mubr.bf16.mxu0 0
    %4011 = vmatmul.mubr.bf16.gmra.mxu0 %v371
    %v4012 = vpop.f32.mrf.mxu0
    %v4013 = vadd.f32 %v3940, %v4012
    %v4014 = vpop.f32.mrf.mxu0
    %v4015 = vadd.f32 %v3942, %v4014
    %v4016 = vpop.f32.mrf.mxu0
    %v4017 = vadd.f32 %v3944, %v4016
    %v4018 = vpop.f32.mrf.mxu0
    %v4019 = vadd.f32 %v3946, %v4018
    %4020 = vmatprep.mubr.bf16.mxu0 0
    %4021 = vmatmul.mubr.bf16.gmra.mxu0 %v374
    %v4022 = vpop.f32.mrf.mxu0
    %v4023 = vadd.f32 %v3950, %v4022
    %v4024 = vpop.f32.mrf.mxu0
    %v4025 = vadd.f32 %v3952, %v4024
    %v4026 = vpop.f32.mrf.mxu0
    %v4027 = vadd.f32 %v3954, %v4026
    %v4028 = vpop.f32.mrf.mxu0
    %v4029 = vadd.f32 %v3956, %v4028
    %4030 = vmatprep.mubr.bf16.mxu0 0
    %4031 = vmatmul.mubr.bf16.gmra.mxu0 %v377
    %v4032 = vpop.f32.mrf.mxu0
    %v4033 = vadd.f32 %v3960, %v4032
    %v4034 = vpop.f32.mrf.mxu0
    %v4035 = vadd.f32 %v3962, %v4034
    %v4036 = vpop.f32.mrf.mxu0
    %v4037 = vadd.f32 %v3964, %v4036
    %v4038 = vpop.f32.mrf.mxu0
    %v4039 = vadd.f32 %v3966, %v4038
    %4040 = vmatprep.mubr.bf16.mxu0 0
    %4041 = vmatmul.mubr.bf16.gmra.mxu0 %v380
    %v4042 = vpop.f32.mrf.mxu0
    %v4043 = vadd.f32 %v3970, %v4042
    %v4044 = vpop.f32.mrf.mxu0
    %v4045 = vadd.f32 %v3972, %v4044
    %v4046 = vpop.f32.mrf.mxu0
    %v4047 = vadd.f32 %v3974, %v4046
    %v4048 = vpop.f32.mrf.mxu0
    %v4049 = vadd.f32 %v3976, %v4048
    %4050 = vdwg.mxu0
    %4051 = vmatprep.subr.bf16.mxu0 0
    %4052 = vmatpush1.bf16.msra.mxu0 %v3784
    %4053 = vmatprep.subr.bf16.mxu0 0
    %4054 = vmatpush1.bf16.msra.mxu0 %v3781
    %4055 = vmatprep.subr.bf16.mxu0 0
    %4056 = vmatpush1.bf16.msra.mxu0 %v3778
    %4057 = vmatprep.subr.bf16.mxu0 0
    %4058 = vmatpush1.bf16.msra.mxu0 %v3775
    %4059 = vmatprep.subr.bf16.mxu0 0
    %4060 = vmatpush1.bf16.msra.mxu0 %v3772
    %4061 = vmatprep.subr.bf16.mxu0 0
    %4062 = vmatpush1.bf16.msra.mxu0 %v3769
    %4063 = vmatprep.subr.bf16.mxu0 0
    %4064 = vmatpush1.bf16.msra.mxu0 %v3766
    %4065 = vmatprep.subr.bf16.mxu0 0
    %4066 = vmatpush1.bf16.msra.mxu0 %v3763
    %4067 = vmatprep.subr.bf16.mxu0 0
    %4068 = vmatpush2.bf16.msra.mxu0 %v3808
    %4069 = vmatprep.subr.bf16.mxu0 0
    %4070 = vmatpush2.bf16.msra.mxu0 %v3805
    %4071 = vmatprep.subr.bf16.mxu0 0
    %4072 = vmatpush2.bf16.msra.mxu0 %v3802
    %4073 = vmatprep.subr.bf16.mxu0 0
    %4074 = vmatpush2.bf16.msra.mxu0 %v3799
    %4075 = vmatprep.subr.bf16.mxu0 0
    %4076 = vmatpush2.bf16.msra.mxu0 %v3796
    %4077 = vmatprep.subr.bf16.mxu0 0
    %4078 = vmatpush2.bf16.msra.mxu0 %v3793
    %4079 = vmatprep.subr.bf16.mxu0 0
    %4080 = vmatpush2.bf16.msra.mxu0 %v3790
    %4081 = vmatprep.subr.bf16.mxu0 0
    %4082 = vmatpush2.bf16.msra.mxu0 %v3787
    %4083 = vmatprep.mubr.bf16.mxu0 %v370
    %4084 = vmatmul.mubr.bf16.gmra.mxu0 %v369
    %v4085 = vpop.f32.mrf.mxu0
    %v4086 = vadd.f32 0.0, %v4085
    %v4087 = vpop.f32.mrf.mxu0
    %v4088 = vpop.f32.mrf.mxu0
    %v4089 = vadd.f32 0.0, %v4088
    %v4090 = vpop.f32.mrf.mxu0
    %4091 = vmatprep.mubr.bf16.mxu0 %v373
    %4092 = vmatmul.mubr.bf16.gmra.mxu0 %v372
    %v4093 = vpop.f32.mrf.mxu0
    %v4094 = vadd.f32 0.0, %v4093
    %v4095 = vpop.f32.mrf.mxu0
    %v4096 = vpop.f32.mrf.mxu0
    %v4097 = vadd.f32 0.0, %v4096
    %v4098 = vpop.f32.mrf.mxu0
    %4099 = vmatprep.mubr.bf16.mxu0 %v376
    %4100 = vmatmul.mubr.bf16.gmra.mxu0 %v375
    %v4101 = vpop.f32.mrf.mxu0
    %v4102 = vadd.f32 0.0, %v4101
    %v4103 = vpop.f32.mrf.mxu0
    %v4104 = vpop.f32.mrf.mxu0
    %v4105 = vadd.f32 0.0, %v4104
    %v4106 = vpop.f32.mrf.mxu0
    %4107 = vmatprep.mubr.bf16.mxu0 %v379
    %4108 = vmatmul.mubr.bf16.gmra.mxu0 %v378
    %v4109 = vpop.f32.mrf.mxu0
    %v4110 = vadd.f32 0.0, %v4109
    %v4111 = vpop.f32.mrf.mxu0
    %v4112 = vpop.f32.mrf.mxu0
    %v4113 = vadd.f32 0.0, %v4112
    %v4114 = vpop.f32.mrf.mxu0
    %4115 = vdwg.mxu0
    %4116 = vmatprep.subr.bf16.mxu0 0
    %4117 = vmatpush1.bf16.msra.mxu0 %v3832
    %4118 = vmatprep.subr.bf16.mxu0 0
    %4119 = vmatpush1.bf16.msra.mxu0 %v3829
    %4120 = vmatprep.subr.bf16.mxu0 0
    %4121 = vmatpush1.bf16.msra.mxu0 %v3826
    %4122 = vmatprep.subr.bf16.mxu0 0
    %4123 = vmatpush1.bf16.msra.mxu0 %v3823
    %4124 = vmatprep.subr.bf16.mxu0 0
    %4125 = vmatpush1.bf16.msra.mxu0 %v3820
    %4126 = vmatprep.subr.bf16.mxu0 0
    %4127 = vmatpush1.bf16.msra.mxu0 %v3817
    %4128 = vmatprep.subr.bf16.mxu0 0
    %4129 = vmatpush1.bf16.msra.mxu0 %v3814
    %4130 = vmatprep.subr.bf16.mxu0 0
    %4131 = vmatpush1.bf16.msra.mxu0 %v3811
    %4132 = vmatprep.subr.bf16.mxu0 0
    %4133 = vmatpush2.bf16.msra.mxu0 0
    %4134 = vmatprep.subr.bf16.mxu0 0
    %4135 = vmatpush2.bf16.msra.mxu0 0
    %4136 = vmatprep.subr.bf16.mxu0 0
    %4137 = vmatpush2.bf16.msra.mxu0 0
    %4138 = vmatprep.subr.bf16.mxu0 0
    %4139 = vmatpush2.bf16.msra.mxu0 0
    %4140 = vmatprep.subr.bf16.mxu0 0
    %4141 = vmatpush2.bf16.msra.mxu0 0
    %4142 = vmatprep.subr.bf16.mxu0 0
    %4143 = vmatpush2.bf16.msra.mxu0 0
    %4144 = vmatprep.subr.bf16.mxu0 0
    %4145 = vmatpush2.bf16.msra.mxu0 0
    %4146 = vmatprep.subr.bf16.mxu0 0
    %4147 = vmatpush2.bf16.msra.mxu0 0
    %4148 = vmatprep.mubr.bf16.mxu0 0
    %4149 = vmatmul.mubr.bf16.gmra.mxu0 %v371
    %v4150 = vpop.f32.mrf.mxu0
    %v4151 = vadd.f32 %v4086, %v4150
    %v4152 = vpop.f32.mrf.mxu0
    %v4153 = vpop.f32.mrf.mxu0
    %v4154 = vadd.f32 %v4089, %v4153
    %v4155 = vpop.f32.mrf.mxu0
    %4156 = vmatprep.mubr.bf16.mxu0 0
    %4157 = vmatmul.mubr.bf16.gmra.mxu0 %v374
    %v4158 = vpop.f32.mrf.mxu0
    %v4159 = vadd.f32 %v4094, %v4158
    %v4160 = vpop.f32.mrf.mxu0
    %v4161 = vpop.f32.mrf.mxu0
    %v4162 = vadd.f32 %v4097, %v4161
    %v4163 = vpop.f32.mrf.mxu0
    %4164 = vmatprep.mubr.bf16.mxu0 0
    %4165 = vmatmul.mubr.bf16.gmra.mxu0 %v377
    %v4166 = vpop.f32.mrf.mxu0
    %v4167 = vadd.f32 %v4102, %v4166
    %v4168 = vpop.f32.mrf.mxu0
    %v4169 = vpop.f32.mrf.mxu0
    %v4170 = vadd.f32 %v4105, %v4169
    %v4171 = vpop.f32.mrf.mxu0
    %4172 = vmatprep.mubr.bf16.mxu0 0
    %4173 = vmatmul.mubr.bf16.gmra.mxu0 %v380
    %v4174 = vpop.f32.mrf.mxu0
    %v4175 = vadd.f32 %v4110, %v4174
    %v4176 = vpop.f32.mrf.mxu0
    %v4177 = vpop.f32.mrf.mxu0
    %v4178 = vadd.f32 %v4113, %v4177
    %v4179 = vpop.f32.mrf.mxu0
    %4180 = vdwg.mxu0
    %v4181 = vrot.slane %v4013, 4
    %v4182 = vrot.slane %v4015, 4
    %v4183 = vrot.slane %v4151, 4
    %v4184 = vrot.slane %v4017, 4
    %v4185 = vrot.slane %v4019, 4
    %v4186 = vrot.slane %v4154, 4
    %v4187 = vrot.slane %v4023, 4
    %v4188 = vrot.slane %v4025, 4
    %v4189 = vrot.slane %v4159, 4
    %v4190 = vrot.slane %v4027, 4
    %v4191 = vrot.slane %v4029, 4
    %v4192 = vrot.slane %v4162, 4
    %v4193 = vrot.slane %v4033, 4
    %v4194 = vrot.slane %v4035, 4
    %v4195 = vrot.slane %v4167, 4
    %v4196 = vrot.slane %v4037, 4
    %v4197 = vrot.slane %v4039, 4
    %v4198 = vrot.slane %v4170, 4
    %v4199 = vrot.slane %v4043, 4
    %v4200 = vrot.slane %v4045, 4
    %v4201 = vrot.slane %v4175, 4
    %v4202 = vrot.slane %v4047, 4
    %v4203 = vrot.slane %v4049, 4
    %v4204 = vrot.slane %v4178, 4
    %vm4205 = vcmp.lt.s32.totalorder %v1078, 4
    %v4206 = vsel %vm4205, %v4199, %v4202
    %v4207 = vsel %vm4205, %v4200, %v4203
    %v4208 = vsel %vm4205, %v4201, %v4204
    %v4209 = vsel %vm4205, %v4196, %v4199
    %v4210 = vsel %vm4205, %v4197, %v4200
    %v4211 = vsel %vm4205, %v4198, %v4201
    %v4212 = vsel %vm4205, %v4193, %v4196
    %v4213 = vsel %vm4205, %v4194, %v4197
    %v4214 = vsel %vm4205, %v4195, %v4198
    %v4215 = vsel %vm4205, %v4190, %v4193
    %v4216 = vsel %vm4205, %v4191, %v4194
    %v4217 = vsel %vm4205, %v4192, %v4195
    %v4218 = vsel %vm4205, %v4187, %v4190
    %v4219 = vsel %vm4205, %v4188, %v4191
    %v4220 = vsel %vm4205, %v4189, %v4192
    %v4221 = vsel %vm4205, %v4184, %v4187
    %v4222 = vsel %vm4205, %v4185, %v4188
    %v4223 = vsel %vm4205, %v4186, %v4189
    %v4224 = vsel %vm4205, %v4181, %v4184
    %v4225 = vsel %vm4205, %v4182, %v4185
    %v4226 = vsel %vm4205, %v4183, %v4186
    %v4227 = vsel %vm4205, %v4202, %v4181
    %v4228 = vsel %vm4205, %v4203, %v4182
    %v4229 = vsel %vm4205, %v4204, %v4183
    %v4230 = vadd.f32 %v3400, %v4224
    %v4231 = vadd.f32 %v3401, %v4225
    %v4232 = vadd.f32 %v3402, %v4226
    %v4233 = vadd.f32 %v3403, %v4221
    %v4234 = vadd.f32 %v3404, %v4222
    %v4235 = vadd.f32 %v3405, %v4223
    %v4236 = vadd.f32 %v3406, %v4218
    %v4237 = vadd.f32 %v3407, %v4219
    %v4238 = vadd.f32 %v3408, %v4220
    %v4239 = vadd.f32 %v3409, %v4215
    %v4240 = vadd.f32 %v3410, %v4216
    %v4241 = vadd.f32 %v3411, %v4217
    %v4242 = vadd.f32 %v3412, %v4212
    %v4243 = vadd.f32 %v3413, %v4213
    %v4244 = vadd.f32 %v3414, %v4214
    %v4245 = vadd.f32 %v3415, %v4209
    %v4246 = vadd.f32 %v3416, %v4210
    %v4247 = vadd.f32 %v3417, %v4211
    %v4248 = vadd.f32 %v3418, %v4206
    %v4249 = vadd.f32 %v3419, %v4207
    %v4250 = vadd.f32 %v3420, %v4208
    %v4251 = vadd.f32 %v3421, %v4227
    %v4252 = vadd.f32 %v3422, %v4228
    %v4253 = vadd.f32 %v3423, %v4229
    %v4254 = vld [vmem:[#allocation7] sm:$0xff]
    %v4255 = vld [vmem:[#allocation7 + $0x8] sm:$0xff]
    %v4256 = vld [vmem:[#allocation7 + $0x10] sm:$0xff]
    %v4257 = vld [vmem:[#allocation7 + $0x18] sm:$0xff]
    %v4258 = vld [vmem:[#allocation7 + $0x20] sm:$0xff]
    %v4259 = vld [vmem:[#allocation7 + $0x28] sm:$0xff]
    %v4260 = vadd.f32 %v4230, %v4254
    %v4261 = vadd.f32 %v4231, %v4255
    %v4262 = vadd.f32 %v4232, %v4256
    %v4263 = vadd.f32 %v4233, %v4257
    %v4264 = vadd.f32 %v4234, %v4258
    %v4265 = vadd.f32 %v4235, %v4259
    %v4266 = vadd.f32 %v4236, %v4254
    %v4267 = vadd.f32 %v4237, %v4255
    %v4268 = vadd.f32 %v4238, %v4256
    %v4269 = vadd.f32 %v4239, %v4257
    %v4270 = vadd.f32 %v4240, %v4258
    %v4271 = vadd.f32 %v4241, %v4259
    %v4272 = vadd.f32 %v4242, %v4254
    %v4273 = vadd.f32 %v4243, %v4255
    %v4274 = vadd.f32 %v4244, %v4256
    %v4275 = vadd.f32 %v4245, %v4257
    %v4276 = vadd.f32 %v4246, %v4258
    %v4277 = vadd.f32 %v4247, %v4259
    %v4278 = vadd.f32 %v4248, %v4254
    %v4279 = vadd.f32 %v4249, %v4255
    %v4280 = vadd.f32 %v4250, %v4256
    %v4281 = vadd.f32 %v4251, %v4257
    %v4282 = vadd.f32 %v4252, %v4258
    %v4283 = vadd.f32 %v4253, %v4259
    %v4284 = vmax.f32 %v4260, %v4263
    %v4285 = vrot.slane %v4284, 4
    %v4286 = vmax.f32 %v4284, %v4285
    %v4287 = vrot.slane %v4286, 2
    %v4288 = vmax.f32 %v4286, %v4287
    %v4289 = vrot.slane %v4288, 1
    %v4290 = vmax.f32 %v4288, %v4289
    %v4291 = vmax.f32 %v4261, %v4264
    %v4292 = vrot.slane %v4291, 4
    %v4293 = vmax.f32 %v4291, %v4292
    %v4294 = vrot.slane %v4293, 2
    %v4295 = vmax.f32 %v4293, %v4294
    %v4296 = vrot.slane %v4295, 1
    %v4297 = vmax.f32 %v4295, %v4296
    %v4298 = vmax.f32 %v4262, %v4265
    %v4299 = vrot.slane %v4298, 4
    %v4300 = vmax.f32 %v4298, %v4299
    %v4301 = vrot.slane %v4300, 2
    %v4302 = vmax.f32 %v4300, %v4301
    %v4303 = vrot.slane %v4302, 1
    %v4304 = vmax.f32 %v4302, %v4303
    %v4305 = vmax.f32 %v4266, %v4269
    %v4306 = vrot.slane %v4305, 4
    %v4307 = vmax.f32 %v4305, %v4306
    %v4308 = vrot.slane %v4307, 2
    %v4309 = vmax.f32 %v4307, %v4308
    %v4310 = vrot.slane %v4309, 1
    %v4311 = vmax.f32 %v4309, %v4310
    %v4312 = vmax.f32 %v4267, %v4270
    %v4313 = vrot.slane %v4312, 4
    %v4314 = vmax.f32 %v4312, %v4313
    %v4315 = vrot.slane %v4314, 2
    %v4316 = vmax.f32 %v4314, %v4315
    %v4317 = vrot.slane %v4316, 1
    %v4318 = vmax.f32 %v4316, %v4317
    %v4319 = vmax.f32 %v4268, %v4271
    %v4320 = vrot.slane %v4319, 4
    %v4321 = vmax.f32 %v4319, %v4320
    %v4322 = vrot.slane %v4321, 2
    %v4323 = vmax.f32 %v4321, %v4322
    %v4324 = vrot.slane %v4323, 1
    %v4325 = vmax.f32 %v4323, %v4324
    %v4326 = vmax.f32 %v4272, %v4275
    %v4327 = vrot.slane %v4326, 4
    %v4328 = vmax.f32 %v4326, %v4327
    %v4329 = vrot.slane %v4328, 2
    %v4330 = vmax.f32 %v4328, %v4329
    %v4331 = vrot.slane %v4330, 1
    %v4332 = vmax.f32 %v4330, %v4331
    %v4333 = vmax.f32 %v4273, %v4276
    %v4334 = vrot.slane %v4333, 4
    %v4335 = vmax.f32 %v4333, %v4334
    %v4336 = vrot.slane %v4335, 2
    %v4337 = vmax.f32 %v4335, %v4336
    %v4338 = vrot.slane %v4337, 1
    %v4339 = vmax.f32 %v4337, %v4338
    %v4340 = vmax.f32 %v4274, %v4277
    %v4341 = vrot.slane %v4340, 4
    %v4342 = vmax.f32 %v4340, %v4341
    %v4343 = vrot.slane %v4342, 2
    %v4344 = vmax.f32 %v4342, %v4343
    %v4345 = vrot.slane %v4344, 1
    %v4346 = vmax.f32 %v4344, %v4345
    %v4347 = vmax.f32 %v4278, %v4281
    %v4348 = vrot.slane %v4347, 4
    %v4349 = vmax.f32 %v4347, %v4348
    %v4350 = vrot.slane %v4349, 2
    %v4351 = vmax.f32 %v4349, %v4350
    %v4352 = vrot.slane %v4351, 1
    %v4353 = vmax.f32 %v4351, %v4352
    %v4354 = vmax.f32 %v4279, %v4282
    %v4355 = vrot.slane %v4354, 4
    %v4356 = vmax.f32 %v4354, %v4355
    %v4357 = vrot.slane %v4356, 2
    %v4358 = vmax.f32 %v4356, %v4357
    %v4359 = vrot.slane %v4358, 1
    %v4360 = vmax.f32 %v4358, %v4359
    %v4361 = vmax.f32 %v4280, %v4283
    %v4362 = vrot.slane %v4361, 4
    %v4363 = vmax.f32 %v4361, %v4362
    %v4364 = vrot.slane %v4363, 2
    %v4365 = vmax.f32 %v4363, %v4364
    %v4366 = vrot.slane %v4365, 1
    %v4367 = vmax.f32 %v4365, %v4366
    %v4368 = vld [vmem:[#allocation5] sm:$0x7]
    %v4370 = vlaneseq
    %v4371 = vshrl.u32 %v4370, 7
    %v4372 = vsub.s32 0, %v4371
    %v4373 = vrot.slane %v4368, %v4372
    %v4374 = vlaneseq
    %v4375 = vshrl.u32 %v4374, 7
    %v4376 = vsub.s32 1, %v4375
    %v4377 = vrot.slane %v4368, %v4376
    %v4378 = vlaneseq
    %v4379 = vshrl.u32 %v4378, 7
    %v4380 = vsub.s32 2, %v4379
    %v4381 = vrot.slane %v4368, %v4380
    %v4385 = vadd.f32 %v4290, %v4373
    %v4386 = vadd.f32 %v4297, %v4377
    %v4387 = vadd.f32 %v4304, %v4381
    %v4388 = vadd.f32 %v4311, %v4373
    %v4389 = vadd.f32 %v4318, %v4377
    %v4390 = vadd.f32 %v4325, %v4381
    %v4391 = vadd.f32 %v4332, %v4373
    %v4392 = vadd.f32 %v4339, %v4377
    %v4393 = vadd.f32 %v4346, %v4381
    %v4394 = vadd.f32 %v4353, %v4373
    %v4395 = vadd.f32 %v4360, %v4377
    %v4396 = vadd.f32 %v4367, %v4381
    %v4397 = vpack.c.bf16 %v4385, %v4385
    %v4398 = vpack.c.bf16 %v4386, %v4386
    %v4399 = vpack.c.bf16 %v4387, %v4387
    %v4400 = vpack.c.bf16 %v4388, %v4388
    %v4401 = vpack.c.bf16 %v4389, %v4389
    %v4402 = vpack.c.bf16 %v4390, %v4390
    %v4403 = vpack.c.bf16 %v4391, %v4391
    %v4404 = vpack.c.bf16 %v4392, %v4392
    %v4405 = vpack.c.bf16 %v4393, %v4393
    %v4406 = vpack.c.bf16 %v4394, %v4394
    %v4407 = vpack.c.bf16 %v4395, %v4395
    %v4408 = vpack.c.bf16 %v4396, %v4396
    %v4409 = vld [vmem:[#allocation8] sm:$0xff]
    %v4410 = vld [vmem:[#allocation8 + $0x8] sm:$0xff]
    %v4411 = vld [vmem:[#allocation8 + $0x10] sm:$0xff]
    %v4412 = vld [vmem:[#allocation8 + $0x18] sm:$0xff]
    %v4413 = vld [vmem:[#allocation8 + $0x20] sm:$0xff]
    %v4414 = vld [vmem:[#allocation8 + $0x28] sm:$0xff]
    %v4415 = vld [vmem:[#allocation8 + $0x30] sm:$0xff]
    %v4416 = vld [vmem:[#allocation8 + $0x38] sm:$0xff]
    %v4417 = vld [vmem:[#allocation8 + $0x40] sm:$0xff]
    %v4418 = vld [vmem:[#allocation8 + $0x48] sm:$0xff]
    %v4419 = vld [vmem:[#allocation8 + $0x50] sm:$0xff]
    %v4420 = vld [vmem:[#allocation8 + $0x58] sm:$0xff]
    %v4421 = vld [vmem:[#allocation8 + $0x60] sm:$0xff]
    %v4422 = vld [vmem:[#allocation8 + $0x68] sm:$0xff]
    %v4423 = vld [vmem:[#allocation8 + $0x70] sm:$0xff]
    %v4424 = vld [vmem:[#allocation8 + $0x78] sm:$0xff]
    %v4425 = vld [vmem:[#allocation8 + $0x80] sm:$0xff]
    %v4426 = vld [vmem:[#allocation8 + $0x88] sm:$0xff]
    %v4427 = vld [vmem:[#allocation8 + $0x90] sm:$0xff]
    %v4428 = vld [vmem:[#allocation8 + $0x98] sm:$0xff]
    %v4429 = vld [vmem:[#allocation8 + $0xa0] sm:$0xff]
    %v4430 = vld [vmem:[#allocation8 + $0xa8] sm:$0xff]
    %v4431 = vld [vmem:[#allocation8 + $0xb0] sm:$0xff]
    %v4432 = vld [vmem:[#allocation8 + $0xb8] sm:$0xff]
    %v4433 = vld [vmem:[#allocation8 + $0xc0] sm:$0xff]
    %v4434 = vld [vmem:[#allocation8 + $0xc8] sm:$0xff]
    %v4435 = vld [vmem:[#allocation8 + $0xd0] sm:$0xff]
    %v4436 = vld [vmem:[#allocation8 + $0xd8] sm:$0xff]
    %v4437 = vld [vmem:[#allocation8 + $0xe0] sm:$0xff]
    %v4438 = vld [vmem:[#allocation8 + $0xe8] sm:$0xff]
    %v4439 = vld [vmem:[#allocation8 + $0xf0] sm:$0xff]
    %v4440 = vld [vmem:[#allocation8 + $0xf8] sm:$0xff]
    %v4441 = vld [vmem:[#allocation8 + $0x100] sm:$0xff]
    %v4442 = vld [vmem:[#allocation8 + $0x108] sm:$0xff]
    %v4443 = vld [vmem:[#allocation8 + $0x110] sm:$0xff]
    %v4444 = vld [vmem:[#allocation8 + $0x118] sm:$0xff]
    %v4445 = vld [vmem:[#allocation8 + $0x120] sm:$0xff]
    %v4446 = vld [vmem:[#allocation8 + $0x128] sm:$0xff]
    %v4447 = vld [vmem:[#allocation8 + $0x130] sm:$0xff]
    %v4448 = vld [vmem:[#allocation8 + $0x138] sm:$0xff]
    %v4449 = vld [vmem:[#allocation8 + $0x140] sm:$0xff]
    %v4450 = vld [vmem:[#allocation8 + $0x148] sm:$0xff]
    %v4451 = vld [vmem:[#allocation8 + $0x150] sm:$0xff]
    %v4452 = vld [vmem:[#allocation8 + $0x158] sm:$0xff]
    %v4453 = vld [vmem:[#allocation8 + $0x160] sm:$0xff]
    %v4454 = vld [vmem:[#allocation8 + $0x168] sm:$0xff]
    %v4455 = vld [vmem:[#allocation8 + $0x170] sm:$0xff]
    %v4456 = vld [vmem:[#allocation8 + $0x178] sm:$0xff]
    %v4457 = vld [vmem:[#allocation10] sm:$0x3]
    %v4459 = vlaneseq
    %v4460 = vshrl.u32 %v4459, 7
    %v4461 = vsub.s32 0, %v4460
    %v4462 = vrot.slane %v4457, %v4461
    %v4463 = vlaneseq
    %v4464 = vshrl.u32 %v4463, 7
    %v4465 = vsub.s32 1, %v4464
    %v4466 = vrot.slane %v4457, %v4465
    %v4481 = vunpack.c.l.b16 %v4397
    %v4482 = vunpack.c.l.b16 %v4398
    %v4483 = vunpack.c.l.b16 %v4399
    %v4484 = vunpack.c.l.b16 %v4400
    %v4485 = vunpack.c.l.b16 %v4401
    %v4486 = vunpack.c.l.b16 %v4402
    %v4487 = vunpack.c.l.b16 %v4403
    %v4488 = vunpack.c.l.b16 %v4404
    %v4489 = vunpack.c.l.b16 %v4405
    %v4490 = vunpack.c.l.b16 %v4406
    %v4491 = vunpack.c.l.b16 %v4407
    %v4492 = vunpack.c.l.b16 %v4408
    %v4493 = vrot.slane %v4484, 7
    %vm4494 = vcmask 1041409
    %v4495 = vsel %vm4494, %v4493, %v4481
    %v4496 = vrot.slane %v4487, 6
    %vm4497 = vcmask 1042434
    %v4498 = vsel %vm4497, %v4496, %v4495
    %v4499 = vrot.slane %v4490, 5
    %vm4500 = vcmask 1043459
    %v4501 = vsel %vm4500, %v4499, %v4498
    %v4502 = vrot.slane %v4485, 7
    %v4503 = vsel %vm4494, %v4502, %v4482
    %v4504 = vrot.slane %v4488, 6
    %v4505 = vsel %vm4497, %v4504, %v4503
    %v4506 = vrot.slane %v4491, 5
    %v4507 = vsel %vm4500, %v4506, %v4505
    %v4508 = vrot.slane %v4486, 7
    %v4509 = vsel %vm4494, %v4508, %v4483
    %v4510 = vrot.slane %v4489, 6
    %v4511 = vsel %vm4497, %v4510, %v4509
    %v4512 = vrot.slane %v4492, 5
    %v4513 = vsel %vm4500, %v4512, %v4511
    %v4514 = vpack.c.b16 %v4501, %v4501
    %v4515 = vpack.c.b16 %v4507, %v4507
    %v4516 = vpack.c.b16 %v4513, %v4513
    %v4568 = vunpack.c.l.b16 %v4409
    %v4569 = vunpack.c.h.b16 %v4409
    %v4570 = vunpack.c.l.b16 %v4410
    %v4571 = vunpack.c.h.b16 %v4410
    %v4572 = vunpack.c.l.b16 %v4411
    %v4573 = vunpack.c.h.b16 %v4411
    %v4574 = vunpack.c.l.b16 %v4412
    %v4575 = vunpack.c.h.b16 %v4412
    %v4576 = vunpack.c.l.b16 %v4413
    %v4577 = vunpack.c.h.b16 %v4413
    %v4578 = vunpack.c.l.b16 %v4414
    %v4579 = vunpack.c.h.b16 %v4414
    %v4580 = vunpack.c.l.b16 %v4415
    %v4581 = vunpack.c.h.b16 %v4415
    %v4582 = vunpack.c.l.b16 %v4416
    %v4583 = vunpack.c.h.b16 %v4416
    %v4584 = vunpack.c.l.b16 %v4417
    %v4585 = vunpack.c.h.b16 %v4417
    %v4586 = vunpack.c.l.b16 %v4418
    %v4587 = vunpack.c.h.b16 %v4418
    %v4588 = vunpack.c.l.b16 %v4419
    %v4589 = vunpack.c.h.b16 %v4419
    %v4590 = vunpack.c.l.b16 %v4420
    %v4591 = vunpack.c.h.b16 %v4420
    %v4592 = vunpack.c.l.b16 %v4421
    %v4593 = vunpack.c.h.b16 %v4421
    %v4594 = vunpack.c.l.b16 %v4422
    %v4595 = vunpack.c.h.b16 %v4422
    %v4596 = vunpack.c.l.b16 %v4423
    %v4597 = vunpack.c.h.b16 %v4423
    %v4598 = vunpack.c.l.b16 %v4424
    %v4599 = vunpack.c.h.b16 %v4424
    %v4600 = vunpack.c.l.b16 %v4425
    %v4601 = vunpack.c.h.b16 %v4425
    %v4602 = vunpack.c.l.b16 %v4426
    %v4603 = vunpack.c.h.b16 %v4426
    %v4604 = vunpack.c.l.b16 %v4427
    %v4605 = vunpack.c.h.b16 %v4427
    %v4606 = vunpack.c.l.b16 %v4428
    %v4607 = vunpack.c.h.b16 %v4428
    %v4608 = vunpack.c.l.b16 %v4429
    %v4609 = vunpack.c.h.b16 %v4429
    %v4610 = vunpack.c.l.b16 %v4430
    %v4611 = vunpack.c.h.b16 %v4430
    %v4612 = vunpack.c.l.b16 %v4431
    %v4613 = vunpack.c.h.b16 %v4431
    %v4614 = vunpack.c.l.b16 %v4432
    %v4615 = vunpack.c.h.b16 %v4432
    %v4616 = vunpack.c.l.b16 %v4433
    %v4617 = vunpack.c.h.b16 %v4433
    %v4618 = vunpack.c.l.b16 %v4434
    %v4619 = vunpack.c.h.b16 %v4434
    %v4620 = vunpack.c.l.b16 %v4435
    %v4621 = vunpack.c.h.b16 %v4435
    %v4622 = vunpack.c.l.b16 %v4436
    %v4623 = vunpack.c.h.b16 %v4436
    %v4624 = vunpack.c.l.b16 %v4437
    %v4625 = vunpack.c.h.b16 %v4437
    %v4626 = vunpack.c.l.b16 %v4438
    %v4627 = vunpack.c.h.b16 %v4438
    %v4628 = vunpack.c.l.b16 %v4439
    %v4629 = vunpack.c.h.b16 %v4439
    %v4630 = vunpack.c.l.b16 %v4440
    %v4631 = vunpack.c.h.b16 %v4440
    %v4632 = vunpack.c.l.b16 %v4441
    %v4633 = vunpack.c.h.b16 %v4441
    %v4634 = vunpack.c.l.b16 %v4442
    %v4635 = vunpack.c.h.b16 %v4442
    %v4636 = vunpack.c.l.b16 %v4443
    %v4637 = vunpack.c.h.b16 %v4443
    %v4638 = vunpack.c.l.b16 %v4444
    %v4639 = vunpack.c.h.b16 %v4444
    %v4640 = vunpack.c.l.b16 %v4445
    %v4641 = vunpack.c.h.b16 %v4445
    %v4642 = vunpack.c.l.b16 %v4446
    %v4643 = vunpack.c.h.b16 %v4446
    %v4644 = vunpack.c.l.b16 %v4447
    %v4645 = vunpack.c.h.b16 %v4447
    %v4646 = vunpack.c.l.b16 %v4448
    %v4647 = vunpack.c.h.b16 %v4448
    %v4648 = vunpack.c.l.b16 %v4449
    %v4649 = vunpack.c.h.b16 %v4449
    %v4650 = vunpack.c.l.b16 %v4450
    %v4651 = vunpack.c.h.b16 %v4450
    %v4652 = vunpack.c.l.b16 %v4451
    %v4653 = vunpack.c.h.b16 %v4451
    %v4654 = vunpack.c.l.b16 %v4452
    %v4655 = vunpack.c.h.b16 %v4452
    %v4656 = vunpack.c.l.b16 %v4453
    %v4657 = vunpack.c.h.b16 %v4453
    %v4658 = vunpack.c.l.b16 %v4454
    %v4659 = vunpack.c.h.b16 %v4454
    %v4660 = vunpack.c.l.b16 %v4455
    %v4661 = vunpack.c.h.b16 %v4455
    %v4662 = vunpack.c.l.b16 %v4456
    %v4663 = vunpack.c.h.b16 %v4456
    %v4664 = vpack.c.b16 %v4570, %v4568
    %v4665 = vpack.c.b16 %v4571, %v4569
    %v4666 = vpack.c.b16 %v4574, %v4572
    %v4667 = vpack.c.b16 %v4575, %v4573
    %v4668 = vpack.c.b16 %v4578, %v4576
    %v4669 = vpack.c.b16 %v4579, %v4577
    %v4670 = vpack.c.b16 %v4582, %v4580
    %v4671 = vpack.c.b16 %v4583, %v4581
    %v4672 = vpack.c.b16 %v4586, %v4584
    %v4673 = vpack.c.b16 %v4587, %v4585
    %v4674 = vpack.c.b16 %v4590, %v4588
    %v4675 = vpack.c.b16 %v4591, %v4589
    %v4676 = vpack.c.b16 %v4594, %v4592
    %v4677 = vpack.c.b16 %v4595, %v4593
    %v4678 = vpack.c.b16 %v4598, %v4596
    %v4679 = vpack.c.b16 %v4599, %v4597
    %v4680 = vpack.c.b16 %v4602, %v4600
    %v4681 = vpack.c.b16 %v4603, %v4601
    %v4682 = vpack.c.b16 %v4606, %v4604
    %v4683 = vpack.c.b16 %v4607, %v4605
    %v4684 = vpack.c.b16 %v4610, %v4608
    %v4685 = vpack.c.b16 %v4611, %v4609
    %v4686 = vpack.c.b16 %v4614, %v4612
    %v4687 = vpack.c.b16 %v4615, %v4613
    %v4688 = vpack.c.b16 %v4618, %v4616
    %v4689 = vpack.c.b16 %v4619, %v4617
    %v4690 = vpack.c.b16 %v4622, %v4620
    %v4691 = vpack.c.b16 %v4623, %v4621
    %v4692 = vpack.c.b16 %v4626, %v4624
    %v4693 = vpack.c.b16 %v4627, %v4625
    %v4694 = vpack.c.b16 %v4630, %v4628
    %v4695 = vpack.c.b16 %v4631, %v4629
    %v4696 = vpack.c.b16 %v4634, %v4632
    %v4697 = vpack.c.b16 %v4635, %v4633
    %v4698 = vpack.c.b16 %v4638, %v4636
    %v4699 = vpack.c.b16 %v4639, %v4637
    %v4700 = vpack.c.b16 %v4642, %v4640
    %v4701 = vpack.c.b16 %v4643, %v4641
    %v4702 = vpack.c.b16 %v4646, %v4644
    %v4703 = vpack.c.b16 %v4647, %v4645
    %v4704 = vpack.c.b16 %v4650, %v4648
    %v4705 = vpack.c.b16 %v4651, %v4649
    %v4706 = vpack.c.b16 %v4654, %v4652
    %v4707 = vpack.c.b16 %v4655, %v4653
    %v4708 = vpack.c.b16 %v4658, %v4656
    %v4709 = vpack.c.b16 %v4659, %v4657
    %v4710 = vpack.c.b16 %v4662, %v4660
    %v4711 = vpack.c.b16 %v4663, %v4661
    %4760 = vmatprep.subr.bf16.mxu0 %v4679
    %4761 = vmatpush1.bf16.msra.mxu0 %v4678
    %4762 = vmatprep.subr.bf16.mxu0 %v4677
    %4763 = vmatpush1.bf16.msra.mxu0 %v4676
    %4764 = vmatprep.subr.bf16.mxu0 %v4675
    %4765 = vmatpush1.bf16.msra.mxu0 %v4674
    %4766 = vmatprep.subr.bf16.mxu0 %v4673
    %4767 = vmatpush1.bf16.msra.mxu0 %v4672
    %4768 = vmatprep.subr.bf16.mxu0 %v4671
    %4769 = vmatpush1.bf16.msra.mxu0 %v4670
    %4770 = vmatprep.subr.bf16.mxu0 %v4669
    %4771 = vmatpush1.bf16.msra.mxu0 %v4668
    %4772 = vmatprep.subr.bf16.mxu0 %v4667
    %4773 = vmatpush1.bf16.msra.mxu0 %v4666
    %4774 = vmatprep.subr.bf16.mxu0 %v4665
    %4775 = vmatpush1.bf16.msra.mxu0 %v4664
    %4776 = vmatprep.subr.bf16.mxu0 %v4695
    %4777 = vmatpush2.bf16.msra.mxu0 %v4694
    %4778 = vmatprep.subr.bf16.mxu0 %v4693
    %4779 = vmatpush2.bf16.msra.mxu0 %v4692
    %4780 = vmatprep.subr.bf16.mxu0 %v4691
    %4781 = vmatpush2.bf16.msra.mxu0 %v4690
    %4782 = vmatprep.subr.bf16.mxu0 %v4689
    %4783 = vmatpush2.bf16.msra.mxu0 %v4688
    %4784 = vmatprep.subr.bf16.mxu0 %v4687
    %4785 = vmatpush2.bf16.msra.mxu0 %v4686
    %4786 = vmatprep.subr.bf16.mxu0 %v4685
    %4787 = vmatpush2.bf16.msra.mxu0 %v4684
    %4788 = vmatprep.subr.bf16.mxu0 %v4683
    %4789 = vmatpush2.bf16.msra.mxu0 %v4682
    %4790 = vmatprep.subr.bf16.mxu0 %v4681
    %4791 = vmatpush2.bf16.msra.mxu0 %v4680
    %4792 = vmatprep.mubr.bf16.mxu0 %v4515
    %4793 = vmatmul.mubr.bf16.gmra.mxu0 %v4514
    %v4794 = vpop.f32.mrf.mxu0
    %v4795 = vadd.f32 %v4462, %v4794
    %v4796 = vpop.f32.mrf.mxu0
    %v4797 = vadd.f32 %v4466, %v4796
    %v4798 = vpop.f32.mrf.mxu0
    %v4799 = vpop.f32.mrf.mxu0
    %4800 = vdwg.mxu0
    %4801 = vmatprep.subr.bf16.mxu0 %v4711
    %4802 = vmatpush1.bf16.msra.mxu0 %v4710
    %4803 = vmatprep.subr.bf16.mxu0 %v4709
    %4804 = vmatpush1.bf16.msra.mxu0 %v4708
    %4805 = vmatprep.subr.bf16.mxu0 %v4707
    %4806 = vmatpush1.bf16.msra.mxu0 %v4706
    %4807 = vmatprep.subr.bf16.mxu0 %v4705
    %4808 = vmatpush1.bf16.msra.mxu0 %v4704
    %4809 = vmatprep.subr.bf16.mxu0 %v4703
    %4810 = vmatpush1.bf16.msra.mxu0 %v4702
    %4811 = vmatprep.subr.bf16.mxu0 %v4701
    %4812 = vmatpush1.bf16.msra.mxu0 %v4700
    %4813 = vmatprep.subr.bf16.mxu0 %v4699
    %4814 = vmatpush1.bf16.msra.mxu0 %v4698
    %4815 = vmatprep.subr.bf16.mxu0 %v4697
    %4816 = vmatpush1.bf16.msra.mxu0 %v4696
    %4817 = vmatprep.subr.bf16.mxu0 0
    %4818 = vmatpush2.bf16.msra.mxu0 0
    %4819 = vmatprep.subr.bf16.mxu0 0
    %4820 = vmatpush2.bf16.msra.mxu0 0
    %4821 = vmatprep.subr.bf16.mxu0 0
    %4822 = vmatpush2.bf16.msra.mxu0 0
    %4823 = vmatprep.subr.bf16.mxu0 0
    %4824 = vmatpush2.bf16.msra.mxu0 0
    %4825 = vmatprep.subr.bf16.mxu0 0
    %4826 = vmatpush2.bf16.msra.mxu0 0
    %4827 = vmatprep.subr.bf16.mxu0 0
    %4828 = vmatpush2.bf16.msra.mxu0 0
    %4829 = vmatprep.subr.bf16.mxu0 0
    %4830 = vmatpush2.bf16.msra.mxu0 0
    %4831 = vmatprep.subr.bf16.mxu0 0
    %4832 = vmatpush2.bf16.msra.mxu0 0
    %4833 = vmatprep.mubr.bf16.mxu0 0
    %4834 = vmatmul.mubr.bf16.gmra.mxu0 %v4516
    %v4835 = vpop.f32.mrf.mxu0
    %v4836 = vadd.f32 %v4795, %v4835
    %v4837 = vpop.f32.mrf.mxu0
    %v4838 = vadd.f32 %v4797, %v4837
    %v4839 = vpop.f32.mrf.mxu0
    %v4840 = vpop.f32.mrf.mxu0
    %4841 = vdwg.mxu0
    %v4842 = vmax.f32 %v4836, 0.0
    %v4843 = vmax.f32 %v4838, 0.0
    %v4844 = vpack.c.bf16 %v4842, %v4842
    %v4845 = vpack.c.bf16 %v4843, %v4843
    %v4846 = vld [vmem:[#allocation11] sm:$0xf]
    %v4847 = vld [vmem:[#allocation11 + $0x4] sm:$0xf]
    %v4848 = vld [vmem:[#allocation11 + $0x8] sm:$0xf]
    %v4849 = vld [vmem:[#allocation11 + $0xc] sm:$0xf]
    %v4850 = vld [vmem:[#allocation11 + $0x10] sm:$0xf]
    %v4851 = vld [vmem:[#allocation11 + $0x14] sm:$0xf]
    %v4852 = vld [vmem:[#allocation11 + $0x18] sm:$0xf]
    %v4853 = vld [vmem:[#allocation11 + $0x1c] sm:$0xf]
    %v4854 = vld [vmem:[#allocation11 + $0x20] sm:$0xf]
    %v4855 = vld [vmem:[#allocation11 + $0x24] sm:$0xf]
    %v4856 = vld [vmem:[#allocation11 + $0x28] sm:$0xf]
    %v4857 = vld [vmem:[#allocation11 + $0x2c] sm:$0xf]
    %v4858 = vld [vmem:[#allocation11 + $0x30] sm:$0xf]
    %v4859 = vld [vmem:[#allocation11 + $0x34] sm:$0xf]
    %v4860 = vld [vmem:[#allocation11 + $0x38] sm:$0xf]
    %v4861 = vld [vmem:[#allocation11 + $0x3c] sm:$0xf]
    %v4862 = vld [vmem:[#allocation11 + $0x40] sm:$0xf]
    %v4863 = vld [vmem:[#allocation11 + $0x44] sm:$0xf]
    %v4864 = vld [vmem:[#allocation11 + $0x48] sm:$0xf]
    %v4865 = vld [vmem:[#allocation11 + $0x4c] sm:$0xf]
    %v4866 = vld [vmem:[#allocation11 + $0x50] sm:$0xf]
    %v4867 = vld [vmem:[#allocation11 + $0x54] sm:$0xf]
    %v4868 = vld [vmem:[#allocation11 + $0x58] sm:$0xf]
    %v4869 = vld [vmem:[#allocation11 + $0x5c] sm:$0xf]
    %v4870 = vld [vmem:[#allocation11 + $0x60] sm:$0xf]
    %v4871 = vld [vmem:[#allocation11 + $0x64] sm:$0xf]
    %v4872 = vld [vmem:[#allocation11 + $0x68] sm:$0xf]
    %v4873 = vld [vmem:[#allocation11 + $0x6c] sm:$0xf]
    %v4874 = vld [vmem:[#allocation11 + $0x70] sm:$0xf]
    %v4875 = vld [vmem:[#allocation11 + $0x74] sm:$0xf]
    %v4876 = vld [vmem:[#allocation11 + $0x78] sm:$0xf]
    %v4877 = vld [vmem:[#allocation11 + $0x7c] sm:$0xf]
    %v4878 = vld [vmem:[#allocation13] sm:$0x1]
    %v4880 = vlaneseq
    %v4881 = vshrl.u32 %v4880, 7
    %v4882 = vsub.s32 0, %v4881
    %v4883 = vrot.slane %v4878, %v4882
    %v4917 = vunpack.c.l.b16 %v4846
    %v4918 = vunpack.c.l.b16 %v4847
    %v4919 = vunpack.c.l.b16 %v4848
    %v4920 = vunpack.c.l.b16 %v4849
    %v4921 = vunpack.c.l.b16 %v4850
    %v4922 = vunpack.c.l.b16 %v4851
    %v4923 = vunpack.c.l.b16 %v4852
    %v4924 = vunpack.c.l.b16 %v4853
    %v4925 = vunpack.c.l.b16 %v4854
    %v4926 = vunpack.c.l.b16 %v4855
    %v4927 = vunpack.c.l.b16 %v4856
    %v4928 = vunpack.c.l.b16 %v4857
    %v4929 = vunpack.c.l.b16 %v4858
    %v4930 = vunpack.c.l.b16 %v4859
    %v4931 = vunpack.c.l.b16 %v4860
    %v4932 = vunpack.c.l.b16 %v4861
    %v4933 = vunpack.c.l.b16 %v4862
    %v4934 = vunpack.c.l.b16 %v4863
    %v4935 = vunpack.c.l.b16 %v4864
    %v4936 = vunpack.c.l.b16 %v4865
    %v4937 = vunpack.c.l.b16 %v4866
    %v4938 = vunpack.c.l.b16 %v4867
    %v4939 = vunpack.c.l.b16 %v4868
    %v4940 = vunpack.c.l.b16 %v4869
    %v4941 = vunpack.c.l.b16 %v4870
    %v4942 = vunpack.c.l.b16 %v4871
    %v4943 = vunpack.c.l.b16 %v4872
    %v4944 = vunpack.c.l.b16 %v4873
    %v4945 = vunpack.c.l.b16 %v4874
    %v4946 = vunpack.c.l.b16 %v4875
    %v4947 = vunpack.c.l.b16 %v4876
    %v4948 = vunpack.c.l.b16 %v4877
    %v4949 = vpack.c.b16 %v4918, %v4917
    %v4950 = vpack.c.b16 %v4920, %v4919
    %v4951 = vpack.c.b16 %v4922, %v4921
    %v4952 = vpack.c.b16 %v4924, %v4923
    %v4953 = vpack.c.b16 %v4926, %v4925
    %v4954 = vpack.c.b16 %v4928, %v4927
    %v4955 = vpack.c.b16 %v4930, %v4929
    %v4956 = vpack.c.b16 %v4932, %v4931
    %v4957 = vpack.c.b16 %v4934, %v4933
    %v4958 = vpack.c.b16 %v4936, %v4935
    %v4959 = vpack.c.b16 %v4938, %v4937
    %v4960 = vpack.c.b16 %v4940, %v4939
    %v4961 = vpack.c.b16 %v4942, %v4941
    %v4962 = vpack.c.b16 %v4944, %v4943
    %v4963 = vpack.c.b16 %v4946, %v4945
    %v4964 = vpack.c.b16 %v4948, %v4947
    %4981 = vmatprep.subr.bf16.mxu0 0
    %4982 = vmatpush1.bf16.msra.mxu0 %v4956
    %4983 = vmatprep.subr.bf16.mxu0 0
    %4984 = vmatpush1.bf16.msra.mxu0 %v4955
    %4985 = vmatprep.subr.bf16.mxu0 0
    %4986 = vmatpush1.bf16.msra.mxu0 %v4954
    %4987 = vmatprep.subr.bf16.mxu0 0
    %4988 = vmatpush1.bf16.msra.mxu0 %v4953
    %4989 = vmatprep.subr.bf16.mxu0 0
    %4990 = vmatpush1.bf16.msra.mxu0 %v4952
    %4991 = vmatprep.subr.bf16.mxu0 0
    %4992 = vmatpush1.bf16.msra.mxu0 %v4951
    %4993 = vmatprep.subr.bf16.mxu0 0
    %4994 = vmatpush1.bf16.msra.mxu0 %v4950
    %4995 = vmatprep.subr.bf16.mxu0 0
    %4996 = vmatpush1.bf16.msra.mxu0 %v4949
    %4997 = vmatprep.subr.bf16.mxu0 0
    %4998 = vmatpush2.bf16.msra.mxu0 %v4964
    %4999 = vmatprep.subr.bf16.mxu0 0
    %5000 = vmatpush2.bf16.msra.mxu0 %v4963
    %5001 = vmatprep.subr.bf16.mxu0 0
    %5002 = vmatpush2.bf16.msra.mxu0 %v4962
    %5003 = vmatprep.subr.bf16.mxu0 0
    %5004 = vmatpush2.bf16.msra.mxu0 %v4961
    %5005 = vmatprep.subr.bf16.mxu0 0
    %5006 = vmatpush2.bf16.msra.mxu0 %v4960
    %5007 = vmatprep.subr.bf16.mxu0 0
    %5008 = vmatpush2.bf16.msra.mxu0 %v4959
    %5009 = vmatprep.subr.bf16.mxu0 0
    %5010 = vmatpush2.bf16.msra.mxu0 %v4958
    %5011 = vmatprep.subr.bf16.mxu0 0
    %5012 = vmatpush2.bf16.msra.mxu0 %v4957
    %5013 = vmatprep.mubr.bf16.mxu0 %v4845
    %5014 = vmatmul.mubr.bf16.gmra.mxu0 %v4844
    %v5015 = vpop.f32.mrf.mxu0
    %v5016 = vadd.f32 %v4883, %v5015
    %v5017 = vpop.f32.mrf.mxu0
    %v5018 = vpop.f32.mrf.mxu0
    %v5019 = vpop.f32.mrf.mxu0
    %5020 = vdwg.mxu0
    %5021 = vst [vmem:[#allocation14] sm:$0xf] %v5016
    // Predicated region
    $region62: #{textcnn_forward.1} parent=1 // pred_check
      _
    $region63: #{textcnn_forward.1} parent=1 // pred_check_branch
      %5023 = sbr.rel (0) target = $region65
    $region64: #{textcnn_forward.1} parent=1 // pred_region
      %s5025 = ssub.s32 64, 64
      %5026 = vsyncadd [#allocation4], %s5025
      %s5028 = sshll.u32 [#allocation14], 4
      %s5029 = int_to_ptr.vmem [resolvable:$true] %s5028
      %5031 = dma.vmem_to_hbm [thread:$0]  %s5029, 64, %s8, [#allocation4]
    $region65: #{textcnn_forward.1} parent=1 // pred_fallthru
      _
    // Predicated region
    $region66: #{textcnn_forward.1} parent=1 // pred_check
      _
    $region67: #{textcnn_forward.1} parent=1 // pred_check_branch
      %5033 = sbr.rel (0) target = $region69
    $region68: #{textcnn_forward.1} parent=1 // pred_region
      %5034 = dma.done [#allocation4], 64
    $region69: #{textcnn_forward.1} parent=1 // pred_fallthru
      _
    %5035 = vsyncpa [#allocation3], 1
    %5036 = vsyncpa [#allocation6], 1
    %5037 = vsyncpa [#allocation9], 1
    %5038 = vsyncpa [#allocation12], 1
    %5039 = vsyncpa [#allocation4], 1

</llo_original>
